<compile_context>
chip_gen: v7x
topology: tpu7x:2x2x1
jax: 0.10.0
libtpu: 0.0.40
codegen_flags: <defaults>
</compile_context>

<pallas_src>
import jax
import jax.numpy as jnp
from jax.experimental import pallas as pl
from jax.experimental.pallas import tpu as pltpu

_LN_EPS = 1e-5  # nn.LayerNorm default


# --------------------------------------------------------------------------- #
# Kernels
# --------------------------------------------------------------------------- #
def _norm_hidden_kernel(msa_ref, gamma_ref, beta_ref, wa_ref, wb_ref,
                        a_scale_ref, n_mask_ref, a_out_ref, b_out_ref):
    # msa_ref: (1, 1, n, d) f32   gamma/beta: (1, d) f32
    # wa/wb:   (d, h) bf16        a_scale: (1, 1, n, 1) f32   n_mask: (1, n, 1) f32
    x = msa_ref[0, 0]                                   # (n, d)
    mu = jnp.mean(x, axis=-1, keepdims=True)
    xc = x - mu
    var = jnp.mean(xc * xc, axis=-1, keepdims=True)
    xn = xc * jax.lax.rsqrt(var + _LN_EPS)
    xn = xn * gamma_ref[...] + beta_ref[...]            # (n, d)

    xb = xn.astype(jnp.bfloat16)                        # bf16 operands, f32 acc
    a = jnp.dot(xb, wa_ref[...], preferred_element_type=jnp.float32)   # (n, h)
    b = jnp.dot(xb, wb_ref[...], preferred_element_type=jnp.float32)   # (n, h)

    # a gets msa_mask[b,s] / den[b] * mask[b,i];  b gets mask[b,j]
    a_out_ref[0, 0] = (a * a_scale_ref[0, 0]).astype(jnp.bfloat16)
    b_out_ref[0, 0] = (b * n_mask_ref[0]).astype(jnp.bfloat16)


def _opm_kernel(a_ref, b_ref, o_ref):
    # a_ref: (1, TI*h, s) bf16   b_ref: (1, s, TJ*h) bf16   o_ref: (1, TI*h, TJ*h)
    o_ref[0] = jnp.dot(a_ref[0], b_ref[0],
                       preferred_element_type=jnp.float32).astype(o_ref.dtype)


def _proj_kernel(x_ref, w_ref, bias_ref, o_ref):
    # x_ref: (TR, h*h) bf16   w_ref: (h*h, dp) bf16   bias: (1, dp) f32
    acc = jnp.dot(x_ref[...], w_ref[...], preferred_element_type=jnp.float32)
    o_ref[...] = acc + bias_ref[...]


# --------------------------------------------------------------------------- #
# Wrapper
# --------------------------------------------------------------------------- #
def _pick_tile(total, prefs):
    for t in prefs:
        if total % t == 0:
            return t
    return total


def outer_product_mean(msa, *, mask=None, msa_mask=None,
                       gamma, beta, w_hidden, w_pair, b_pair, eps=1e-5):
    """msa: [b, s, n, d] f32, mask: [b, n] bool | None, msa_mask: [b, s] bool | None.
    gamma/beta: [d] (LayerNorm), w_hidden: [2h, d] (LinearNoBias),
    w_pair: [dp, h*h], b_pair: [dp].  Returns [b, n, n, dp] f32."""
    b, s, n, d = msa.shape
    h = w_hidden.shape[0] // 2
    dp = w_pair.shape[0]
    assert w_hidden.shape == (2 * h, d)
    assert w_pair.shape == (dp, h * h)

    f32, bf16 = jnp.float32, jnp.bfloat16

    # ---- tiny wrapper-side glue (O(b*s + b*n + params)); no device->host sync ----
    if msa_mask is None:
        row_scale = jnp.full((b, s), 1.0 / s, f32)
    else:
        den = jnp.maximum(jnp.sum(msa_mask.astype(f32), axis=-1), eps)   # (b,)
        row_scale = msa_mask.astype(f32) / den[:, None]                  # (b, s)
    n_mask = jnp.ones((b, n), f32) if mask is None else mask.astype(f32)

    a_scale = (row_scale[:, :, None] * n_mask[:, None, :]).reshape(b, s, n, 1)
    n_mask_col = n_mask.reshape(b, n, 1)

    gamma2 = gamma.astype(f32).reshape(1, d)
    beta2 = beta.astype(f32).reshape(1, d)
    wa = jnp.transpose(w_hidden[:h]).astype(bf16)          # (d, h)
    wb = jnp.transpose(w_hidden[h:]).astype(bf16)          # (d, h)
    w2t = jnp.transpose(w_pair).astype(bf16)               # (h*h, dp), (d e) order
    bias2 = b_pair.astype(f32).reshape(1, dp)

    # ---- K1: LayerNorm + hidden projection (+ folded masks / 1/den) ----
    a_h, b_h = pl.pallas_call(
        _norm_hidden_kernel,
        out_shape=(jax.ShapeDtypeStruct((b, s, n, h), bf16),
                   jax.ShapeDtypeStruct((b, s, n, h), bf16)),
        grid_spec=pltpu.PrefetchScalarGridSpec(
            num_scalar_prefetch=0,
            grid=(b, s),
            in_specs=[
                pl.BlockSpec((1, 1, n, d), lambda bi, si: (bi, si, 0, 0)),
                pl.BlockSpec((1, d), lambda bi, si: (0, 0)),
                pl.BlockSpec((1, d), lambda bi, si: (0, 0)),
                pl.BlockSpec((d, h), lambda bi, si: (0, 0)),
                pl.BlockSpec((d, h), lambda bi, si: (0, 0)),
                pl.BlockSpec((1, 1, n, 1), lambda bi, si: (bi, si, 0, 0)),
                pl.BlockSpec((1, n, 1), lambda bi, si: (bi, 0, 0)),
            ],
            out_specs=(
                pl.BlockSpec((1, 1, n, h), lambda bi, si: (bi, si, 0, 0)),
                pl.BlockSpec((1, 1, n, h), lambda bi, si: (bi, si, 0, 0)),
            ),
        ),
        compiler_params=pltpu.CompilerParams(
            dimension_semantics=("parallel", "parallel")),
    )(msa.astype(f32), gamma2, beta2, wa, wb, a_scale, n_mask_col)

    # ---- layout plumbing for the s-contraction ----
    a_t = jnp.transpose(a_h, (0, 2, 3, 1)).reshape(b, n * h, s)   # [(i,d), s]
    b_r = b_h.reshape(b, s, n * h)                                # [s, (j,e)]

    # ---- K2: outer-product mean, one matmul per (b, i-block, j-block) ----
    # TODO(synk): for very large s, add an s-grid axis with a VMEM f32 accumulator.
    ti = _pick_tile(n, (8, 4, 2, 1))          # ti*h = 256 for the default h=32
    opm = pl.pallas_call(
        _opm_kernel,
        out_shape=jax.ShapeDtypeStruct((b, n * h, n * h), bf16),
        grid_spec=pltpu.PrefetchScalarGridSpec(
            num_scalar_prefetch=0,
            grid=(b, n // ti, n // ti),
            in_specs=[
                pl.BlockSpec((1, ti * h, s), lambda bi, ii, ji: (bi, ii, 0)),
                pl.BlockSpec((1, s, ti * h), lambda bi, ii, ji: (bi, 0, ji)),
            ],
            out_specs=pl.BlockSpec((1, ti * h, ti * h),
                                   lambda bi, ii, ji: (bi, ii, ji)),
        ),
        compiler_params=pltpu.CompilerParams(
            dimension_semantics=("parallel", "parallel", "parallel")),
    )(a_t, b_r)

    # ---- layout plumbing: [(i,d),(j,e)] -> [(i,j),(d,e)] ----
    opm_rows = (opm.reshape(b, n, h, n, h)
                   .transpose(0, 1, 3, 2, 4)
                   .reshape(b * n * n, h * h))

    # ---- K3: pairwise projection, lane-dense (last dim = dp = 128) ----
    rows = b * n * n
    tr = _pick_tile(rows, (256, 128, 512, 64, 32, 16, 8))
    pair = pl.pallas_call(
        _proj_kernel,
        out_shape=jax.ShapeDtypeStruct((rows, dp), f32),
        grid_spec=pltpu.PrefetchScalarGridSpec(
            num_scalar_prefetch=0,
            grid=(rows // tr,),
            in_specs=[
                pl.BlockSpec((tr, h * h), lambda r: (r, 0)),
                pl.BlockSpec((h * h, dp), lambda r: (0, 0)),
                pl.BlockSpec((1, dp), lambda r: (0, 0)),
            ],
            out_specs=pl.BlockSpec((tr, dp), lambda r: (r, 0)),
        ),
        compiler_params=pltpu.CompilerParams(dimension_semantics=("parallel",)),
    )(opm_rows, w2t, bias2)

    return pair.reshape(b, n, n, dp)


# --------------------------------------------------------------------------- #
# Pure-JAX f32 reference (intended semantics of the PyTorch module)
# --------------------------------------------------------------------------- #
def _reference(msa, mask, msa_mask, gamma, beta, w_hidden, w_pair, b_pair,
               eps=1e-5):
    b, s, n, d = msa.shape
    h = w_hidden.shape[0] // 2
    mu = msa.mean(-1, keepdims=True)
    var = ((msa - mu) ** 2).mean(-1, keepdims=True)
    x = (msa - mu) / jnp.sqrt(var + _LN_EPS) * gamma + beta
    hidden = x @ w_hidden.T
    a, bb = hidden[..., :h], hidden[..., h:]
    mm = msa_mask.astype(jnp.float32)                               # (b, s)
    num = jnp.einsum('bsid,bsje->bijde', a * mm[:, :, None, None], bb)
    den = jnp.maximum(mm.sum(-1), eps)                              # (b,)
    opm = num / den[:, None, None, None, None]
    opm = opm.reshape(b, n, n, h * h)
    pm = (mask[:, :, None] & mask[:, None, :]).astype(jnp.float32)
    opm = opm * pm[..., None]
    return opm @ w_pair.T + b_pair


# --------------------------------------------------------------------------- #
if __name__ == "__main__":
    key = jax.random.PRNGKey(0)
    ks = jax.random.split(key, 8)

    b, s, n = 2, 8, 16
    d_msa, d_hidden, d_pair = 64, 32, 128

    msa = jax.random.normal(ks[0], (b, s, n, d_msa), jnp.float32)
    mask = jax.random.bernoulli(ks[1], 0.8, (b, n))
    msa_mask = jax.random.bernoulli(ks[2], 0.75, (b, s))
    msa_mask = msa_mask.at[:, 0].set(True)     # at least one valid row per batch

    gamma = 1.0 + 0.1 * jax.random.normal(ks[3], (d_msa,), jnp.float32)
    beta = 0.1 * jax.random.normal(ks[4], (d_msa,), jnp.float32)
    w_hidden = jax.random.normal(ks[5], (2 * d_hidden, d_msa), jnp.float32) / jnp.sqrt(d_msa)
    w_pair = jax.random.normal(ks[6], (d_pair, d_hidden * d_hidden), jnp.float32) / d_hidden
    b_pair = 0.02 * jax.random.normal(ks[7], (d_pair,), jnp.float32)

    opm_fn = jax.jit(outer_product_mean)
    out = opm_fn(msa, mask=mask, msa_mask=msa_mask, gamma=gamma, beta=beta,
                 w_hidden=w_hidden, w_pair=w_pair, b_pair=b_pair)
    out = jax.block_until_ready(out)

    ref = _reference(msa, mask, msa_mask, gamma, beta, w_hidden, w_pair, b_pair)
    assert out.shape == (b, n, n, d_pair)
    err = float(jnp.max(jnp.abs(out - ref)))
    scale = float(jnp.max(jnp.abs(ref)))
    assert err <= 5e-2 * max(scale, 1.0), f"mismatch: max|err|={err}, ref scale={scale}"

    print("KERNEL_OK")
</pallas_src>

<mosaic_0001>
module attributes {stable_mosaic.version = 11 : i64} {
  func.func @_opm_kernel(%arg0: i32, %arg1: i32, %arg2: i32, %arg3: memref<1x256x8xbf16, #tpu.memory_space<vmem>>, %arg4: memref<1x8x256xbf16, #tpu.memory_space<vmem>>, %arg5: memref<1x256x256xbf16, #tpu.memory_space<vmem>>) attributes {dimension_semantics = [#tpu.dimension_semantics<parallel>, #tpu.dimension_semantics<parallel>, #tpu.dimension_semantics<parallel>], iteration_bounds = array<i64: 2, 2, 2>, scalar_prefetch = 0 : i64, scratch_operands = 0 : i64, tpu.core_type = #tpu.core_type<tc>, window_params = [{transform_indices = @transform_0, window_bounds = array<i64: 1, 256, 8>}, {transform_indices = @transform_1, window_bounds = array<i64: 1, 8, 256>}, {transform_indices = @transform_2, window_bounds = array<i64: 1, 256, 256>}]} {
    %c0 = arith.constant 0 : index
    %c0_0 = arith.constant 0 : index
    %c0_1 = arith.constant 0 : index
    %0 = vector.load %arg3[%c0, %c0_0, %c0_1] : memref<1x256x8xbf16, #tpu.memory_space<vmem>>, vector<1x256x8xbf16>
    %1 = vector.shape_cast %0 : vector<1x256x8xbf16> to vector<256x8xbf16>
    %c0_2 = arith.constant 0 : index
    %c0_3 = arith.constant 0 : index
    %c0_4 = arith.constant 0 : index
    %2 = vector.load %arg4[%c0_2, %c0_3, %c0_4] : memref<1x8x256xbf16, #tpu.memory_space<vmem>>, vector<1x8x256xbf16>
    %3 = vector.shape_cast %2 : vector<1x8x256xbf16> to vector<8x256xbf16>
    %cst = arith.constant dense<0.000000e+00> : vector<256x256xf32>
    %4 = tpu.matmul %1, %3, %cst {dimension_numbers = #tpu.dot_dimension_numbers<[1], [0], [0], [1], [0, 0, 1, 1], [], []>} : vector<256x8xbf16>, vector<8x256xbf16>, vector<256x256xf32> -> vector<256x256xf32>
    %5 = arith.truncf %4 : vector<256x256xf32> to vector<256x256xbf16>
    %c0_5 = arith.constant 0 : index
    %c0_6 = arith.constant 0 : index
    %c0_7 = arith.constant 0 : index
    %6 = vector.load %arg5[%c0_5, %c0_6, %c0_7] : memref<1x256x256xbf16, #tpu.memory_space<vmem>>, vector<1x256x256xbf16>
    %7 = vector.shape_cast %6 : vector<1x256x256xbf16> to vector<256x256xbf16>
    %8 = vector.shape_cast %5 : vector<256x256xbf16> to vector<1x256x256xbf16>
    tpu.vector_store %arg5[%c0_5, %c0_6, %c0_7], %8 {strides = array<i32>} : memref<1x256x256xbf16, #tpu.memory_space<vmem>>, vector<1x256x256xbf16>,
    return
  }
  func.func @transform_0(%arg0: i32, %arg1: i32, %arg2: i32) -> (i32, i32, i32) {
    %c0_i32 = arith.constant 0 : i32
    %c0_i32_0 = arith.constant 0 : i32
    return %arg0, %arg1, %c0_i32 : i32, i32, i32
  }
  func.func @transform_1(%arg0: i32, %arg1: i32, %arg2: i32) -> (i32, i32, i32) {
    %c0_i32 = arith.constant 0 : i32
    %c0_i32_0 = arith.constant 0 : i32
    return %arg0, %c0_i32, %arg2 : i32, i32, i32
  }
  func.func @transform_2(%arg0: i32, %arg1: i32, %arg2: i32) -> (i32, i32, i32) {
    %c0_i32 = arith.constant 0 : i32
    return %arg0, %arg1, %arg2 : i32, i32, i32
  }
}

module attributes {stable_mosaic.version = 11 : i64} {
  func.func @_norm_hidden_kernel(%arg0: i32, %arg1: i32, %arg2: memref<1x1x16x64xf32, #tpu.memory_space<vmem>>, %arg3: memref<1x64xf32, #tpu.memory_space<vmem>>, %arg4: memref<1x64xf32, #tpu.memory_space<vmem>>, %arg5: memref<64x32xbf16, #tpu.memory_space<vmem>>, %arg6: memref<64x32xbf16, #tpu.memory_space<vmem>>, %arg7: memref<1x1x16x1xf32, #tpu.memory_space<vmem>>, %arg8: memref<1x16x1xf32, #tpu.memory_space<vmem>>, %arg9: memref<1x1x16x32xbf16, #tpu.memory_space<vmem>>, %arg10: memref<1x1x16x32xbf16, #tpu.memory_space<vmem>>) attributes {dimension_semantics = [#tpu.dimension_semantics<parallel>, #tpu.dimension_semantics<parallel>], iteration_bounds = array<i64: 2, 8>, scalar_prefetch = 0 : i64, scratch_operands = 0 : i64, tpu.core_type = #tpu.core_type<tc>, window_params = [{transform_indices = @transform_0, window_bounds = array<i64: 1, 1, 16, 64>}, {pipeline_mode = #tpu.pipeline_mode<synchronous>, transform_indices = @transform_1, window_bounds = array<i64: 1, 64>}, {pipeline_mode = #tpu.pipeline_mode<synchronous>, transform_indices = @transform_2, window_bounds = array<i64: 1, 64>}, {pipeline_mode = #tpu.pipeline_mode<synchronous>, transform_indices = @transform_3, window_bounds = array<i64: 64, 32>}, {pipeline_mode = #tpu.pipeline_mode<synchronous>, transform_indices = @transform_4, window_bounds = array<i64: 64, 32>}, {transform_indices = @transform_5, window_bounds = array<i64: 1, 1, 16, 1>}, {transform_indices = @transform_6, window_bounds = array<i64: 1, 16, 1>}, {transform_indices = @transform_7, window_bounds = array<i64: 1, 1, 16, 32>}, {transform_indices = @transform_8, window_bounds = array<i64: 1, 1, 16, 32>}]} {
    %c0 = arith.constant 0 : index
    %c0_0 = arith.constant 0 : index
    %c0_1 = arith.constant 0 : index
    %c0_2 = arith.constant 0 : index
    %0 = vector.load %arg2[%c0, %c0_0, %c0_1, %c0_2] : memref<1x1x16x64xf32, #tpu.memory_space<vmem>>, vector<1x1x16x64xf32>
    %1 = vector.shape_cast %0 : vector<1x1x16x64xf32> to vector<16x64xf32>
    %cst = arith.constant dense<0.000000e+00> : vector<16xf32>
    %2 = vector.multi_reduction <add>, %1, %cst [1] : vector<16x64xf32> to vector<16xf32>
    %3 = vector.shape_cast %2 : vector<16xf32> to vector<16x1xf32>
    %cst_3 = arith.constant 6.400000e+01 : f32
    %4 = vector.broadcast %cst_3 : f32 to vector<16x1xf32>
    %5 = arith.divf %3, %4 : vector<16x1xf32>
    %6 = vector.broadcast %5 : vector<16x1xf32> to vector<16x64xf32>
    %7 = arith.subf %1, %6 : vector<16x64xf32>
    %8 = arith.mulf %7, %7 : vector<16x64xf32>
    %cst_4 = arith.constant dense<0.000000e+00> : vector<16xf32>
    %9 = vector.multi_reduction <add>, %8, %cst_4 [1] : vector<16x64xf32> to vector<16xf32>
    %10 = vector.shape_cast %9 : vector<16xf32> to vector<16x1xf32>
    %cst_5 = arith.constant 6.400000e+01 : f32
    %11 = vector.broadcast %cst_5 : f32 to vector<16x1xf32>
    %12 = arith.divf %10, %11 : vector<16x1xf32>
    %cst_6 = arith.constant 9.99999974E-6 : f32
    %13 = vector.broadcast %cst_6 : f32 to vector<16x1xf32>
    %14 = arith.addf %12, %13 : vector<16x1xf32>
    %15 = math.rsqrt %14 : vector<16x1xf32>
    %16 = vector.broadcast %15 : vector<16x1xf32> to vector<16x64xf32>
    %17 = arith.mulf %7, %16 : vector<16x64xf32>
    %c0_7 = arith.constant 0 : index
    %c0_8 = arith.constant 0 : index
    %18 = vector.load %arg3[%c0_7, %c0_8] : memref<1x64xf32, #tpu.memory_space<vmem>>, vector<1x64xf32>
    %19 = vector.broadcast %18 : vector<1x64xf32> to vector<16x64xf32>
    %20 = arith.mulf %17, %19 : vector<16x64xf32>
    %c0_9 = arith.constant 0 : index
    %c0_10 = arith.constant 0 : index
    %21 = vector.load %arg4[%c0_9, %c0_10] : memref<1x64xf32, #tpu.memory_space<vmem>>, vector<1x64xf32>
    %22 = vector.broadcast %21 : vector<1x64xf32> to vector<16x64xf32>
    %23 = arith.addf %20, %22 : vector<16x64xf32>
    %24 = arith.truncf %23 : vector<16x64xf32> to vector<16x64xbf16>
    %c0_11 = arith.constant 0 : index
    %c0_12 = arith.constant 0 : index
    %25 = vector.load %arg5[%c0_11, %c0_12] : memref<64x32xbf16, #tpu.memory_space<vmem>>, vector<64x32xbf16>
    %cst_13 = arith.constant dense<0.000000e+00> : vector<16x32xf32>
    %26 = tpu.matmul %24, %25, %cst_13 {dimension_numbers = #tpu.dot_dimension_numbers<[1], [0], [0], [1], [0, 0, 1, 1], [], []>} : vector<16x64xbf16>, vector<64x32xbf16>, vector<16x32xf32> -> vector<16x32xf32>
    %c0_14 = arith.constant 0 : index
    %c0_15 = arith.constant 0 : index
    %27 = vector.load %arg6[%c0_14, %c0_15] : memref<64x32xbf16, #tpu.memory_space<vmem>>, vector<64x32xbf16>
    %cst_16 = arith.constant dense<0.000000e+00> : vector<16x32xf32>
    %28 = tpu.matmul %24, %27, %cst_16 {dimension_numbers = #tpu.dot_dimension_numbers<[1], [0], [0], [1], [0, 0, 1, 1], [], []>} : vector<16x64xbf16>, vector<64x32xbf16>, vector<16x32xf32> -> vector<16x32xf32>
    %c0_17 = arith.constant 0 : index
    %c0_18 = arith.constant 0 : index
    %c0_19 = arith.constant 0 : index
    %c0_20 = arith.constant 0 : index
    %29 = vector.load %arg7[%c0_17, %c0_18, %c0_19, %c0_20] : memref<1x1x16x1xf32, #tpu.memory_space<vmem>>, vector<1x1x16x1xf32>
    %30 = vector.shape_cast %29 : vector<1x1x16x1xf32> to vector<16x1xf32>
    %31 = vector.broadcast %30 : vector<16x1xf32> to vector<16x32xf32>
    %32 = arith.mulf %26, %31 : vector<16x32xf32>
    %33 = arith.truncf %32 : vector<16x32xf32> to vector<16x32xbf16>
    %c0_21 = arith.constant 0 : index
    %c0_22 = arith.constant 0 : index
    %c0_23 = arith.constant 0 : index
    %c0_24 = arith.constant 0 : index
    %34 = vector.load %arg9[%c0_21, %c0_22, %c0_23, %c0_24] : memref<1x1x16x32xbf16, #tpu.memory_space<vmem>>, vector<1x1x16x32xbf16>
    %35 = vector.shape_cast %34 : vector<1x1x16x32xbf16> to vector<16x32xbf16>
    %36 = vector.shape_cast %33 : vector<16x32xbf16> to vector<1x1x16x32xbf16>
    tpu.vector_store %arg9[%c0_21, %c0_22, %c0_23, %c0_24], %36 {strides = array<i32>} : memref<1x1x16x32xbf16, #tpu.memory_space<vmem>>, vector<1x1x16x32xbf16>,
    %c0_25 = arith.constant 0 : index
    %c0_26 = arith.constant 0 : index
    %c0_27 = arith.constant 0 : index
    %37 = vector.load %arg8[%c0_25, %c0_26, %c0_27] : memref<1x16x1xf32, #tpu.memory_space<vmem>>, vector<1x16x1xf32>
    %38 = vector.shape_cast %37 : vector<1x16x1xf32> to vector<16x1xf32>
    %39 = vector.broadcast %38 : vector<16x1xf32> to vector<16x32xf32>
    %40 = arith.mulf %28, %39 : vector<16x32xf32>
    %41 = arith.truncf %40 : vector<16x32xf32> to vector<16x32xbf16>
    %c0_28 = arith.constant 0 : index
    %c0_29 = arith.constant 0 : index
    %c0_30 = arith.constant 0 : index
    %c0_31 = arith.constant 0 : index
    %42 = vector.load %arg10[%c0_28, %c0_29, %c0_30, %c0_31] : memref<1x1x16x32xbf16, #tpu.memory_space<vmem>>, vector<1x1x16x32xbf16>
    %43 = vector.shape_cast %42 : vector<1x1x16x32xbf16> to vector<16x32xbf16>
    %44 = vector.shape_cast %41 : vector<16x32xbf16> to vector<1x1x16x32xbf16>
    tpu.vector_store %arg10[%c0_28, %c0_29, %c0_30, %c0_31], %44 {strides = array<i32>} : memref<1x1x16x32xbf16, #tpu.memory_space<vmem>>, vector<1x1x16x32xbf16>,
    return
  }
  func.func @transform_0(%arg0: i32, %arg1: i32) -> (i32, i32, i32, i32) {
    %c0_i32 = arith.constant 0 : i32
    %c0_i32_0 = arith.constant 0 : i32
    %c0_i32_1 = arith.constant 0 : i32
    return %arg0, %arg1, %c0_i32, %c0_i32_0 : i32, i32, i32, i32
  }
  func.func @transform_1(%arg0: i32, %arg1: i32) -> (i32, i32) {
    %c0_i32 = arith.constant 0 : i32
    %c0_i32_0 = arith.constant 0 : i32
    %c0_i32_1 = arith.constant 0 : i32
    return %c0_i32, %c0_i32_0 : i32, i32
  }
  func.func @transform_2(%arg0: i32, %arg1: i32) -> (i32, i32) {
    %c0_i32 = arith.constant 0 : i32
    %c0_i32_0 = arith.constant 0 : i32
    %c0_i32_1 = arith.constant 0 : i32
    return %c0_i32, %c0_i32_0 : i32, i32
  }
  func.func @transform_3(%arg0: i32, %arg1: i32) -> (i32, i32) {
    %c0_i32 = arith.constant 0 : i32
    %c0_i32_0 = arith.constant 0 : i32
    %c0_i32_1 = arith.constant 0 : i32
    return %c0_i32, %c0_i32_0 : i32, i32
  }
  func.func @transform_4(%arg0: i32, %arg1: i32) -> (i32, i32) {
    %c0_i32 = arith.constant 0 : i32
    %c0_i32_0 = arith.constant 0 : i32
    %c0_i32_1 = arith.constant 0 : i32
    return %c0_i32, %c0_i32_0 : i32, i32
  }
  func.func @transform_5(%arg0: i32, %arg1: i32) -> (i32, i32, i32, i32) {
    %c0_i32 = arith.constant 0 : i32
    %c0_i32_0 = arith.constant 0 : i32
    %c0_i32_1 = arith.constant 0 : i32
    return %arg0, %arg1, %c0_i32, %c0_i32_0 : i32, i32, i32, i32
  }
  func.func @transform_6(%arg0: i32, %arg1: i32) -> (i32, i32, i32) {
    %c0_i32 = arith.constant 0 : i32
    %c0_i32_0 = arith.constant 0 : i32
    %c0_i32_1 = arith.constant 0 : i32
    return %arg0, %c0_i32, %c0_i32_0 : i32, i32, i32
  }
  func.func @transform_7(%arg0: i32, %arg1: i32) -> (i32, i32, i32, i32) {
    %c0_i32 = arith.constant 0 : i32
    %c0_i32_0 = arith.constant 0 : i32
    %c0_i32_1 = arith.constant 0 : i32
    return %arg0, %arg1, %c0_i32, %c0_i32_0 : i32, i32, i32, i32
  }
  func.func @transform_8(%arg0: i32, %arg1: i32) -> (i32, i32, i32, i32) {
    %c0_i32 = arith.constant 0 : i32
    %c0_i32_0 = arith.constant 0 : i32
    %c0_i32_1 = arith.constant 0 : i32
    return %arg0, %arg1, %c0_i32, %c0_i32_0 : i32, i32, i32, i32
  }
}

module attributes {stable_mosaic.version = 11 : i64} {
  func.func @_proj_kernel(%arg0: i32, %arg1: memref<256x1024xbf16, #tpu.memory_space<vmem>>, %arg2: memref<1024x128xbf16, #tpu.memory_space<vmem>>, %arg3: memref<1x128xf32, #tpu.memory_space<vmem>>, %arg4: memref<256x128xf32, #tpu.memory_space<vmem>>) attributes {dimension_semantics = [#tpu.dimension_semantics<parallel>], iteration_bounds = array<i64: 2>, scalar_prefetch = 0 : i64, scratch_operands = 0 : i64, tpu.core_type = #tpu.core_type<tc>, window_params = [{transform_indices = @transform_0, window_bounds = array<i64: 256, 1024>}, {pipeline_mode = #tpu.pipeline_mode<synchronous>, transform_indices = @transform_1, window_bounds = array<i64: 1024, 128>}, {pipeline_mode = #tpu.pipeline_mode<synchronous>, transform_indices = @transform_2, window_bounds = array<i64: 1, 128>}, {transform_indices = @transform_3, window_bounds = array<i64: 256, 128>}]} {
    %c0 = arith.constant 0 : index
    %c0_0 = arith.constant 0 : index
    %0 = vector.load %arg1[%c0, %c0_0] : memref<256x1024xbf16, #tpu.memory_space<vmem>>, vector<256x1024xbf16>
    %c0_1 = arith.constant 0 : index
    %c0_2 = arith.constant 0 : index
    %1 = vector.load %arg2[%c0_1, %c0_2] : memref<1024x128xbf16, #tpu.memory_space<vmem>>, vector<1024x128xbf16>
    %cst = arith.constant dense<0.000000e+00> : vector<256x128xf32>
    %2 = tpu.matmul %0, %1, %cst {dimension_numbers = #tpu.dot_dimension_numbers<[1], [0], [0], [1], [0, 0, 1, 1], [], []>} : vector<256x1024xbf16>, vector<1024x128xbf16>, vector<256x128xf32> -> vector<256x128xf32>
    %c0_3 = arith.constant 0 : index
    %c0_4 = arith.constant 0 : index
    %3 = vector.load %arg3[%c0_3, %c0_4] : memref<1x128xf32, #tpu.memory_space<vmem>>, vector<1x128xf32>
    %4 = vector.broadcast %3 : vector<1x128xf32> to vector<256x128xf32>
    %5 = arith.addf %2, %4 : vector<256x128xf32>
    %c0_5 = arith.constant 0 : index
    %c0_6 = arith.constant 0 : index
    %6 = vector.load %arg4[%c0_5, %c0_6] : memref<256x128xf32, #tpu.memory_space<vmem>>, vector<256x128xf32>
    tpu.vector_store %arg4[%c0_5, %c0_6], %5 {strides = array<i32>} : memref<256x128xf32, #tpu.memory_space<vmem>>, vector<256x128xf32>,
    return
  }
  func.func @transform_0(%arg0: i32) -> (i32, i32) {
    %c0_i32 = arith.constant 0 : i32
    %c0_i32_0 = arith.constant 0 : i32
    return %arg0, %c0_i32 : i32, i32
  }
  func.func @transform_1(%arg0: i32) -> (i32, i32) {
    %c0_i32 = arith.constant 0 : i32
    %c0_i32_0 = arith.constant 0 : i32
    %c0_i32_1 = arith.constant 0 : i32
    return %c0_i32, %c0_i32_0 : i32, i32
  }
  func.func @transform_2(%arg0: i32) -> (i32, i32) {
    %c0_i32 = arith.constant 0 : i32
    %c0_i32_0 = arith.constant 0 : i32
    %c0_i32_1 = arith.constant 0 : i32
    return %c0_i32, %c0_i32_0 : i32, i32
  }
  func.func @transform_3(%arg0: i32) -> (i32, i32) {
    %c0_i32 = arith.constant 0 : i32
    %c0_i32_0 = arith.constant 0 : i32
    return %arg0, %c0_i32 : i32, i32
  }
}

</mosaic_0001>

<llo_original>
// kernel: outer_product_mean.3
$region0: #{outer_product_mean.3}
  #allocation0 [shape = 'u32[]', space=smem, size = 0x4, offset = 0x4, fixed_abs, tag = 'smem constant byte address 0x4 - core index']
  #allocation1 [shape = 'u32[144,128]{1,0:T(1,128)}', space=vmem, size = 0x12000, scoped, tag = 'internal scratch']
  %s0 = inlined_call_operand.hbm [shape: f32[2,8,16,64], index: 0, kind: input, shape index: {}]
  %s1 = inlined_call_operand.hbm [shape: f32[1,64], index: 1, kind: input, shape index: {}]
  %s2 = inlined_call_operand.hbm [shape: f32[1,64], index: 2, kind: input, shape index: {}]
  %s3 = inlined_call_operand.vmem [shape: bf16[64,32], index: 3, kind: input, shape index: {}]
  %s4 = inlined_call_operand.vmem [shape: bf16[64,32], index: 4, kind: input, shape index: {}]
  %s5 = inlined_call_operand.vmem [shape: f32[2,8,16,1], index: 5, kind: input, shape index: {}]
  %s6 = inlined_call_operand.vmem [shape: f32[2,16,1], index: 6, kind: input, shape index: {}]
  %s7 = inlined_call_operand.vmem [shape: bf16[2,8,16,32], index: 7, kind: output, shape index: {0}]
  %s8 = inlined_call_operand.vmem [shape: bf16[2,8,16,32], index: 8, kind: output, shape index: {1}]
  %9 = xla_tuple %s7, %s8
  %s10 = sld [smem:[#allocation0]]
  $region81: #{outer_product_mean.3} parent=0
    _
  %s12 = ssub.s32 1, %s10
  %s13 = scalar_select 0, %s12, %s10
  $region1: #{outer_product_mean.3} parent=0
    #allocation2 [shape = 'u8[16384]{0}', space=vmem, size = 0x4000, scoped, tag = 'input window, operand 0']
    #allocation3 [shape = 's32[2]{0}', space=sflag, size = 0x8, scoped, tag = 'scoped memory for outer_product_mean.3']
    #allocation4 [shape = 'u8[512]{0}', space=vmem, size = 0x400, scoped, tag = 'input window, operand 1, single buffered']
    #allocation5 [shape = 's32[1]{0}', space=sflag, size = 0x4, scoped, tag = 'scoped memory for outer_product_mean.3']
    #allocation6 [shape = 'u8[512]{0}', space=vmem, size = 0x400, scoped, tag = 'input window, operand 2, single buffered']
    %14 = vsyncpa [#allocation3], 0
    %s15 = scalar_lea.sflag [#allocation3], 1
    %16 = vsyncpa %s15, 0
    %17 = vsyncpa [#allocation5], 0
    loop: start=0, step=1, limit=18
    $region2: #{outer_product_mean.3} parent=1 // loop_pre_header
      _
    $region3: #{outer_product_mean.3} parent=1 // loop_header
      %s19 = sphi 0, %s23
      %p20 = scmp.ge.s32.totalorder %s19, 18
      %s26 = sphi 0, %s38
      %s27 = sphi 0, %s34
      %s28 = sphi 0, %s26
      %s29 = sphi 0, %s27
      %s30 = sphi 0, %s28
      %s31 = sphi 0, %s29
      %s43 = sphi 0, %s45
      %s46 = sphi 0, %s43
      %s47 = sphi 0, %s46
      %s63 = sphi 0, %s47
      %s67 = sphi 0, %s67
      %s69 = sphi 0, %s67
      %s70 = sphi 0, %s69
      %s84 = sphi 0, %s70
      %s88 = sphi 0, %s88
      %s90 = sphi 0, %s88
      %s91 = sphi 0, %s90
      %s105 = sphi 0, %s91
      %s109 = sphi 0, %s109
      %s111 = sphi 0, %s109
      %s112 = sphi 0, %s111
      %s126 = sphi 0, %s112
      %s130 = sphi 0, %s130
      %s132 = sphi 0, %s130
      %s133 = sphi 0, %s132
      %s147 = sphi 0, %s133
      %s155 = sphi 0, %s157
      %s158 = sphi 0, %s155
      %s159 = sphi 0, %s158
      %s175 = sphi 0, %s159
      %s181 = sphi 0, %s183
      %s184 = sphi 0, %s181
      %s185 = sphi 0, %s184
      %s201 = sphi 0, %s185
      %s209 = sphi 0, %s211
      %s212 = sphi 0, %s209
      %s213 = sphi 0, %s212
      %s229 = sphi 0, %s213
      %s237 = sphi 0, %s239
      %s240 = sphi 0, %s237
      %s241 = sphi 0, %s240
      %s257 = sphi 0, %s241
    $region4: #{outer_product_mean.3} parent=1 // loop_header_branch
      %22 = sbr.rel (%p20) target = $region8
    $region5: #{outer_product_mean.3} parent=1 // loop_body
      %s24 = ssub.s32 %s19, 1
      %s25 = ssub.s32 %s19, 2
      %s32 = sadd.s32 1, %s27
      %p33 = scmp.ge.s32.totalorder %s32, 8
      %s34 = scalar_select %p33, 0, %s32
      %s35 = sadd.s32 1, %s26
      %s36 = scalar_select %p33, %s35, %s26
      %p37 = scmp.ge.s32.totalorder %s36, 2
      %s38 = scalar_select %p37, 0, %s36
      %s39 = ssub.s32 %s26, %s38
      %s40 = ssub.s32 %s27, %s34
      %s41 = sor.u32 %s39, %s40
      %p42 = scmp.eq.s32.totalorder %s41, 0
      %s44 = sadd.s32 %s43, 1
      %s45 = scalar_select %p42, %s43, %s44
      %p48 = pneg %p42
      %p49 = scmp.eq.s32.totalorder %s19, 15
      %p50 = por %p48, %p49
      %p51 = scmp.ne.s32.totalorder %s43, %s46
      %p52 = scmp.eq.s32.totalorder %s19, 0
      %p53 = por %p51, %p52
      %p54 = scmp.ne.s32.totalorder %s43, %s46
      %p55 = scmp.eq.s32.totalorder %s24, 15
      %p56 = por %p54, %p55
      %p57 = scmp.ne.s32.totalorder %s46, %s47
      %p58 = scmp.eq.s32.totalorder %s24, 0
      %p59 = por %p57, %p58
      %p60 = scmp.ne.s32.totalorder %s46, %s47
      %p61 = scmp.eq.s32.totalorder %s25, 15
      %p62 = por %p60, %p61
      %p64 = scmp.ne.s32.totalorder %s47, %s63
      %p65 = scmp.eq.s32.totalorder %s25, 0
      %p66 = por %p64, %p65
      %s68 = sadd.s32 %s67, 1
      %p71 = scmp.eq.s32.totalorder %s19, 15
      %p72 = scmp.ne.s32.totalorder %s67, %s69
      %p73 = scmp.eq.s32.totalorder %s19, 0
      %p74 = por %p72, %p73
      %p75 = scmp.ne.s32.totalorder %s67, %s69
      %p76 = scmp.eq.s32.totalorder %s24, 15
      %p77 = por %p75, %p76
      %p78 = scmp.ne.s32.totalorder %s69, %s70
      %p79 = scmp.eq.s32.totalorder %s24, 0
      %p80 = por %p78, %p79
      %p81 = scmp.ne.s32.totalorder %s69, %s70
      %p82 = scmp.eq.s32.totalorder %s25, 15
      %p83 = por %p81, %p82
      %p85 = scmp.ne.s32.totalorder %s70, %s84
      %p86 = scmp.eq.s32.totalorder %s25, 0
      %p87 = por %p85, %p86
      %s89 = sadd.s32 %s88, 1
      %p92 = scmp.eq.s32.totalorder %s19, 15
      %p93 = scmp.ne.s32.totalorder %s88, %s90
      %p94 = scmp.eq.s32.totalorder %s19, 0
      %p95 = por %p93, %p94
      %p96 = scmp.ne.s32.totalorder %s88, %s90
      %p97 = scmp.eq.s32.totalorder %s24, 15
      %p98 = por %p96, %p97
      %p99 = scmp.ne.s32.totalorder %s90, %s91
      %p100 = scmp.eq.s32.totalorder %s24, 0
      %p101 = por %p99, %p100
      %p102 = scmp.ne.s32.totalorder %s90, %s91
      %p103 = scmp.eq.s32.totalorder %s25, 15
      %p104 = por %p102, %p103
      %p106 = scmp.ne.s32.totalorder %s91, %s105
      %p107 = scmp.eq.s32.totalorder %s25, 0
      %p108 = por %p106, %p107
      %s110 = sadd.s32 %s109, 1
      %p113 = scmp.eq.s32.totalorder %s19, 15
      %p114 = scmp.ne.s32.totalorder %s109, %s111
      %p115 = scmp.eq.s32.totalorder %s19, 0
      %p116 = por %p114, %p115
      %p117 = scmp.ne.s32.totalorder %s109, %s111
      %p118 = scmp.eq.s32.totalorder %s24, 15
      %p119 = por %p117, %p118
      %p120 = scmp.ne.s32.totalorder %s111, %s112
      %p121 = scmp.eq.s32.totalorder %s24, 0
      %p122 = por %p120, %p121
      %p123 = scmp.ne.s32.totalorder %s111, %s112
      %p124 = scmp.eq.s32.totalorder %s25, 15
      %p125 = por %p123, %p124
      %p127 = scmp.ne.s32.totalorder %s112, %s126
      %p128 = scmp.eq.s32.totalorder %s25, 0
      %p129 = por %p127, %p128
      %s131 = sadd.s32 %s130, 1
      %p134 = scmp.eq.s32.totalorder %s19, 15
      %p135 = scmp.ne.s32.totalorder %s130, %s132
      %p136 = scmp.eq.s32.totalorder %s19, 0
      %p137 = por %p135, %p136
      %p138 = scmp.ne.s32.totalorder %s130, %s132
      %p139 = scmp.eq.s32.totalorder %s24, 15
      %p140 = por %p138, %p139
      %p141 = scmp.ne.s32.totalorder %s132, %s133
      %p142 = scmp.eq.s32.totalorder %s24, 0
      %p143 = por %p141, %p142
      %p144 = scmp.ne.s32.totalorder %s132, %s133
      %p145 = scmp.eq.s32.totalorder %s25, 15
      %p146 = por %p144, %p145
      %p148 = scmp.ne.s32.totalorder %s133, %s147
      %p149 = scmp.eq.s32.totalorder %s25, 0
      %p150 = por %p148, %p149
      %s151 = ssub.s32 %s26, %s38
      %s152 = ssub.s32 %s27, %s34
      %s153 = sor.u32 %s151, %s152
      %p154 = scmp.eq.s32.totalorder %s153, 0
      %s156 = sadd.s32 %s155, 1
      %s157 = scalar_select %p154, %s155, %s156
      %p160 = pneg %p154
      %p161 = scmp.eq.s32.totalorder %s19, 15
      %p162 = por %p160, %p161
      %p163 = scmp.ne.s32.totalorder %s155, %s158
      %p164 = scmp.eq.s32.totalorder %s19, 0
      %p165 = por %p163, %p164
      %p166 = scmp.ne.s32.totalorder %s155, %s158
      %p167 = scmp.eq.s32.totalorder %s24, 15
      %p168 = por %p166, %p167
      %p169 = scmp.ne.s32.totalorder %s158, %s159
      %p170 = scmp.eq.s32.totalorder %s24, 0
      %p171 = por %p169, %p170
      %p172 = scmp.ne.s32.totalorder %s158, %s159
      %p173 = scmp.eq.s32.totalorder %s25, 15
      %p174 = por %p172, %p173
      %p176 = scmp.ne.s32.totalorder %s159, %s175
      %p177 = scmp.eq.s32.totalorder %s25, 0
      %p178 = por %p176, %p177
      %s179 = ssub.s32 %s26, %s38
      %p180 = scmp.eq.s32.totalorder %s179, 0
      %s182 = sadd.s32 %s181, 1
      %s183 = scalar_select %p180, %s181, %s182
      %p186 = pneg %p180
      %p187 = scmp.eq.s32.totalorder %s19, 15
      %p188 = por %p186, %p187
      %p189 = scmp.ne.s32.totalorder %s181, %s184
      %p190 = scmp.eq.s32.totalorder %s19, 0
      %p191 = por %p189, %p190
      %p192 = scmp.ne.s32.totalorder %s181, %s184
      %p193 = scmp.eq.s32.totalorder %s24, 15
      %p194 = por %p192, %p193
      %p195 = scmp.ne.s32.totalorder %s184, %s185
      %p196 = scmp.eq.s32.totalorder %s24, 0
      %p197 = por %p195, %p196
      %p198 = scmp.ne.s32.totalorder %s184, %s185
      %p199 = scmp.eq.s32.totalorder %s25, 15
      %p200 = por %p198, %p199
      %p202 = scmp.ne.s32.totalorder %s185, %s201
      %p203 = scmp.eq.s32.totalorder %s25, 0
      %p204 = por %p202, %p203
      %s205 = ssub.s32 %s26, %s38
      %s206 = ssub.s32 %s27, %s34
      %s207 = sor.u32 %s205, %s206
      %p208 = scmp.eq.s32.totalorder %s207, 0
      %s210 = sadd.s32 %s209, 1
      %s211 = scalar_select %p208, %s209, %s210
      %p214 = pneg %p208
      %p215 = scmp.eq.s32.totalorder %s19, 15
      %p216 = por %p214, %p215
      %p217 = scmp.ne.s32.totalorder %s209, %s212
      %p218 = scmp.eq.s32.totalorder %s19, 0
      %p219 = por %p217, %p218
      %p220 = scmp.ne.s32.totalorder %s209, %s212
      %p221 = scmp.eq.s32.totalorder %s24, 15
      %p222 = por %p220, %p221
      %p223 = scmp.ne.s32.totalorder %s212, %s213
      %p224 = scmp.eq.s32.totalorder %s24, 0
      %p225 = por %p223, %p224
      %p226 = scmp.ne.s32.totalorder %s212, %s213
      %p227 = scmp.eq.s32.totalorder %s25, 15
      %p228 = por %p226, %p227
      %p230 = scmp.ne.s32.totalorder %s213, %s229
      %p231 = scmp.eq.s32.totalorder %s25, 0
      %p232 = por %p230, %p231
      %s233 = ssub.s32 %s26, %s38
      %s234 = ssub.s32 %s27, %s34
      %s235 = sor.u32 %s233, %s234
      %p236 = scmp.eq.s32.totalorder %s235, 0
      %s238 = sadd.s32 %s237, 1
      %s239 = scalar_select %p236, %s237, %s238
      %p242 = pneg %p236
      %p243 = scmp.eq.s32.totalorder %s19, 15
      %p244 = por %p242, %p243
      %p245 = scmp.ne.s32.totalorder %s237, %s240
      %p246 = scmp.eq.s32.totalorder %s19, 0
      %p247 = por %p245, %p246
      %p248 = scmp.ne.s32.totalorder %s237, %s240
      %p249 = scmp.eq.s32.totalorder %s24, 15
      %p250 = por %p248, %p249
      %p251 = scmp.ne.s32.totalorder %s240, %s241
      %p252 = scmp.eq.s32.totalorder %s24, 0
      %p253 = por %p251, %p252
      %p254 = scmp.ne.s32.totalorder %s240, %s241
      %p255 = scmp.eq.s32.totalorder %s25, 15
      %p256 = por %p254, %p255
      %p258 = scmp.ne.s32.totalorder %s241, %s257
      %p259 = scmp.eq.s32.totalorder %s25, 0
      %p260 = por %p258, %p259
      %p261 = scmp.le.s32.totalorder 1, %s19
      %p262 = scmp.lt.s32.totalorder %s19, 17
      %p263 = pnand %p261, %p262
      %p264 = pneg %p263
      // Predicated region
      $region9: #{outer_product_mean.3} parent=5 // pred_check
        _
      $region10: #{outer_product_mean.3} parent=5 // pred_check_branch
        %266 = sbr.rel (%p263) target = $region12
      $region11: #{outer_product_mean.3} parent=5 // pred_region
        %s267 = ssub.s32 %s19, 1
        // Predicated region
        $region13: #{outer_product_mean.3} parent=11 // pred_check
          %p268 = pneg %p80
        $region14: #{outer_product_mean.3} parent=11 // pred_check_branch
          %270 = sbr.rel (%p268) target = $region16
        $region15: #{outer_product_mean.3} parent=11 // pred_region
          %s272 = ssub.s32 16, 16
          %273 = vsyncadd [#allocation5], %s272
          %s275 = sshll.u32 [#allocation4], 4
          %s276 = int_to_ptr.vmem [resolvable:$true] %s275
          %278 = dma.hbm_to_vmem [thread:$0]  %s1, 16, %s276, [#allocation5]
        $region16: #{outer_product_mean.3} parent=11 // pred_fallthru
          _
        // Predicated region
        $region17: #{outer_product_mean.3} parent=11 // pred_check
          %p279 = pneg %p101
        $region18: #{outer_product_mean.3} parent=11 // pred_check_branch
          %281 = sbr.rel (%p279) target = $region20
        $region19: #{outer_product_mean.3} parent=11 // pred_region
          %s283 = ssub.s32 16, 16
          %284 = vsyncadd [#allocation5], %s283
          %s286 = sshll.u32 [#allocation6], 4
          %s287 = int_to_ptr.vmem [resolvable:$true] %s286
          %289 = dma.hbm_to_vmem [thread:$0]  %s2, 16, %s287, [#allocation5]
        $region20: #{outer_product_mean.3} parent=11 // pred_fallthru
          _
        // Predicated region
        $region21: #{outer_product_mean.3} parent=11 // pred_check
          %p290 = pneg %p122
        $region22: #{outer_product_mean.3} parent=11 // pred_check_branch
          %292 = sbr.rel (%p290) target = $region24
        $region23: #{outer_product_mean.3} parent=11 // pred_region
          _
        $region24: #{outer_product_mean.3} parent=11 // pred_fallthru
          _
        // Predicated region
        $region25: #{outer_product_mean.3} parent=11 // pred_check
          %p293 = pneg %p143
        $region26: #{outer_product_mean.3} parent=11 // pred_check_branch
          %295 = sbr.rel (%p293) target = $region28
        $region27: #{outer_product_mean.3} parent=11 // pred_region
          _
        $region28: #{outer_product_mean.3} parent=11 // pred_fallthru
          _
      $region12: #{outer_product_mean.3} parent=5 // pred_fallthru
        _
      %p296 = scmp.lt.s32.totalorder %s19, 16
      // Predicated region
      $region29: #{outer_product_mean.3} parent=5 // pred_check
        %p297 = pneg %p296
      $region30: #{outer_product_mean.3} parent=5 // pred_check_branch
        %299 = sbr.rel (%p297) target = $region32
      $region31: #{outer_product_mean.3} parent=5 // pred_region
        // Predicated region
        $region33: #{outer_product_mean.3} parent=31 // pred_check
          %p300 = pneg %p53
        $region34: #{outer_product_mean.3} parent=31 // pred_check_branch
          %302 = sbr.rel (%p300) target = $region36
        $region35: #{outer_product_mean.3} parent=31 // pred_region
          %s303 = sand.u32 %s43, 1
          %s304 = scalar_lea.sflag [#allocation3], %s303
          %s305 = sand.u32 %s43, 1
          %s306 = smul.addr %s305, 16
          %s307 = scalar_lea.vmem [#allocation2], %s306
          %s309 = ssub.s32 256, 256
          %310 = vsyncadd %s304, %s309
          %s311 = smul.addr %s27, 2
          %s312 = smul.addr %s26, 16
          %s313 = sadd.s32 %s311, %s312
          %s314 = smul.addr %s313, 128
          %s315 = scalar_lea.hbm %s0, %s314
          %s316 = sshll.u32 %s307, 4
          %s317 = int_to_ptr.vmem [resolvable:$true] %s316
          %322 = dma.hbm_to_vmem [thread:$0]  %s315, 256, %s317, %s304, 128, 128, 8
        $region36: #{outer_product_mean.3} parent=31 // pred_fallthru
          _
        // Predicated region
        $region37: #{outer_product_mean.3} parent=31 // pred_check
          %p323 = pneg %p165
        $region38: #{outer_product_mean.3} parent=31 // pred_check_branch
          %325 = sbr.rel (%p323) target = $region40
        $region39: #{outer_product_mean.3} parent=31 // pred_region
          %p326 = scmp.lt.s32.totalorder %s26, 1
          %s327 = scalar_select %p326, %s26, 1
          %p328 = scmp.lt.s32.totalorder %s27, 7
          %s329 = scalar_select %p328, %s27, 7
          %s330 = smul.addr %s329, 2
          %s331 = smul.addr %s327, 16
          %s332 = sadd.s32 %s330, %s331
          %s333 = smul.addr %s332, 8
          %s334 = scalar_lea.vmem %s5, %s333
        $region40: #{outer_product_mean.3} parent=31 // pred_fallthru
          _
        // Predicated region
        $region41: #{outer_product_mean.3} parent=31 // pred_check
          %p335 = pneg %p191
        $region42: #{outer_product_mean.3} parent=31 // pred_check_branch
          %337 = sbr.rel (%p335) target = $region44
        $region43: #{outer_product_mean.3} parent=31 // pred_region
          %p338 = scmp.lt.s32.totalorder %s26, 1
          %s339 = scalar_select %p338, %s26, 1
          %s340 = smul.addr %s339, 2
          %s341 = smul.addr %s340, 8
          %s342 = scalar_lea.vmem %s6, %s341
        $region44: #{outer_product_mean.3} parent=31 // pred_fallthru
          _
      $region32: #{outer_product_mean.3} parent=5 // pred_fallthru
        _
      %p343 = scmp.le.s32.totalorder 1, %s19
      %p344 = scmp.lt.s32.totalorder %s19, 17
      %p345 = pnand %p343, %p344
      %p346 = pneg %p345
      // Predicated region
      $region45: #{outer_product_mean.3} parent=5 // pred_check
        _
      $region46: #{outer_product_mean.3} parent=5 // pred_check_branch
        %348 = sbr.rel (%p345) target = $region48
      $region47: #{outer_product_mean.3} parent=5 // pred_region
        %s349 = ssub.s32 %s19, 1
        %s350 = sand.u32 %s46, 1
        %s351 = scalar_lea.sflag [#allocation3], %s350
        %s352 = sand.u32 %s46, 1
        %s353 = smul.addr %s352, 16
        %s354 = scalar_lea.vmem [#allocation2], %s353
        // Predicated region
        $region49: #{outer_product_mean.3} parent=47 // pred_check
          %p355 = pneg %p59
        $region50: #{outer_product_mean.3} parent=47 // pred_check_branch
          %357 = sbr.rel (%p355) target = $region52
        $region51: #{outer_product_mean.3} parent=47 // pred_region
          %358 = dma.done %s351, 256
        $region52: #{outer_product_mean.3} parent=47 // pred_fallthru
          _
        // Predicated region
        $region53: #{outer_product_mean.3} parent=47 // pred_check
          %p359 = pneg %p80
        $region54: #{outer_product_mean.3} parent=47 // pred_check_branch
          %361 = sbr.rel (%p359) target = $region56
        $region55: #{outer_product_mean.3} parent=47 // pred_region
          %362 = dma.done [#allocation5], 16
        $region56: #{outer_product_mean.3} parent=47 // pred_fallthru
          _
        // Predicated region
        $region57: #{outer_product_mean.3} parent=47 // pred_check
          %p363 = pneg %p101
        $region58: #{outer_product_mean.3} parent=47 // pred_check_branch
          %365 = sbr.rel (%p363) target = $region60
        $region59: #{outer_product_mean.3} parent=47 // pred_region
          %366 = dma.done [#allocation5], 16
        $region60: #{outer_product_mean.3} parent=47 // pred_fallthru
          _
        %s367 = sand.u32 %s46, 1
        %s368 = scalar_lea.sflag [#allocation3], %s367
        %s369 = sand.u32 %s46, 1
        %s370 = smul.addr %s369, 16
        %s371 = scalar_lea.vmem [#allocation2], %s370
        %p372 = pneg %p59
        %p373 = pneg %p56
        %p374 = pneg %p80
        %p375 = pneg %p77
        %p376 = pneg %p101
        %p377 = pneg %p98
        %p378 = pneg %p122
        %p379 = pneg %p119
        %p380 = pneg %p143
        %p381 = pneg %p140
        %p382 = scmp.lt.s32.totalorder %s28, 1
        %s383 = scalar_select %p382, %s28, 1
        %p384 = scmp.lt.s32.totalorder %s29, 7
        %s385 = scalar_select %p384, %s29, 7
        %s386 = smul.addr %s385, 2
        %s387 = smul.addr %s383, 16
        %s388 = sadd.s32 %s386, %s387
        %s389 = smul.addr %s388, 8
        %s390 = scalar_lea.vmem %s5, %s389
        %p391 = pneg %p171
        %p392 = pneg %p168
        %p393 = scmp.lt.s32.totalorder %s28, 1
        %s394 = scalar_select %p393, %s28, 1
        %s395 = smul.addr %s394, 2
        %s396 = smul.addr %s395, 8
        %s397 = scalar_lea.vmem %s6, %s396
        %p398 = pneg %p197
        %p399 = pneg %p194
        %p400 = pneg %p225
        %p401 = pneg %p222
        %p402 = scmp.lt.s32.totalorder %s28, 1
        %s403 = scalar_select %p402, %s28, 1
        %p404 = scmp.lt.s32.totalorder %s29, 7
        %s405 = scalar_select %p404, %s29, 7
        %s406 = smul.addr %s405, 2
        %s407 = smul.addr %s403, 16
        %s408 = sadd.s32 %s406, %s407
        %s409 = smul.addr %s408, 4
        %s410 = scalar_lea.vmem %s7, %s409
        %p411 = pneg %p253
        %p412 = pneg %p250
        %p413 = scmp.lt.s32.totalorder %s28, 1
        %s414 = scalar_select %p413, %s28, 1
        %p415 = scmp.lt.s32.totalorder %s29, 7
        %s416 = scalar_select %p415, %s29, 7
        %s417 = smul.addr %s416, 2
        %s418 = smul.addr %s414, 16
        %s419 = sadd.s32 %s417, %s418
        %s420 = smul.addr %s419, 4
        %s421 = scalar_lea.vmem %s8, %s420
        %p422 = scmp.lt.s32.totalorder %s28, 1
        %s423 = scalar_select %p422, %s28, 1
        %p424 = scmp.lt.s32.totalorder %s29, 7
        %s425 = scalar_select %p424, %s29, 7
        %s426 = smul.addr %s425, 2
        %s427 = smul.addr %s423, 16
        %s428 = sadd.s32 %s426, %s427
        %s429 = smul.addr %s428, 8
        %s430 = scalar_lea.vmem %s5, %s429
        %p431 = scmp.lt.s32.totalorder %s28, 1
        %s432 = scalar_select %p431, %s28, 1
        %s433 = smul.addr %s432, 2
        %s434 = smul.addr %s433, 8
        %s435 = scalar_lea.vmem %s6, %s434
        %p436 = scmp.lt.s32.totalorder %s28, 1
        %s437 = scalar_select %p436, %s28, 1
        %p438 = scmp.lt.s32.totalorder %s29, 7
        %s439 = scalar_select %p438, %s29, 7
        %s440 = smul.addr %s439, 2
        %s441 = smul.addr %s437, 16
        %s442 = sadd.s32 %s440, %s441
        %s443 = smul.addr %s442, 4
        %s444 = scalar_lea.vmem %s7, %s443
        %p445 = scmp.lt.s32.totalorder %s28, 1
        %s446 = scalar_select %p445, %s28, 1
        %p447 = scmp.lt.s32.totalorder %s29, 7
        %s448 = scalar_select %p447, %s29, 7
        %s449 = smul.addr %s448, 2
        %s450 = smul.addr %s446, 16
        %s451 = sadd.s32 %s449, %s450
        %s452 = smul.addr %s451, 4
        %s453 = scalar_lea.vmem %s8, %s452
        %v455 = vld [vmem:[%s354] sm:$0xff]
        %v456 = vld [vmem:[%s354 + $0x8] sm:$0xff]
        %vm457 = vcmask 523264
        %v458 = vsel %vm457, %v455, 0.0
        %459 = vadd.xlane.f32.xlu0 %v458
        %v460 = vpop.xlane.xlu0 %459
        %v461 = vsel %vm457, %v456, 0.0
        %462 = vadd.xlane.f32.xlu0 %v461
        %v463 = vpop.xlane.xlu0 %462
        %v464 = vrcp.pop 64.0
        %v465 = vmul.f32 %v460, %v464
        %v466 = vmul.f32 %v463, %v464
        %v467 = vsub.f32 %v455, %v465
        %v468 = vsub.f32 %v456, %v466
        %v469 = vmul.f32 %v467, %v467
        %v470 = vmul.f32 %v468, %v468
        %v471 = vsel %vm457, %v469, 0.0
        %472 = vadd.xlane.f32.xlu0 %v471
        %v473 = vpop.xlane.xlu0 %472
        %v474 = vsel %vm457, %v470, 0.0
        %475 = vadd.xlane.f32.xlu0 %v474
        %v476 = vpop.xlane.xlu0 %475
        %v477 = vmul.f32 %v473, %v464
        %v478 = vmul.f32 %v476, %v464
        %v479 = vadd.f32 %v477, 1e-05
        %v480 = vadd.f32 %v478, 1e-05
        %v481 = vrsqrt.pop %v479
        %v482 = vrsqrt.pop %v480
        %v483 = vmul.f32 %v467, %v481
        %v484 = vmul.f32 %v468, %v482
        %v485 = vld [vmem:[#allocation4] sm:$0x1]
        %v487 = vlaneseq
        %v488 = vshrl.u32 %v487, 7
        %v489 = vsub.s32 0, %v488
        %v490 = vrot.slane %v485, %v489
        %v492 = vmul.f32 %v483, %v490
        %v493 = vmul.f32 %v484, %v490
        %v494 = vld [vmem:[#allocation6] sm:$0x1]
        %v496 = vlaneseq
        %v497 = vshrl.u32 %v496, 7
        %v498 = vsub.s32 0, %v497
        %v499 = vrot.slane %v494, %v498
        %v501 = vadd.f32 %v492, %v499
        %v502 = vadd.f32 %v493, %v499
        %v503 = vpack.c.bf16 %v502, %v501
        %v504 = vld [vmem:[%s3] sm:$0xf]
        %v505 = vld [vmem:[%s3 + $0x4] sm:$0xf]
        %v506 = vld [vmem:[%s3 + $0x8] sm:$0xf]
        %v507 = vld [vmem:[%s3 + $0xc] sm:$0xf]
        %v508 = vld [vmem:[%s3 + $0x10] sm:$0xf]
        %v509 = vld [vmem:[%s3 + $0x14] sm:$0xf]
        %v510 = vld [vmem:[%s3 + $0x18] sm:$0xf]
        %v511 = vld [vmem:[%s3 + $0x1c] sm:$0xf]
        %v520 = vunpack.c.l.b16 %v504
        %v521 = vunpack.c.l.b16 %v505
        %v522 = vunpack.c.l.b16 %v506
        %v523 = vunpack.c.l.b16 %v507
        %v524 = vunpack.c.l.b16 %v508
        %v525 = vunpack.c.l.b16 %v509
        %v526 = vunpack.c.l.b16 %v510
        %v527 = vunpack.c.l.b16 %v511
        %v528 = vpack.c.b16 %v521, %v520
        %v529 = vpack.c.b16 %v523, %v522
        %v530 = vpack.c.b16 %v525, %v524
        %v531 = vpack.c.b16 %v527, %v526
        %v537 = vsel %vm457, %v503, 0
        %539 = vmatprep.subr.bf16.mxu0 0
        %540 = vmatpush1.bf16.msra.mxu0 %v528
        %541 = vmatprep.subr.bf16.mxu0 0
        %542 = vmatpush1.bf16.msra.mxu0 %v529
        %543 = vmatprep.subr.bf16.mxu0 0
        %544 = vmatpush1.bf16.msra.mxu0 %v530
        %545 = vmatprep.subr.bf16.mxu0 0
        %546 = vmatpush1.bf16.msra.mxu0 %v531
        %547 = vmatprep.subr.bf16.mxu0 0
        %548 = vmatpush1.bf16.msra.mxu0 0
        %549 = vmatprep.subr.bf16.mxu0 0
        %550 = vmatpush1.bf16.msra.mxu0 0
        %551 = vmatprep.subr.bf16.mxu0 0
        %552 = vmatpush1.bf16.msra.mxu0 0
        %553 = vmatprep.subr.bf16.mxu0 0
        %554 = vmatpush1.bf16.msra.mxu0 0
        %555 = vmatprep.subr.bf16.mxu0 0
        %556 = vmatpush1.bf16.msra.mxu0 0
        %557 = vmatprep.subr.bf16.mxu0 0
        %558 = vmatpush1.bf16.msra.mxu0 0
        %559 = vmatprep.subr.bf16.mxu0 0
        %560 = vmatpush1.bf16.msra.mxu0 0
        %561 = vmatprep.subr.bf16.mxu0 0
        %562 = vmatpush1.bf16.msra.mxu0 0
        %563 = vmatprep.subr.bf16.mxu0 0
        %564 = vmatpush1.bf16.msra.mxu0 0
        %565 = vmatprep.subr.bf16.mxu0 0
        %566 = vmatpush1.bf16.msra.mxu0 0
        %567 = vmatprep.subr.bf16.mxu0 0
        %568 = vmatpush1.bf16.msra.mxu0 0
        %569 = vmatprep.subr.bf16.mxu0 0
        %570 = vmatpush1.bf16.msra.mxu0 0
        %571 = vmatprep.mubr.bf16.mxu0 0
        %572 = vmatmul.mubr.bf16.gmra.mrb[0].mxu0 %v537
        %v573 = vpop.f32.mrb[0].mxu0
        %v574 = vadd.f32 0.0, %v573
        %v575 = vpop.f32.mrb[0].mxu0
        %v576 = vpop.f32.mrb[0].mxu0
        %v577 = vadd.f32 0.0, %v576
        %v578 = vpop.f32.mrb[0].mxu0
        %579 = vdwg.mxu0
        %v580 = vld [vmem:[%s4] sm:$0xf]
        %v581 = vld [vmem:[%s4 + $0x4] sm:$0xf]
        %v582 = vld [vmem:[%s4 + $0x8] sm:$0xf]
        %v583 = vld [vmem:[%s4 + $0xc] sm:$0xf]
        %v584 = vld [vmem:[%s4 + $0x10] sm:$0xf]
        %v585 = vld [vmem:[%s4 + $0x14] sm:$0xf]
        %v586 = vld [vmem:[%s4 + $0x18] sm:$0xf]
        %v587 = vld [vmem:[%s4 + $0x1c] sm:$0xf]
        %v596 = vunpack.c.l.b16 %v580
        %v597 = vunpack.c.l.b16 %v581
        %v598 = vunpack.c.l.b16 %v582
        %v599 = vunpack.c.l.b16 %v583
        %v600 = vunpack.c.l.b16 %v584
        %v601 = vunpack.c.l.b16 %v585
        %v602 = vunpack.c.l.b16 %v586
        %v603 = vunpack.c.l.b16 %v587
        %v604 = vpack.c.b16 %v597, %v596
        %v605 = vpack.c.b16 %v599, %v598
        %v606 = vpack.c.b16 %v601, %v600
        %v607 = vpack.c.b16 %v603, %v602
        %612 = vmatprep.subr.bf16.mxu0 0
        %613 = vmatpush1.bf16.msra.mxu0 %v604
        %614 = vmatprep.subr.bf16.mxu0 0
        %615 = vmatpush1.bf16.msra.mxu0 %v605
        %616 = vmatprep.subr.bf16.mxu0 0
        %617 = vmatpush1.bf16.msra.mxu0 %v606
        %618 = vmatprep.subr.bf16.mxu0 0
        %619 = vmatpush1.bf16.msra.mxu0 %v607
        %620 = vmatprep.subr.bf16.mxu0 0
        %621 = vmatpush1.bf16.msra.mxu0 0
        %622 = vmatprep.subr.bf16.mxu0 0
        %623 = vmatpush1.bf16.msra.mxu0 0
        %624 = vmatprep.subr.bf16.mxu0 0
        %625 = vmatpush1.bf16.msra.mxu0 0
        %626 = vmatprep.subr.bf16.mxu0 0
        %627 = vmatpush1.bf16.msra.mxu0 0
        %628 = vmatprep.subr.bf16.mxu0 0
        %629 = vmatpush1.bf16.msra.mxu0 0
        %630 = vmatprep.subr.bf16.mxu0 0
        %631 = vmatpush1.bf16.msra.mxu0 0
        %632 = vmatprep.subr.bf16.mxu0 0
        %633 = vmatpush1.bf16.msra.mxu0 0
        %634 = vmatprep.subr.bf16.mxu0 0
        %635 = vmatpush1.bf16.msra.mxu0 0
        %636 = vmatprep.subr.bf16.mxu0 0
        %637 = vmatpush1.bf16.msra.mxu0 0
        %638 = vmatprep.subr.bf16.mxu0 0
        %639 = vmatpush1.bf16.msra.mxu0 0
        %640 = vmatprep.subr.bf16.mxu0 0
        %641 = vmatpush1.bf16.msra.mxu0 0
        %642 = vmatprep.subr.bf16.mxu0 0
        %643 = vmatpush1.bf16.msra.mxu0 0
        %644 = vmatprep.mubr.bf16.mxu0 0
        %645 = vmatmul.mubr.bf16.gmra.mrb[0].mxu0 %v537
        %v646 = vpop.f32.mrb[0].mxu0
        %v647 = vadd.f32 0.0, %v646
        %v648 = vpop.f32.mrb[0].mxu0
        %v649 = vpop.f32.mrb[0].mxu0
        %v650 = vadd.f32 0.0, %v649
        %v651 = vpop.f32.mrb[0].mxu0
        %652 = vdwg.mxu0
        %v653 = vld [vmem:[%s430] sm:$0xff]
        %v654 = vld [vmem:[%s430 + $0x8] sm:$0xff]
        %656 = vset.pattern.permute.xlu0 0
        %657 = vperm.xlu0 %656, %v653
        %v658 = vpop.permute.xlu0 %657
        %661 = vset.pattern.permute.xlu0 0
        %662 = vperm.xlu0 %661, %v654
        %v663 = vpop.permute.xlu0 %662
        %v665 = vmul.f32 %v574, %v658
        %v666 = vmul.f32 %v577, %v663
        %v667 = vpack.c.bf16 %v666, %v665
        %v669 = vunpack.c.l.b16 %v667
        %v670 = vunpack.c.h.b16 %v667
        %v671 = vpack.c.b16 %v669, %v669
        %v672 = vpack.c.b16 %v670, %v670
        %vm675 = vcmask 257024
        %676 = vst.msk [vmem:[%s444] sm:$0xf] %vm675, %v671
        %677 = vst.msk [vmem:[%s444 + $0x4] sm:$0xf] %vm675, %v672
        %v678 = vld [vmem:[%s435] sm:$0xff]
        %v679 = vld [vmem:[%s435 + $0x8] sm:$0xff]
        %681 = vset.pattern.permute.xlu0 0
        %682 = vperm.xlu0 %681, %v678
        %v683 = vpop.permute.xlu0 %682
        %686 = vset.pattern.permute.xlu0 0
        %687 = vperm.xlu0 %686, %v679
        %v688 = vpop.permute.xlu0 %687
        %v690 = vmul.f32 %v647, %v683
        %v691 = vmul.f32 %v650, %v688
        %v692 = vpack.c.bf16 %v691, %v690
        %v694 = vunpack.c.l.b16 %v692
        %v695 = vunpack.c.h.b16 %v692
        %v696 = vpack.c.b16 %v694, %v694
        %v697 = vpack.c.b16 %v695, %v695
        %700 = vst.msk [vmem:[%s453] sm:$0xf] %vm675, %v696
        %701 = vst.msk [vmem:[%s453 + $0x4] sm:$0xf] %vm675, %v697
        %p702 = scmp.lt.s32.totalorder %s28, 1
        %s703 = scalar_select %p702, %s28, 1
        %p704 = scmp.lt.s32.totalorder %s29, 7
        %s705 = scalar_select %p704, %s29, 7
        %s706 = smul.addr %s705, 2
        %s707 = smul.addr %s703, 16
        %s708 = sadd.s32 %s706, %s707
        %s709 = smul.addr %s708, 4
        %s710 = scalar_lea.vmem %s7, %s709
        %p711 = scmp.lt.s32.totalorder %s28, 1
        %s712 = scalar_select %p711, %s28, 1
        %p713 = scmp.lt.s32.totalorder %s29, 7
        %s714 = scalar_select %p713, %s29, 7
        %s715 = smul.addr %s714, 2
        %s716 = smul.addr %s712, 16
        %s717 = sadd.s32 %s715, %s716
        %s718 = smul.addr %s717, 4
        %s719 = scalar_lea.vmem %s8, %s718
        // Predicated region
        $region61: #{outer_product_mean.3} parent=47 // pred_check
          %p720 = pneg %p222
        $region62: #{outer_product_mean.3} parent=47 // pred_check_branch
          %722 = sbr.rel (%p720) target = $region64
        $region63: #{outer_product_mean.3} parent=47 // pred_region
          _
        $region64: #{outer_product_mean.3} parent=47 // pred_fallthru
          _
        // Predicated region
        $region65: #{outer_product_mean.3} parent=47 // pred_check
          %p723 = pneg %p250
        $region66: #{outer_product_mean.3} parent=47 // pred_check_branch
          %725 = sbr.rel (%p723) target = $region68
        $region67: #{outer_product_mean.3} parent=47 // pred_region
          _
        $region68: #{outer_product_mean.3} parent=47 // pred_fallthru
          _
      $region48: #{outer_product_mean.3} parent=5 // pred_fallthru
        _
      %p726 = scmp.le.s32.totalorder 2, %s19
      // Predicated region
      $region69: #{outer_product_mean.3} parent=5 // pred_check
        %p727 = pneg %p726
      $region70: #{outer_product_mean.3} parent=5 // pred_check_branch
        %729 = sbr.rel (%p727) target = $region72
      $region71: #{outer_product_mean.3} parent=5 // pred_region
        %s730 = ssub.s32 %s19, 2
        // Predicated region
        $region73: #{outer_product_mean.3} parent=71 // pred_check
          %p731 = pneg %p228
        $region74: #{outer_product_mean.3} parent=71 // pred_check_branch
          %733 = sbr.rel (%p731) target = $region76
        $region75: #{outer_product_mean.3} parent=71 // pred_region
          %p734 = scmp.lt.s32.totalorder %s30, 1
          %s735 = scalar_select %p734, %s30, 1
          %p736 = scmp.lt.s32.totalorder %s31, 7
          %s737 = scalar_select %p736, %s31, 7
          %s738 = smul.addr %s737, 2
          %s739 = smul.addr %s735, 16
          %s740 = sadd.s32 %s738, %s739
          %s741 = smul.addr %s740, 4
          %s742 = scalar_lea.vmem %s7, %s741
        $region76: #{outer_product_mean.3} parent=71 // pred_fallthru
          _
        // Predicated region
        $region77: #{outer_product_mean.3} parent=71 // pred_check
          %p743 = pneg %p256
        $region78: #{outer_product_mean.3} parent=71 // pred_check_branch
          %745 = sbr.rel (%p743) target = $region80
        $region79: #{outer_product_mean.3} parent=71 // pred_region
          %p746 = scmp.lt.s32.totalorder %s30, 1
          %s747 = scalar_select %p746, %s30, 1
          %p748 = scmp.lt.s32.totalorder %s31, 7
          %s749 = scalar_select %p748, %s31, 7
          %s750 = smul.addr %s749, 2
          %s751 = smul.addr %s747, 16
          %s752 = sadd.s32 %s750, %s751
          %s753 = smul.addr %s752, 4
          %s754 = scalar_lea.vmem %s8, %s753
        $region80: #{outer_product_mean.3} parent=71 // pred_fallthru
          _
      $region72: #{outer_product_mean.3} parent=5 // pred_fallthru
        _
    $region6: #{outer_product_mean.3} parent=1 // loop_footer
      %s23 = sadd.s32 1, %s19
    $region7: #{outer_product_mean.3} parent=1 // loop_footer_branch
      %18 = sbr.rel target = $region3
    $region8: #{outer_product_mean.3} parent=1 // loop_exit
      _
    %755 = vsyncpa [#allocation3], 1
    %s756 = scalar_lea.sflag [#allocation3], 1
    %757 = vsyncpa %s756, 1
    %758 = vsyncpa [#allocation5], 1

// kernel: outer_product_mean.4
$region0: #{outer_product_mean.4}
  #allocation0 [shape = 'u32[]', space=smem, size = 0x4, offset = 0x4, fixed_abs, tag = 'smem constant byte address 0x4 - core index']
  #allocation1 [shape = 'u32[144,128]{1,0:T(1,128)}', space=vmem, size = 0x12000, scoped, tag = 'internal scratch']
  %s0 = inlined_call_operand.vmem [shape: bf16[2,512,8], index: 0, kind: input, shape index: {}]
  %s1 = inlined_call_operand.vmem [shape: bf16[2,8,512], index: 1, kind: input, shape index: {}]
  %s2 = inlined_call_operand.vmem [shape: bf16[2,512,512], index: 2, kind: output, shape index: {}]
  %s3 = sld [smem:[#allocation0]]
  $region75: #{outer_product_mean.4} parent=0
    _
  %s5 = ssub.s32 1, %s3
  %s6 = scalar_select 0, %s5, %s3
  $region1: #{outer_product_mean.4} parent=0
    #allocation2 [shape = 'u8[262144]{0}', space=vmem, size = 0x40000, scoped, tag = 'output window, operand 0']
    loop: start=0, step=1, limit=10
    $region2: #{outer_product_mean.4} parent=1 // loop_pre_header
      _
    $region3: #{outer_product_mean.4} parent=1 // loop_header
      %s8 = sphi 0, %s12
      %p9 = scmp.ge.s32.totalorder %s8, 10
      %s15 = sphi 0, %s34
      %s16 = sphi 0, %s30
      %s17 = sphi 0, %s26
      %s18 = sphi 0, %s15
      %s19 = sphi 0, %s16
      %s20 = sphi 0, %s17
      %s21 = sphi 0, %s18
      %s22 = sphi 0, %s19
      %s23 = sphi 0, %s20
      %s39 = sphi 0, %s41
      %s42 = sphi 0, %s39
      %s43 = sphi 0, %s42
      %s59 = sphi 0, %s43
      %s67 = sphi 0, %s69
      %s70 = sphi 0, %s67
      %s71 = sphi 0, %s70
      %s87 = sphi 0, %s71
      %s97 = sphi 0, %s99
      %s100 = sphi 0, %s97
      %s101 = sphi 0, %s100
      %s117 = sphi 0, %s101
    $region4: #{outer_product_mean.4} parent=1 // loop_header_branch
      %11 = sbr.rel (%p9) target = $region8
    $region5: #{outer_product_mean.4} parent=1 // loop_body
      %s13 = ssub.s32 %s8, 1
      %s14 = ssub.s32 %s8, 2
      %s24 = sadd.s32 1, %s17
      %p25 = scmp.ge.s32.totalorder %s24, 2
      %s26 = scalar_select %p25, 0, %s24
      %s27 = sadd.s32 1, %s16
      %s28 = scalar_select %p25, %s27, %s16
      %p29 = scmp.ge.s32.totalorder %s28, 2
      %s30 = scalar_select %p29, 0, %s28
      %s31 = sadd.s32 1, %s15
      %s32 = scalar_select %p29, %s31, %s15
      %p33 = scmp.ge.s32.totalorder %s32, 2
      %s34 = scalar_select %p33, 0, %s32
      %s35 = ssub.s32 %s15, %s34
      %s36 = ssub.s32 %s16, %s30
      %s37 = sor.u32 %s35, %s36
      %p38 = scmp.eq.s32.totalorder %s37, 0
      %s40 = sadd.s32 %s39, 1
      %s41 = scalar_select %p38, %s39, %s40
      %p44 = pneg %p38
      %p45 = scmp.eq.s32.totalorder %s8, 7
      %p46 = por %p44, %p45
      %p47 = scmp.ne.s32.totalorder %s39, %s42
      %p48 = scmp.eq.s32.totalorder %s8, 0
      %p49 = por %p47, %p48
      %p50 = scmp.ne.s32.totalorder %s39, %s42
      %p51 = scmp.eq.s32.totalorder %s13, 7
      %p52 = por %p50, %p51
      %p53 = scmp.ne.s32.totalorder %s42, %s43
      %p54 = scmp.eq.s32.totalorder %s13, 0
      %p55 = por %p53, %p54
      %p56 = scmp.ne.s32.totalorder %s42, %s43
      %p57 = scmp.eq.s32.totalorder %s14, 7
      %p58 = por %p56, %p57
      %p60 = scmp.ne.s32.totalorder %s43, %s59
      %p61 = scmp.eq.s32.totalorder %s14, 0
      %p62 = por %p60, %p61
      %s63 = ssub.s32 %s15, %s34
      %s64 = ssub.s32 %s17, %s26
      %s65 = sor.u32 %s63, %s64
      %p66 = scmp.eq.s32.totalorder %s65, 0
      %s68 = sadd.s32 %s67, 1
      %s69 = scalar_select %p66, %s67, %s68
      %p72 = pneg %p66
      %p73 = scmp.eq.s32.totalorder %s8, 7
      %p74 = por %p72, %p73
      %p75 = scmp.ne.s32.totalorder %s67, %s70
      %p76 = scmp.eq.s32.totalorder %s8, 0
      %p77 = por %p75, %p76
      %p78 = scmp.ne.s32.totalorder %s67, %s70
      %p79 = scmp.eq.s32.totalorder %s13, 7
      %p80 = por %p78, %p79
      %p81 = scmp.ne.s32.totalorder %s70, %s71
      %p82 = scmp.eq.s32.totalorder %s13, 0
      %p83 = por %p81, %p82
      %p84 = scmp.ne.s32.totalorder %s70, %s71
      %p85 = scmp.eq.s32.totalorder %s14, 7
      %p86 = por %p84, %p85
      %p88 = scmp.ne.s32.totalorder %s71, %s87
      %p89 = scmp.eq.s32.totalorder %s14, 0
      %p90 = por %p88, %p89
      %s91 = ssub.s32 %s15, %s34
      %s92 = ssub.s32 %s16, %s30
      %s93 = sor.u32 %s91, %s92
      %s94 = ssub.s32 %s17, %s26
      %s95 = sor.u32 %s93, %s94
      %p96 = scmp.eq.s32.totalorder %s95, 0
      %s98 = sadd.s32 %s97, 1
      %s99 = scalar_select %p96, %s97, %s98
      %p102 = pneg %p96
      %p103 = scmp.eq.s32.totalorder %s8, 7
      %p104 = por %p102, %p103
      %p105 = scmp.ne.s32.totalorder %s97, %s100
      %p106 = scmp.eq.s32.totalorder %s8, 0
      %p107 = por %p105, %p106
      %p108 = scmp.ne.s32.totalorder %s97, %s100
      %p109 = scmp.eq.s32.totalorder %s13, 7
      %p110 = por %p108, %p109
      %p111 = scmp.ne.s32.totalorder %s100, %s101
      %p112 = scmp.eq.s32.totalorder %s13, 0
      %p113 = por %p111, %p112
      %p114 = scmp.ne.s32.totalorder %s100, %s101
      %p115 = scmp.eq.s32.totalorder %s14, 7
      %p116 = por %p114, %p115
      %p118 = scmp.ne.s32.totalorder %s101, %s117
      %p119 = scmp.eq.s32.totalorder %s14, 0
      %p120 = por %p118, %p119
      %p121 = scmp.le.s32.totalorder 1, %s8
      %p122 = scmp.lt.s32.totalorder %s8, 9
      %p123 = pnand %p121, %p122
      %p124 = pneg %p123
      // Predicated region
      $region9: #{outer_product_mean.4} parent=5 // pred_check
        _
      $region10: #{outer_product_mean.4} parent=5 // pred_check_branch
        %126 = sbr.rel (%p123) target = $region12
      $region11: #{outer_product_mean.4} parent=5 // pred_region
        %s127 = ssub.s32 %s8, 1
      $region12: #{outer_product_mean.4} parent=5 // pred_fallthru
        _
      %p128 = scmp.lt.s32.totalorder %s8, 8
      // Predicated region
      $region13: #{outer_product_mean.4} parent=5 // pred_check
        %p129 = pneg %p128
      $region14: #{outer_product_mean.4} parent=5 // pred_check_branch
        %131 = sbr.rel (%p129) target = $region16
      $region15: #{outer_product_mean.4} parent=5 // pred_region
        // Predicated region
        $region17: #{outer_product_mean.4} parent=15 // pred_check
          %p132 = pneg %p49
        $region18: #{outer_product_mean.4} parent=15 // pred_check_branch
          %134 = sbr.rel (%p132) target = $region20
        $region19: #{outer_product_mean.4} parent=15 // pred_region
          %s135 = smul.u32 32, %s16
          %p136 = scmp.lt.s32.totalorder %s15, 1
          %s137 = scalar_select %p136, %s15, 1
          %p138 = scmp.lt.s32.totalorder %s135, 63
          %s139 = scalar_select %p138, %s135, 63
          %s140 = smul.addr %s137, 64
          %s141 = sadd.s32 %s139, %s140
          %s142 = smul.addr %s141, 4
          %s143 = scalar_lea.vmem %s0, %s142
          %s144 = smul.u32 32, %s16
        $region20: #{outer_product_mean.4} parent=15 // pred_fallthru
          _
        // Predicated region
        $region21: #{outer_product_mean.4} parent=15 // pred_check
          %p145 = pneg %p77
        $region22: #{outer_product_mean.4} parent=15 // pred_check_branch
          %147 = sbr.rel (%p145) target = $region24
        $region23: #{outer_product_mean.4} parent=15 // pred_region
          %s148 = smul.u32 2, %s17
          %p149 = scmp.lt.s32.totalorder %s15, 1
          %s150 = scalar_select %p149, %s15, 1
          %p151 = scmp.lt.s32.totalorder %s148, 3
          %s152 = scalar_select %p151, %s148, 3
          %s153 = smul.addr %s150, 4
          %s154 = sadd.s32 %s152, %s153
          %s155 = smul.addr %s154, 4
          %s156 = scalar_lea.vmem %s1, %s155
          %s157 = smul.u32 2, %s17
        $region24: #{outer_product_mean.4} parent=15 // pred_fallthru
          _
      $region16: #{outer_product_mean.4} parent=5 // pred_fallthru
        _
      %p158 = scmp.le.s32.totalorder 1, %s8
      %p159 = scmp.lt.s32.totalorder %s8, 9
      %p160 = pnand %p158, %p159
      %p161 = pneg %p160
      // Predicated region
      $region25: #{outer_product_mean.4} parent=5 // pred_check
        _
      $region26: #{outer_product_mean.4} parent=5 // pred_check_branch
        %163 = sbr.rel (%p160) target = $region28
      $region27: #{outer_product_mean.4} parent=5 // pred_region
        %s164 = ssub.s32 %s8, 1
        %s165 = smul.u32 32, %s19
        %p166 = scmp.lt.s32.totalorder %s18, 1
        %s167 = scalar_select %p166, %s18, 1
        %p168 = scmp.lt.s32.totalorder %s165, 63
        %s169 = scalar_select %p168, %s165, 63
        %s170 = smul.addr %s167, 64
        %s171 = sadd.s32 %s169, %s170
        %s172 = smul.addr %s171, 4
        %s173 = scalar_lea.vmem %s0, %s172
        %p174 = pneg %p55
        %p175 = pneg %p52
        %s176 = smul.u32 2, %s20
        %p177 = scmp.lt.s32.totalorder %s18, 1
        %s178 = scalar_select %p177, %s18, 1
        %p179 = scmp.lt.s32.totalorder %s176, 3
        %s180 = scalar_select %p179, %s176, 3
        %s181 = smul.addr %s178, 4
        %s182 = sadd.s32 %s180, %s181
        %s183 = smul.addr %s182, 4
        %s184 = scalar_lea.vmem %s1, %s183
        %p185 = pneg %p83
        %p186 = pneg %p80
        %p187 = pneg %p113
        %p188 = pneg %p110
        %s189 = sand.u32 %s100, 1
        %s190 = sand.u32 %s100, 1
        %s191 = smul.addr %s190, 256
        %s192 = scalar_lea.vmem [#allocation2], %s191
        %s193 = smul.u32 32, %s19
        %p194 = scmp.lt.s32.totalorder %s18, 1
        %s195 = scalar_select %p194, %s18, 1
        %p196 = scmp.lt.s32.totalorder %s193, 63
        %s197 = scalar_select %p196, %s193, 63
        %s198 = smul.addr %s195, 64
        %s199 = sadd.s32 %s197, %s198
        %s200 = smul.addr %s199, 4
        %s201 = scalar_lea.vmem %s0, %s200
        %s202 = smul.u32 32, %s19
        %s203 = smul.u32 2, %s20
        %p204 = scmp.lt.s32.totalorder %s18, 1
        %s205 = scalar_select %p204, %s18, 1
        %p206 = scmp.lt.s32.totalorder %s203, 3
        %s207 = scalar_select %p206, %s203, 3
        %s208 = smul.addr %s205, 4
        %s209 = sadd.s32 %s207, %s208
        %s210 = smul.addr %s209, 4
        %s211 = scalar_lea.vmem %s1, %s210
        %s212 = smul.u32 2, %s20
        %s213 = smul.u32 32, %s19
        %s214 = smul.u32 2, %s20
        %v216 = vld [vmem:[%s201] sm:$0xf]
        %v217 = vld [vmem:[%s201 + $0x4] sm:$0xf]
        %v218 = vld [vmem:[%s201 + $0x8] sm:$0xf]
        %v219 = vld [vmem:[%s201 + $0xc] sm:$0xf]
        %v220 = vld [vmem:[%s201 + $0x10] sm:$0xf]
        %v221 = vld [vmem:[%s201 + $0x14] sm:$0xf]
        %v222 = vld [vmem:[%s201 + $0x18] sm:$0xf]
        %v223 = vld [vmem:[%s201 + $0x1c] sm:$0xf]
        %v224 = vld [vmem:[%s201 + $0x20] sm:$0xf]
        %v225 = vld [vmem:[%s201 + $0x24] sm:$0xf]
        %v226 = vld [vmem:[%s201 + $0x28] sm:$0xf]
        %v227 = vld [vmem:[%s201 + $0x2c] sm:$0xf]
        %v228 = vld [vmem:[%s201 + $0x30] sm:$0xf]
        %v229 = vld [vmem:[%s201 + $0x34] sm:$0xf]
        %v230 = vld [vmem:[%s201 + $0x38] sm:$0xf]
        %v231 = vld [vmem:[%s201 + $0x3c] sm:$0xf]
        %v232 = vld [vmem:[%s201 + $0x40] sm:$0xf]
        %v233 = vld [vmem:[%s201 + $0x44] sm:$0xf]
        %v234 = vld [vmem:[%s201 + $0x48] sm:$0xf]
        %v235 = vld [vmem:[%s201 + $0x4c] sm:$0xf]
        %v236 = vld [vmem:[%s201 + $0x50] sm:$0xf]
        %v237 = vld [vmem:[%s201 + $0x54] sm:$0xf]
        %v238 = vld [vmem:[%s201 + $0x58] sm:$0xf]
        %v239 = vld [vmem:[%s201 + $0x5c] sm:$0xf]
        %v240 = vld [vmem:[%s201 + $0x60] sm:$0xf]
        %v241 = vld [vmem:[%s201 + $0x64] sm:$0xf]
        %v242 = vld [vmem:[%s201 + $0x68] sm:$0xf]
        %v243 = vld [vmem:[%s201 + $0x6c] sm:$0xf]
        %v244 = vld [vmem:[%s201 + $0x70] sm:$0xf]
        %v245 = vld [vmem:[%s201 + $0x74] sm:$0xf]
        %v246 = vld [vmem:[%s201 + $0x78] sm:$0xf]
        %v247 = vld [vmem:[%s201 + $0x7c] sm:$0xf]
        %v248 = vld [vmem:[%s211] sm:$0xff]
        %v281 = vunpack.c.l.b16 %v216
        %v282 = vunpack.c.l.b16 %v217
        %v283 = vunpack.c.l.b16 %v218
        %v284 = vunpack.c.l.b16 %v219
        %v285 = vunpack.c.l.b16 %v220
        %v286 = vunpack.c.l.b16 %v221
        %v287 = vunpack.c.l.b16 %v222
        %v288 = vunpack.c.l.b16 %v223
        %v289 = vunpack.c.l.b16 %v224
        %v290 = vunpack.c.l.b16 %v225
        %v291 = vunpack.c.l.b16 %v226
        %v292 = vunpack.c.l.b16 %v227
        %v293 = vunpack.c.l.b16 %v228
        %v294 = vunpack.c.l.b16 %v229
        %v295 = vunpack.c.l.b16 %v230
        %v296 = vunpack.c.l.b16 %v231
        %v297 = vunpack.c.l.b16 %v232
        %v298 = vunpack.c.l.b16 %v233
        %v299 = vunpack.c.l.b16 %v234
        %v300 = vunpack.c.l.b16 %v235
        %v301 = vunpack.c.l.b16 %v236
        %v302 = vunpack.c.l.b16 %v237
        %v303 = vunpack.c.l.b16 %v238
        %v304 = vunpack.c.l.b16 %v239
        %v305 = vunpack.c.l.b16 %v240
        %v306 = vunpack.c.l.b16 %v241
        %v307 = vunpack.c.l.b16 %v242
        %v308 = vunpack.c.l.b16 %v243
        %v309 = vunpack.c.l.b16 %v244
        %v310 = vunpack.c.l.b16 %v245
        %v311 = vunpack.c.l.b16 %v246
        %v312 = vunpack.c.l.b16 %v247
        %v313 = vpack.c.b16 %v282, %v281
        %v314 = vpack.c.b16 %v284, %v283
        %v315 = vpack.c.b16 %v286, %v285
        %v316 = vpack.c.b16 %v288, %v287
        %v317 = vpack.c.b16 %v290, %v289
        %v318 = vpack.c.b16 %v292, %v291
        %v319 = vpack.c.b16 %v294, %v293
        %v320 = vpack.c.b16 %v296, %v295
        %v321 = vpack.c.b16 %v298, %v297
        %v322 = vpack.c.b16 %v300, %v299
        %v323 = vpack.c.b16 %v302, %v301
        %v324 = vpack.c.b16 %v304, %v303
        %v325 = vpack.c.b16 %v306, %v305
        %v326 = vpack.c.b16 %v308, %v307
        %v327 = vpack.c.b16 %v310, %v309
        %v328 = vpack.c.b16 %v312, %v311
        %v330 = vunpack.c.l.b16 %v248
        %v331 = vunpack.c.h.b16 %v248
        %v332 = vpack.c.b16 %v330, %v330
        %v333 = vpack.c.b16 %v331, %v331
        %vm334 = vcmask 64512
        %v336 = vsel %vm334, %v313, 0
        %v339 = vsel %vm334, %v314, 0
        %v342 = vsel %vm334, %v315, 0
        %v345 = vsel %vm334, %v316, 0
        %v348 = vsel %vm334, %v317, 0
        %v351 = vsel %vm334, %v318, 0
        %v354 = vsel %vm334, %v319, 0
        %v357 = vsel %vm334, %v320, 0
        %v360 = vsel %vm334, %v321, 0
        %v363 = vsel %vm334, %v322, 0
        %v366 = vsel %vm334, %v323, 0
        %v369 = vsel %vm334, %v324, 0
        %v372 = vsel %vm334, %v325, 0
        %v375 = vsel %vm334, %v326, 0
        %v378 = vsel %vm334, %v327, 0
        %v381 = vsel %vm334, %v328, 0
        %vm383 = vcmask 1043456
        %v385 = vsel %vm383, %v332, 0
        %v388 = vsel %vm383, %v333, 0
        %390 = vmatprep.subr.bf16.mxu0 %v388
        %391 = vmatpush1.bf16.msra.mxu0 %v385
        %392 = vmatprep.subr.bf16.mxu0 0
        %393 = vmatpush1.bf16.msra.mxu0 0
        %394 = vmatprep.subr.bf16.mxu0 0
        %395 = vmatpush1.bf16.msra.mxu0 0
        %396 = vmatprep.subr.bf16.mxu0 0
        %397 = vmatpush1.bf16.msra.mxu0 0
        %398 = vmatprep.subr.bf16.mxu0 0
        %399 = vmatpush1.bf16.msra.mxu0 0
        %400 = vmatprep.subr.bf16.mxu0 0
        %401 = vmatpush1.bf16.msra.mxu0 0
        %402 = vmatprep.subr.bf16.mxu0 0
        %403 = vmatpush1.bf16.msra.mxu0 0
        %404 = vmatprep.subr.bf16.mxu0 0
        %405 = vmatpush1.bf16.msra.mxu0 0
        %406 = vmatprep.subr.bf16.mxu0 0
        %407 = vmatpush1.bf16.msra.mxu0 0
        %408 = vmatprep.subr.bf16.mxu0 0
        %409 = vmatpush1.bf16.msra.mxu0 0
        %410 = vmatprep.subr.bf16.mxu0 0
        %411 = vmatpush1.bf16.msra.mxu0 0
        %412 = vmatprep.subr.bf16.mxu0 0
        %413 = vmatpush1.bf16.msra.mxu0 0
        %414 = vmatprep.subr.bf16.mxu0 0
        %415 = vmatpush1.bf16.msra.mxu0 0
        %416 = vmatprep.subr.bf16.mxu0 0
        %417 = vmatpush1.bf16.msra.mxu0 0
        %418 = vmatprep.subr.bf16.mxu0 0
        %419 = vmatpush1.bf16.msra.mxu0 0
        %420 = vmatprep.subr.bf16.mxu0 0
        %421 = vmatpush1.bf16.msra.mxu0 0
        %422 = vmatprep.mubr.bf16.mxu0 0
        %423 = vmatmul.mubr.bf16.gmra.mrb[0].mxu0 %v336
        %v424 = vpop.f32.mrb[0].mxu0
        %v425 = vadd.f32 0.0, %v424
        %v426 = vpop.f32.mrb[0].mxu0
        %v427 = vadd.f32 0.0, %v426
        %v428 = vpop.f32.mrb[0].mxu0
        %v429 = vadd.f32 0.0, %v428
        %v430 = vpop.f32.mrb[0].mxu0
        %v431 = vadd.f32 0.0, %v430
        %432 = vmatprep.mubr.bf16.mxu0 0
        %433 = vmatmul.mubr.bf16.gmra.mrb[0].mxu0 %v339
        %v434 = vpop.f32.mrb[0].mxu0
        %v435 = vadd.f32 0.0, %v434
        %v436 = vpop.f32.mrb[0].mxu0
        %v437 = vadd.f32 0.0, %v436
        %v438 = vpop.f32.mrb[0].mxu0
        %v439 = vadd.f32 0.0, %v438
        %v440 = vpop.f32.mrb[0].mxu0
        %v441 = vadd.f32 0.0, %v440
        %442 = vmatprep.mubr.bf16.mxu0 0
        %443 = vmatmul.mubr.bf16.gmra.mrb[0].mxu0 %v342
        %v444 = vpop.f32.mrb[0].mxu0
        %v445 = vadd.f32 0.0, %v444
        %v446 = vpop.f32.mrb[0].mxu0
        %v447 = vadd.f32 0.0, %v446
        %v448 = vpop.f32.mrb[0].mxu0
        %v449 = vadd.f32 0.0, %v448
        %v450 = vpop.f32.mrb[0].mxu0
        %v451 = vadd.f32 0.0, %v450
        %452 = vmatprep.mubr.bf16.mxu0 0
        %453 = vmatmul.mubr.bf16.gmra.mrb[0].mxu0 %v345
        %v454 = vpop.f32.mrb[0].mxu0
        %v455 = vadd.f32 0.0, %v454
        %v456 = vpop.f32.mrb[0].mxu0
        %v457 = vadd.f32 0.0, %v456
        %v458 = vpop.f32.mrb[0].mxu0
        %v459 = vadd.f32 0.0, %v458
        %v460 = vpop.f32.mrb[0].mxu0
        %v461 = vadd.f32 0.0, %v460
        %462 = vmatprep.mubr.bf16.mxu0 0
        %463 = vmatmul.mubr.bf16.gmra.mrb[0].mxu0 %v348
        %v464 = vpop.f32.mrb[0].mxu0
        %v465 = vadd.f32 0.0, %v464
        %v466 = vpop.f32.mrb[0].mxu0
        %v467 = vadd.f32 0.0, %v466
        %v468 = vpop.f32.mrb[0].mxu0
        %v469 = vadd.f32 0.0, %v468
        %v470 = vpop.f32.mrb[0].mxu0
        %v471 = vadd.f32 0.0, %v470
        %472 = vmatprep.mubr.bf16.mxu0 0
        %473 = vmatmul.mubr.bf16.gmra.mrb[0].mxu0 %v351
        %v474 = vpop.f32.mrb[0].mxu0
        %v475 = vadd.f32 0.0, %v474
        %v476 = vpop.f32.mrb[0].mxu0
        %v477 = vadd.f32 0.0, %v476
        %v478 = vpop.f32.mrb[0].mxu0
        %v479 = vadd.f32 0.0, %v478
        %v480 = vpop.f32.mrb[0].mxu0
        %v481 = vadd.f32 0.0, %v480
        %482 = vmatprep.mubr.bf16.mxu0 0
        %483 = vmatmul.mubr.bf16.gmra.mrb[0].mxu0 %v354
        %v484 = vpop.f32.mrb[0].mxu0
        %v485 = vadd.f32 0.0, %v484
        %v486 = vpop.f32.mrb[0].mxu0
        %v487 = vadd.f32 0.0, %v486
        %v488 = vpop.f32.mrb[0].mxu0
        %v489 = vadd.f32 0.0, %v488
        %v490 = vpop.f32.mrb[0].mxu0
        %v491 = vadd.f32 0.0, %v490
        %492 = vmatprep.mubr.bf16.mxu0 0
        %493 = vmatmul.mubr.bf16.gmra.mrb[0].mxu0 %v357
        %v494 = vpop.f32.mrb[0].mxu0
        %v495 = vadd.f32 0.0, %v494
        %v496 = vpop.f32.mrb[0].mxu0
        %v497 = vadd.f32 0.0, %v496
        %v498 = vpop.f32.mrb[0].mxu0
        %v499 = vadd.f32 0.0, %v498
        %v500 = vpop.f32.mrb[0].mxu0
        %v501 = vadd.f32 0.0, %v500
        %502 = vmatprep.mubr.bf16.mxu0 0
        %503 = vmatmul.mubr.bf16.gmra.mrb[0].mxu0 %v360
        %v504 = vpop.f32.mrb[0].mxu0
        %v505 = vadd.f32 0.0, %v504
        %v506 = vpop.f32.mrb[0].mxu0
        %v507 = vadd.f32 0.0, %v506
        %v508 = vpop.f32.mrb[0].mxu0
        %v509 = vadd.f32 0.0, %v508
        %v510 = vpop.f32.mrb[0].mxu0
        %v511 = vadd.f32 0.0, %v510
        %512 = vmatprep.mubr.bf16.mxu0 0
        %513 = vmatmul.mubr.bf16.gmra.mrb[0].mxu0 %v363
        %v514 = vpop.f32.mrb[0].mxu0
        %v515 = vadd.f32 0.0, %v514
        %v516 = vpop.f32.mrb[0].mxu0
        %v517 = vadd.f32 0.0, %v516
        %v518 = vpop.f32.mrb[0].mxu0
        %v519 = vadd.f32 0.0, %v518
        %v520 = vpop.f32.mrb[0].mxu0
        %v521 = vadd.f32 0.0, %v520
        %522 = vmatprep.mubr.bf16.mxu0 0
        %523 = vmatmul.mubr.bf16.gmra.mrb[0].mxu0 %v366
        %v524 = vpop.f32.mrb[0].mxu0
        %v525 = vadd.f32 0.0, %v524
        %v526 = vpop.f32.mrb[0].mxu0
        %v527 = vadd.f32 0.0, %v526
        %v528 = vpop.f32.mrb[0].mxu0
        %v529 = vadd.f32 0.0, %v528
        %v530 = vpop.f32.mrb[0].mxu0
        %v531 = vadd.f32 0.0, %v530
        %532 = vmatprep.mubr.bf16.mxu0 0
        %533 = vmatmul.mubr.bf16.gmra.mrb[0].mxu0 %v369
        %v534 = vpop.f32.mrb[0].mxu0
        %v535 = vadd.f32 0.0, %v534
        %v536 = vpop.f32.mrb[0].mxu0
        %v537 = vadd.f32 0.0, %v536
        %v538 = vpop.f32.mrb[0].mxu0
        %v539 = vadd.f32 0.0, %v538
        %v540 = vpop.f32.mrb[0].mxu0
        %v541 = vadd.f32 0.0, %v540
        %542 = vmatprep.mubr.bf16.mxu0 0
        %543 = vmatmul.mubr.bf16.gmra.mrb[0].mxu0 %v372
        %v544 = vpop.f32.mrb[0].mxu0
        %v545 = vadd.f32 0.0, %v544
        %v546 = vpop.f32.mrb[0].mxu0
        %v547 = vadd.f32 0.0, %v546
        %v548 = vpop.f32.mrb[0].mxu0
        %v549 = vadd.f32 0.0, %v548
        %v550 = vpop.f32.mrb[0].mxu0
        %v551 = vadd.f32 0.0, %v550
        %552 = vmatprep.mubr.bf16.mxu0 0
        %553 = vmatmul.mubr.bf16.gmra.mrb[0].mxu0 %v375
        %v554 = vpop.f32.mrb[0].mxu0
        %v555 = vadd.f32 0.0, %v554
        %v556 = vpop.f32.mrb[0].mxu0
        %v557 = vadd.f32 0.0, %v556
        %v558 = vpop.f32.mrb[0].mxu0
        %v559 = vadd.f32 0.0, %v558
        %v560 = vpop.f32.mrb[0].mxu0
        %v561 = vadd.f32 0.0, %v560
        %562 = vmatprep.mubr.bf16.mxu0 0
        %563 = vmatmul.mubr.bf16.gmra.mrb[0].mxu0 %v378
        %v564 = vpop.f32.mrb[0].mxu0
        %v565 = vadd.f32 0.0, %v564
        %v566 = vpop.f32.mrb[0].mxu0
        %v567 = vadd.f32 0.0, %v566
        %v568 = vpop.f32.mrb[0].mxu0
        %v569 = vadd.f32 0.0, %v568
        %v570 = vpop.f32.mrb[0].mxu0
        %v571 = vadd.f32 0.0, %v570
        %572 = vmatprep.mubr.bf16.mxu0 0
        %573 = vmatmul.mubr.bf16.gmra.mrb[0].mxu0 %v381
        %v574 = vpop.f32.mrb[0].mxu0
        %v575 = vadd.f32 0.0, %v574
        %v576 = vpop.f32.mrb[0].mxu0
        %v577 = vadd.f32 0.0, %v576
        %v578 = vpop.f32.mrb[0].mxu0
        %v579 = vadd.f32 0.0, %v578
        %v580 = vpop.f32.mrb[0].mxu0
        %v581 = vadd.f32 0.0, %v580
        %582 = vdwg.mxu0
        %v583 = vpack.c.bf16 %v429, %v425
        %v584 = vpack.c.bf16 %v431, %v427
        %v585 = vpack.c.bf16 %v439, %v435
        %v586 = vpack.c.bf16 %v441, %v437
        %v587 = vpack.c.bf16 %v449, %v445
        %v588 = vpack.c.bf16 %v451, %v447
        %v589 = vpack.c.bf16 %v459, %v455
        %v590 = vpack.c.bf16 %v461, %v457
        %v591 = vpack.c.bf16 %v469, %v465
        %v592 = vpack.c.bf16 %v471, %v467
        %v593 = vpack.c.bf16 %v479, %v475
        %v594 = vpack.c.bf16 %v481, %v477
        %v595 = vpack.c.bf16 %v489, %v485
        %v596 = vpack.c.bf16 %v491, %v487
        %v597 = vpack.c.bf16 %v499, %v495
        %v598 = vpack.c.bf16 %v501, %v497
        %v599 = vpack.c.bf16 %v509, %v505
        %v600 = vpack.c.bf16 %v511, %v507
        %v601 = vpack.c.bf16 %v519, %v515
        %v602 = vpack.c.bf16 %v521, %v517
        %v603 = vpack.c.bf16 %v529, %v525
        %v604 = vpack.c.bf16 %v531, %v527
        %v605 = vpack.c.bf16 %v539, %v535
        %v606 = vpack.c.bf16 %v541, %v537
        %v607 = vpack.c.bf16 %v549, %v545
        %v608 = vpack.c.bf16 %v551, %v547
        %v609 = vpack.c.bf16 %v559, %v555
        %v610 = vpack.c.bf16 %v561, %v557
        %v611 = vpack.c.bf16 %v569, %v565
        %v612 = vpack.c.bf16 %v571, %v567
        %v613 = vpack.c.bf16 %v579, %v575
        %v614 = vpack.c.bf16 %v581, %v577
        %v647 = vunpack.c.l.b16 %v583
        %v648 = vunpack.c.l.b16 %v584
        %v649 = vunpack.c.h.b16 %v583
        %v650 = vunpack.c.h.b16 %v584
        %v651 = vunpack.c.l.b16 %v585
        %v652 = vunpack.c.l.b16 %v586
        %v653 = vunpack.c.h.b16 %v585
        %v654 = vunpack.c.h.b16 %v586
        %v655 = vunpack.c.l.b16 %v587
        %v656 = vunpack.c.l.b16 %v588
        %v657 = vunpack.c.h.b16 %v587
        %v658 = vunpack.c.h.b16 %v588
        %v659 = vunpack.c.l.b16 %v589
        %v660 = vunpack.c.l.b16 %v590
        %v661 = vunpack.c.h.b16 %v589
        %v662 = vunpack.c.h.b16 %v590
        %v663 = vunpack.c.l.b16 %v591
        %v664 = vunpack.c.l.b16 %v592
        %v665 = vunpack.c.h.b16 %v591
        %v666 = vunpack.c.h.b16 %v592
        %v667 = vunpack.c.l.b16 %v593
        %v668 = vunpack.c.l.b16 %v594
        %v669 = vunpack.c.h.b16 %v593
        %v670 = vunpack.c.h.b16 %v594
        %v671 = vunpack.c.l.b16 %v595
        %v672 = vunpack.c.l.b16 %v596
        %v673 = vunpack.c.h.b16 %v595
        %v674 = vunpack.c.h.b16 %v596
        %v675 = vunpack.c.l.b16 %v597
        %v676 = vunpack.c.l.b16 %v598
        %v677 = vunpack.c.h.b16 %v597
        %v678 = vunpack.c.h.b16 %v598
        %v679 = vunpack.c.l.b16 %v599
        %v680 = vunpack.c.l.b16 %v600
        %v681 = vunpack.c.h.b16 %v599
        %v682 = vunpack.c.h.b16 %v600
        %v683 = vunpack.c.l.b16 %v601
        %v684 = vunpack.c.l.b16 %v602
        %v685 = vunpack.c.h.b16 %v601
        %v686 = vunpack.c.h.b16 %v602
        %v687 = vunpack.c.l.b16 %v603
        %v688 = vunpack.c.l.b16 %v604
        %v689 = vunpack.c.h.b16 %v603
        %v690 = vunpack.c.h.b16 %v604
        %v691 = vunpack.c.l.b16 %v605
        %v692 = vunpack.c.l.b16 %v606
        %v693 = vunpack.c.h.b16 %v605
        %v694 = vunpack.c.h.b16 %v606
        %v695 = vunpack.c.l.b16 %v607
        %v696 = vunpack.c.l.b16 %v608
        %v697 = vunpack.c.h.b16 %v607
        %v698 = vunpack.c.h.b16 %v608
        %v699 = vunpack.c.l.b16 %v609
        %v700 = vunpack.c.l.b16 %v610
        %v701 = vunpack.c.h.b16 %v609
        %v702 = vunpack.c.h.b16 %v610
        %v703 = vunpack.c.l.b16 %v611
        %v704 = vunpack.c.l.b16 %v612
        %v705 = vunpack.c.h.b16 %v611
        %v706 = vunpack.c.h.b16 %v612
        %v707 = vunpack.c.l.b16 %v613
        %v708 = vunpack.c.l.b16 %v614
        %v709 = vunpack.c.h.b16 %v613
        %v710 = vunpack.c.h.b16 %v614
        %v711 = vpack.c.b16 %v648, %v647
        %v712 = vpack.c.b16 %v650, %v649
        %v713 = vpack.c.b16 %v652, %v651
        %v714 = vpack.c.b16 %v654, %v653
        %v715 = vpack.c.b16 %v656, %v655
        %v716 = vpack.c.b16 %v658, %v657
        %v717 = vpack.c.b16 %v660, %v659
        %v718 = vpack.c.b16 %v662, %v661
        %v719 = vpack.c.b16 %v664, %v663
        %v720 = vpack.c.b16 %v666, %v665
        %v721 = vpack.c.b16 %v668, %v667
        %v722 = vpack.c.b16 %v670, %v669
        %v723 = vpack.c.b16 %v672, %v671
        %v724 = vpack.c.b16 %v674, %v673
        %v725 = vpack.c.b16 %v676, %v675
        %v726 = vpack.c.b16 %v678, %v677
        %v727 = vpack.c.b16 %v680, %v679
        %v728 = vpack.c.b16 %v682, %v681
        %v729 = vpack.c.b16 %v684, %v683
        %v730 = vpack.c.b16 %v686, %v685
        %v731 = vpack.c.b16 %v688, %v687
        %v732 = vpack.c.b16 %v690, %v689
        %v733 = vpack.c.b16 %v692, %v691
        %v734 = vpack.c.b16 %v694, %v693
        %v735 = vpack.c.b16 %v696, %v695
        %v736 = vpack.c.b16 %v698, %v697
        %v737 = vpack.c.b16 %v700, %v699
        %v738 = vpack.c.b16 %v702, %v701
        %v739 = vpack.c.b16 %v704, %v703
        %v740 = vpack.c.b16 %v706, %v705
        %v741 = vpack.c.b16 %v708, %v707
        %v742 = vpack.c.b16 %v710, %v709
        %775 = vst [vmem:[%s192] sm:$0xff] %v711
        %776 = vst [vmem:[%s192 + $0x8] sm:$0xff] %v712
        %777 = vst [vmem:[%s192 + $0x10] sm:$0xff] %v713
        %778 = vst [vmem:[%s192 + $0x18] sm:$0xff] %v714
        %779 = vst [vmem:[%s192 + $0x20] sm:$0xff] %v715
        %780 = vst [vmem:[%s192 + $0x28] sm:$0xff] %v716
        %781 = vst [vmem:[%s192 + $0x30] sm:$0xff] %v717
        %782 = vst [vmem:[%s192 + $0x38] sm:$0xff] %v718
        %783 = vst [vmem:[%s192 + $0x40] sm:$0xff] %v719
        %784 = vst [vmem:[%s192 + $0x48] sm:$0xff] %v720
        %785 = vst [vmem:[%s192 + $0x50] sm:$0xff] %v721
        %786 = vst [vmem:[%s192 + $0x58] sm:$0xff] %v722
        %787 = vst [vmem:[%s192 + $0x60] sm:$0xff] %v723
        %788 = vst [vmem:[%s192 + $0x68] sm:$0xff] %v724
        %789 = vst [vmem:[%s192 + $0x70] sm:$0xff] %v725
        %790 = vst [vmem:[%s192 + $0x78] sm:$0xff] %v726
        %791 = vst [vmem:[%s192 + $0x80] sm:$0xff] %v727
        %792 = vst [vmem:[%s192 + $0x88] sm:$0xff] %v728
        %793 = vst [vmem:[%s192 + $0x90] sm:$0xff] %v729
        %794 = vst [vmem:[%s192 + $0x98] sm:$0xff] %v730
        %795 = vst [vmem:[%s192 + $0xa0] sm:$0xff] %v731
        %796 = vst [vmem:[%s192 + $0xa8] sm:$0xff] %v732
        %797 = vst [vmem:[%s192 + $0xb0] sm:$0xff] %v733
        %798 = vst [vmem:[%s192 + $0xb8] sm:$0xff] %v734
        %799 = vst [vmem:[%s192 + $0xc0] sm:$0xff] %v735
        %800 = vst [vmem:[%s192 + $0xc8] sm:$0xff] %v736
        %801 = vst [vmem:[%s192 + $0xd0] sm:$0xff] %v737
        %802 = vst [vmem:[%s192 + $0xd8] sm:$0xff] %v738
        %803 = vst [vmem:[%s192 + $0xe0] sm:$0xff] %v739
        %804 = vst [vmem:[%s192 + $0xe8] sm:$0xff] %v740
        %805 = vst [vmem:[%s192 + $0xf0] sm:$0xff] %v741
        %806 = vst [vmem:[%s192 + $0xf8] sm:$0xff] %v742
        %s807 = sand.u32 %s100, 1
        %s808 = sand.u32 %s100, 1
        %s809 = smul.addr %s808, 256
        %s810 = scalar_lea.vmem [#allocation2], %s809
        // Predicated region
        $region29: #{outer_product_mean.4} parent=27 // pred_check
          %p811 = pneg %p110
        $region30: #{outer_product_mean.4} parent=27 // pred_check_branch
          %813 = sbr.rel (%p811) target = $region32
        $region31: #{outer_product_mean.4} parent=27 // pred_region
          %s814 = smul.u32 32, %s19
          %s815 = smul.u32 2, %s20
          %s816 = smul.addr %s814, 4
          %s817 = sadd.s32 %s815, %s816
          %s818 = smul.addr %s18, 256
          %s819 = sadd.s32 %s817, %s818
          %s820 = smul.addr %s819, 4
          %s821 = scalar_lea.vmem %s2, %s820
          // Predicated region
          $region33: #{outer_product_mean.4} parent=31 // pred_check
            _
          $region34: #{outer_product_mean.4} parent=31 // pred_check_branch
            %823 = sbr.rel (0) target = $region36
          $region35: #{outer_product_mean.4} parent=31 // pred_region
            // Predicated region
            $region37: #{outer_product_mean.4} parent=35 // pred_check
              _
            $region38: #{outer_product_mean.4} parent=35 // pred_check_branch
              %825 = sbr.rel (0) target = $region40
            $region39: #{outer_product_mean.4} parent=35 // pred_region
              // Predicated region
              $region52: #{outer_product_mean.4} parent=39 // pred_check
                _
              $region53: #{outer_product_mean.4} parent=39 // pred_check_branch
                %902 = sbr.rel (0) target = $region55
              $region54: #{outer_product_mean.4} parent=39 // pred_region
                loop: start=0, step=1, limit=1
                $region56: #{outer_product_mean.4} parent=54 // loop_pre_header
                  _
                $region57: #{outer_product_mean.4} parent=54 // loop_header
                  %s904 = sphi 0, %s908
                  %p905 = scmp.ge.s32.totalorder %s904, 1
                  %s909 = sphi %s810, %s810
                  %s910 = sphi %s821, %s821
                $region58: #{outer_product_mean.4} parent=54 // loop_header_branch
                  %907 = sbr.rel (%p905) target = $region62
                $region59: #{outer_product_mean.4} parent=54 // loop_body
                  %v911 = vld [vmem:[%s909] sm:$0xff]
                  %912 = vst [vmem:[%s910] sm:$0xff] %v911
                  %v913 = vld [vmem:[%s909 + $0x8] sm:$0xff]
                  %914 = vst [vmem:[%s910 + $0x10] sm:$0xff] %v913
                  %v915 = vld [vmem:[%s909 + $0x10] sm:$0xff]
                  %916 = vst [vmem:[%s910 + $0x20] sm:$0xff] %v915
                  %v917 = vld [vmem:[%s909 + $0x18] sm:$0xff]
                  %918 = vst [vmem:[%s910 + $0x30] sm:$0xff] %v917
                  %v919 = vld [vmem:[%s909 + $0x20] sm:$0xff]
                  %920 = vst [vmem:[%s910 + $0x40] sm:$0xff] %v919
                  %v921 = vld [vmem:[%s909 + $0x28] sm:$0xff]
                  %922 = vst [vmem:[%s910 + $0x50] sm:$0xff] %v921
                  %v923 = vld [vmem:[%s909 + $0x30] sm:$0xff]
                  %924 = vst [vmem:[%s910 + $0x60] sm:$0xff] %v923
                  %v925 = vld [vmem:[%s909 + $0x38] sm:$0xff]
                  %926 = vst [vmem:[%s910 + $0x70] sm:$0xff] %v925
                  %v927 = vld [vmem:[%s909 + $0x40] sm:$0xff]
                  %928 = vst [vmem:[%s910 + $0x80] sm:$0xff] %v927
                  %v929 = vld [vmem:[%s909 + $0x48] sm:$0xff]
                  %930 = vst [vmem:[%s910 + $0x90] sm:$0xff] %v929
                  %v931 = vld [vmem:[%s909 + $0x50] sm:$0xff]
                  %932 = vst [vmem:[%s910 + $0xa0] sm:$0xff] %v931
                  %v933 = vld [vmem:[%s909 + $0x58] sm:$0xff]
                  %934 = vst [vmem:[%s910 + $0xb0] sm:$0xff] %v933
                  %v935 = vld [vmem:[%s909 + $0x60] sm:$0xff]
                  %936 = vst [vmem:[%s910 + $0xc0] sm:$0xff] %v935
                  %v937 = vld [vmem:[%s909 + $0x68] sm:$0xff]
                  %938 = vst [vmem:[%s910 + $0xd0] sm:$0xff] %v937
                  %v939 = vld [vmem:[%s909 + $0x70] sm:$0xff]
                  %940 = vst [vmem:[%s910 + $0xe0] sm:$0xff] %v939
                  %v941 = vld [vmem:[%s909 + $0x78] sm:$0xff]
                  %942 = vst [vmem:[%s910 + $0xf0] sm:$0xff] %v941
                  %v943 = vld [vmem:[%s909 + $0x80] sm:$0xff]
                  %944 = vst [vmem:[%s910 + $0x100] sm:$0xff] %v943
                  %v945 = vld [vmem:[%s909 + $0x88] sm:$0xff]
                  %946 = vst [vmem:[%s910 + $0x110] sm:$0xff] %v945
                  %v947 = vld [vmem:[%s909 + $0x90] sm:$0xff]
                  %948 = vst [vmem:[%s910 + $0x120] sm:$0xff] %v947
                  %v949 = vld [vmem:[%s909 + $0x98] sm:$0xff]
                  %950 = vst [vmem:[%s910 + $0x130] sm:$0xff] %v949
                  %v951 = vld [vmem:[%s909 + $0xa0] sm:$0xff]
                  %952 = vst [vmem:[%s910 + $0x140] sm:$0xff] %v951
                  %v953 = vld [vmem:[%s909 + $0xa8] sm:$0xff]
                  %954 = vst [vmem:[%s910 + $0x150] sm:$0xff] %v953
                  %v955 = vld [vmem:[%s909 + $0xb0] sm:$0xff]
                  %956 = vst [vmem:[%s910 + $0x160] sm:$0xff] %v955
                  %v957 = vld [vmem:[%s909 + $0xb8] sm:$0xff]
                  %958 = vst [vmem:[%s910 + $0x170] sm:$0xff] %v957
                  %v959 = vld [vmem:[%s909 + $0xc0] sm:$0xff]
                  %960 = vst [vmem:[%s910 + $0x180] sm:$0xff] %v959
                  %v961 = vld [vmem:[%s909 + $0xc8] sm:$0xff]
                  %962 = vst [vmem:[%s910 + $0x190] sm:$0xff] %v961
                  %v963 = vld [vmem:[%s909 + $0xd0] sm:$0xff]
                  %964 = vst [vmem:[%s910 + $0x1a0] sm:$0xff] %v963
                  %v965 = vld [vmem:[%s909 + $0xd8] sm:$0xff]
                  %966 = vst [vmem:[%s910 + $0x1b0] sm:$0xff] %v965
                  %v967 = vld [vmem:[%s909 + $0xe0] sm:$0xff]
                  %968 = vst [vmem:[%s910 + $0x1c0] sm:$0xff] %v967
                  %v969 = vld [vmem:[%s909 + $0xe8] sm:$0xff]
                  %970 = vst [vmem:[%s910 + $0x1d0] sm:$0xff] %v969
                  %v971 = vld [vmem:[%s909 + $0xf0] sm:$0xff]
                  %972 = vst [vmem:[%s910 + $0x1e0] sm:$0xff] %v971
                  %v973 = vld [vmem:[%s909 + $0xf8] sm:$0xff]
                  %974 = vst [vmem:[%s910 + $0x1f0] sm:$0xff] %v973
                $region60: #{outer_product_mean.4} parent=54 // loop_footer
                  %s908 = sadd.s32 1, %s904
                $region61: #{outer_product_mean.4} parent=54 // loop_footer_branch
                  %903 = sbr.rel target = $region57
                $region62: #{outer_product_mean.4} parent=54 // loop_exit
                  _
              $region55: #{outer_product_mean.4} parent=39 // pred_fallthru
                _
              // Predicated region
              $region63: #{outer_product_mean.4} parent=39 // pred_check
                _
              $region64: #{outer_product_mean.4} parent=39 // pred_check_branch
                %976 = sbr.rel target = $region66
              $region65: #{outer_product_mean.4} parent=39 // pred_region
                _
              $region66: #{outer_product_mean.4} parent=39 // pred_fallthru
                _
            $region40: #{outer_product_mean.4} parent=35 // pred_fallthru
              _
            // Predicated region
            $region41: #{outer_product_mean.4} parent=35 // pred_check
              _
            $region42: #{outer_product_mean.4} parent=35 // pred_check_branch
              %827 = sbr.rel target = $region44
            $region43: #{outer_product_mean.4} parent=35 // pred_region
              loop: start=0, step=1, limit=1
              $region45: #{outer_product_mean.4} parent=43 // loop_pre_header
                _
              $region46: #{outer_product_mean.4} parent=43 // loop_header
                %s830 = sphi 0, %s834
                %p831 = scmp.ge.s32.totalorder %s830, 1
                %s835 = sphi %s810, %s810
                %s836 = sphi %s821, %s821
              $region47: #{outer_product_mean.4} parent=43 // loop_header_branch
                %833 = sbr.rel (%p831) target = $region51
              $region48: #{outer_product_mean.4} parent=43 // loop_body
                %v837 = vld [vmem:[%s835] sm:$0xff]
                %838 = vst [vmem:[%s836] sm:$0xff] %v837
                %v839 = vld [vmem:[%s835 + $0x8] sm:$0xff]
                %840 = vst [vmem:[%s836 + $0x10] sm:$0xff] %v839
                %v841 = vld [vmem:[%s835 + $0x10] sm:$0xff]
                %842 = vst [vmem:[%s836 + $0x20] sm:$0xff] %v841
                %v843 = vld [vmem:[%s835 + $0x18] sm:$0xff]
                %844 = vst [vmem:[%s836 + $0x30] sm:$0xff] %v843
                %v845 = vld [vmem:[%s835 + $0x20] sm:$0xff]
                %846 = vst [vmem:[%s836 + $0x40] sm:$0xff] %v845
                %v847 = vld [vmem:[%s835 + $0x28] sm:$0xff]
                %848 = vst [vmem:[%s836 + $0x50] sm:$0xff] %v847
                %v849 = vld [vmem:[%s835 + $0x30] sm:$0xff]
                %850 = vst [vmem:[%s836 + $0x60] sm:$0xff] %v849
                %v851 = vld [vmem:[%s835 + $0x38] sm:$0xff]
                %852 = vst [vmem:[%s836 + $0x70] sm:$0xff] %v851
                %v853 = vld [vmem:[%s835 + $0x40] sm:$0xff]
                %854 = vst [vmem:[%s836 + $0x80] sm:$0xff] %v853
                %v855 = vld [vmem:[%s835 + $0x48] sm:$0xff]
                %856 = vst [vmem:[%s836 + $0x90] sm:$0xff] %v855
                %v857 = vld [vmem:[%s835 + $0x50] sm:$0xff]
                %858 = vst [vmem:[%s836 + $0xa0] sm:$0xff] %v857
                %v859 = vld [vmem:[%s835 + $0x58] sm:$0xff]
                %860 = vst [vmem:[%s836 + $0xb0] sm:$0xff] %v859
                %v861 = vld [vmem:[%s835 + $0x60] sm:$0xff]
                %862 = vst [vmem:[%s836 + $0xc0] sm:$0xff] %v861
                %v863 = vld [vmem:[%s835 + $0x68] sm:$0xff]
                %864 = vst [vmem:[%s836 + $0xd0] sm:$0xff] %v863
                %v865 = vld [vmem:[%s835 + $0x70] sm:$0xff]
                %866 = vst [vmem:[%s836 + $0xe0] sm:$0xff] %v865
                %v867 = vld [vmem:[%s835 + $0x78] sm:$0xff]
                %868 = vst [vmem:[%s836 + $0xf0] sm:$0xff] %v867
                %v869 = vld [vmem:[%s835 + $0x80] sm:$0xff]
                %870 = vst [vmem:[%s836 + $0x100] sm:$0xff] %v869
                %v871 = vld [vmem:[%s835 + $0x88] sm:$0xff]
                %872 = vst [vmem:[%s836 + $0x110] sm:$0xff] %v871
                %v873 = vld [vmem:[%s835 + $0x90] sm:$0xff]
                %874 = vst [vmem:[%s836 + $0x120] sm:$0xff] %v873
                %v875 = vld [vmem:[%s835 + $0x98] sm:$0xff]
                %876 = vst [vmem:[%s836 + $0x130] sm:$0xff] %v875
                %v877 = vld [vmem:[%s835 + $0xa0] sm:$0xff]
                %878 = vst [vmem:[%s836 + $0x140] sm:$0xff] %v877
                %v879 = vld [vmem:[%s835 + $0xa8] sm:$0xff]
                %880 = vst [vmem:[%s836 + $0x150] sm:$0xff] %v879
                %v881 = vld [vmem:[%s835 + $0xb0] sm:$0xff]
                %882 = vst [vmem:[%s836 + $0x160] sm:$0xff] %v881
                %v883 = vld [vmem:[%s835 + $0xb8] sm:$0xff]
                %884 = vst [vmem:[%s836 + $0x170] sm:$0xff] %v883
                %v885 = vld [vmem:[%s835 + $0xc0] sm:$0xff]
                %886 = vst [vmem:[%s836 + $0x180] sm:$0xff] %v885
                %v887 = vld [vmem:[%s835 + $0xc8] sm:$0xff]
                %888 = vst [vmem:[%s836 + $0x190] sm:$0xff] %v887
                %v889 = vld [vmem:[%s835 + $0xd0] sm:$0xff]
                %890 = vst [vmem:[%s836 + $0x1a0] sm:$0xff] %v889
                %v891 = vld [vmem:[%s835 + $0xd8] sm:$0xff]
                %892 = vst [vmem:[%s836 + $0x1b0] sm:$0xff] %v891
                %v893 = vld [vmem:[%s835 + $0xe0] sm:$0xff]
                %894 = vst [vmem:[%s836 + $0x1c0] sm:$0xff] %v893
                %v895 = vld [vmem:[%s835 + $0xe8] sm:$0xff]
                %896 = vst [vmem:[%s836 + $0x1d0] sm:$0xff] %v895
                %v897 = vld [vmem:[%s835 + $0xf0] sm:$0xff]
                %898 = vst [vmem:[%s836 + $0x1e0] sm:$0xff] %v897
                %v899 = vld [vmem:[%s835 + $0xf8] sm:$0xff]
                %900 = vst [vmem:[%s836 + $0x1f0] sm:$0xff] %v899
              $region49: #{outer_product_mean.4} parent=43 // loop_footer
                %s834 = sadd.s32 1, %s830
              $region50: #{outer_product_mean.4} parent=43 // loop_footer_branch
                %829 = sbr.rel target = $region46
              $region51: #{outer_product_mean.4} parent=43 // loop_exit
                _
            $region44: #{outer_product_mean.4} parent=35 // pred_fallthru
              _
          $region36: #{outer_product_mean.4} parent=31 // pred_fallthru
            _
          %977 = vnop
        $region32: #{outer_product_mean.4} parent=27 // pred_fallthru
          _
      $region28: #{outer_product_mean.4} parent=5 // pred_fallthru
        _
      %p978 = scmp.le.s32.totalorder 2, %s8
      // Predicated region
      $region67: #{outer_product_mean.4} parent=5 // pred_check
        %p979 = pneg %p978
      $region68: #{outer_product_mean.4} parent=5 // pred_check_branch
        %981 = sbr.rel (%p979) target = $region70
      $region69: #{outer_product_mean.4} parent=5 // pred_region
        %s982 = ssub.s32 %s8, 2
        // Predicated region
        $region71: #{outer_product_mean.4} parent=69 // pred_check
          %p983 = pneg %p116
        $region72: #{outer_product_mean.4} parent=69 // pred_check_branch
          %985 = sbr.rel (%p983) target = $region74
        $region73: #{outer_product_mean.4} parent=69 // pred_region
          %s986 = sand.u32 %s101, 1
          %s987 = sand.u32 %s101, 1
          %s988 = smul.addr %s987, 256
          %s989 = scalar_lea.vmem [#allocation2], %s988
        $region74: #{outer_product_mean.4} parent=69 // pred_fallthru
          _
      $region70: #{outer_product_mean.4} parent=5 // pred_fallthru
        _
    $region6: #{outer_product_mean.4} parent=1 // loop_footer
      %s12 = sadd.s32 1, %s8
    $region7: #{outer_product_mean.4} parent=1 // loop_footer_branch
      %7 = sbr.rel target = $region3
    $region8: #{outer_product_mean.4} parent=1 // loop_exit
      _

// kernel: outer_product_mean.5
$region0: #{outer_product_mean.5}
  #allocation0 [shape = 'u32[]', space=smem, size = 0x4, offset = 0x4, fixed_abs, tag = 'smem constant byte address 0x4 - core index']
  #allocation1 [shape = 'u32[144,128]{1,0:T(1,128)}', space=vmem, size = 0x12000, scoped, tag = 'internal scratch']
  %s0 = inlined_call_operand.vmem [shape: bf16[512,1024], index: 0, kind: input, shape index: {}]
  %s1 = inlined_call_operand.vmem [shape: bf16[1024,128], index: 1, kind: input, shape index: {}]
  %s2 = inlined_call_operand.vmem [shape: f32[1,128], index: 2, kind: input, shape index: {}]
  %s3 = inlined_call_operand.hbm [shape: f32[512,128], index: 3, kind: output, shape index: {}]
  %s4 = sld [smem:[#allocation0]]
  $region45: #{outer_product_mean.5} parent=0
    _
  %s6 = ssub.s32 1, %s4
  %s7 = scalar_select 0, %s6, %s4
  $region1: #{outer_product_mean.5} parent=0
    #allocation2 [shape = 'u8[262144]{0}', space=vmem, size = 0x40000, scoped, tag = 'output window, operand 0']
    #allocation3 [shape = 's32[2]{0}', space=sflag, size = 0x8, scoped, tag = 'scoped memory for outer_product_mean.5']
    %8 = vsyncpa [#allocation3], 0
    %s9 = scalar_lea.sflag [#allocation3], 1
    %10 = vsyncpa %s9, 0
    loop: start=0, step=1, limit=4
    $region2: #{outer_product_mean.5} parent=1 // loop_pre_header
      _
    $region3: #{outer_product_mean.5} parent=1 // loop_header
      %s12 = sphi 0, %s16
      %p13 = scmp.ge.s32.totalorder %s12, 4
      %s22 = sphi 0, %s24
      %s25 = sphi 0, %s22
      %s26 = sphi 0, %s25
      %s42 = sphi 0, %s26
      %s46 = sphi 0, %s46
      %s48 = sphi 0, %s46
      %s49 = sphi 0, %s48
      %s63 = sphi 0, %s49
      %s67 = sphi 0, %s67
      %s69 = sphi 0, %s67
      %s70 = sphi 0, %s69
      %s84 = sphi 0, %s70
      %s90 = sphi 0, %s92
      %s93 = sphi 0, %s90
      %s94 = sphi 0, %s93
      %s110 = sphi 0, %s94
    $region4: #{outer_product_mean.5} parent=1 // loop_header_branch
      %15 = sbr.rel (%p13) target = $region8
    $region5: #{outer_product_mean.5} parent=1 // loop_body
      %s17 = ssub.s32 %s12, 1
      %s18 = ssub.s32 %s12, 2
      %s19 = sadd.s32 %s12, 1
      %s20 = ssub.s32 %s12, %s19
      %p21 = scmp.eq.s32.totalorder %s20, 0
      %s23 = sadd.s32 %s22, 1
      %s24 = scalar_select %p21, %s22, %s23
      %p27 = pneg %p21
      %p28 = scmp.eq.s32.totalorder %s12, 1
      %p29 = por %p27, %p28
      %p30 = scmp.ne.s32.totalorder %s22, %s25
      %p31 = scmp.eq.s32.totalorder %s12, 0
      %p32 = por %p30, %p31
      %p33 = scmp.ne.s32.totalorder %s22, %s25
      %p34 = scmp.eq.s32.totalorder %s17, 1
      %p35 = por %p33, %p34
      %p36 = scmp.ne.s32.totalorder %s25, %s26
      %p37 = scmp.eq.s32.totalorder %s17, 0
      %p38 = por %p36, %p37
      %p39 = scmp.ne.s32.totalorder %s25, %s26
      %p40 = scmp.eq.s32.totalorder %s18, 1
      %p41 = por %p39, %p40
      %p43 = scmp.ne.s32.totalorder %s26, %s42
      %p44 = scmp.eq.s32.totalorder %s18, 0
      %p45 = por %p43, %p44
      %s47 = sadd.s32 %s46, 1
      %p50 = scmp.eq.s32.totalorder %s12, 1
      %p51 = scmp.ne.s32.totalorder %s46, %s48
      %p52 = scmp.eq.s32.totalorder %s12, 0
      %p53 = por %p51, %p52
      %p54 = scmp.ne.s32.totalorder %s46, %s48
      %p55 = scmp.eq.s32.totalorder %s17, 1
      %p56 = por %p54, %p55
      %p57 = scmp.ne.s32.totalorder %s48, %s49
      %p58 = scmp.eq.s32.totalorder %s17, 0
      %p59 = por %p57, %p58
      %p60 = scmp.ne.s32.totalorder %s48, %s49
      %p61 = scmp.eq.s32.totalorder %s18, 1
      %p62 = por %p60, %p61
      %p64 = scmp.ne.s32.totalorder %s49, %s63
      %p65 = scmp.eq.s32.totalorder %s18, 0
      %p66 = por %p64, %p65
      %s68 = sadd.s32 %s67, 1
      %p71 = scmp.eq.s32.totalorder %s12, 1
      %p72 = scmp.ne.s32.totalorder %s67, %s69
      %p73 = scmp.eq.s32.totalorder %s12, 0
      %p74 = por %p72, %p73
      %p75 = scmp.ne.s32.totalorder %s67, %s69
      %p76 = scmp.eq.s32.totalorder %s17, 1
      %p77 = por %p75, %p76
      %p78 = scmp.ne.s32.totalorder %s69, %s70
      %p79 = scmp.eq.s32.totalorder %s17, 0
      %p80 = por %p78, %p79
      %p81 = scmp.ne.s32.totalorder %s69, %s70
      %p82 = scmp.eq.s32.totalorder %s18, 1
      %p83 = por %p81, %p82
      %p85 = scmp.ne.s32.totalorder %s70, %s84
      %p86 = scmp.eq.s32.totalorder %s18, 0
      %p87 = por %p85, %p86
      %s88 = ssub.s32 %s12, %s19
      %p89 = scmp.eq.s32.totalorder %s88, 0
      %s91 = sadd.s32 %s90, 1
      %s92 = scalar_select %p89, %s90, %s91
      %p95 = pneg %p89
      %p96 = scmp.eq.s32.totalorder %s12, 1
      %p97 = por %p95, %p96
      %p98 = scmp.ne.s32.totalorder %s90, %s93
      %p99 = scmp.eq.s32.totalorder %s12, 0
      %p100 = por %p98, %p99
      %p101 = scmp.ne.s32.totalorder %s90, %s93
      %p102 = scmp.eq.s32.totalorder %s17, 1
      %p103 = por %p101, %p102
      %p104 = scmp.ne.s32.totalorder %s93, %s94
      %p105 = scmp.eq.s32.totalorder %s17, 0
      %p106 = por %p104, %p105
      %p107 = scmp.ne.s32.totalorder %s93, %s94
      %p108 = scmp.eq.s32.totalorder %s18, 1
      %p109 = por %p107, %p108
      %p111 = scmp.ne.s32.totalorder %s94, %s110
      %p112 = scmp.eq.s32.totalorder %s18, 0
      %p113 = por %p111, %p112
      %p114 = scmp.le.s32.totalorder 1, %s12
      %p115 = scmp.lt.s32.totalorder %s12, 3
      %p116 = pnand %p114, %p115
      %p117 = pneg %p116
      // Predicated region
      $region9: #{outer_product_mean.5} parent=5 // pred_check
        _
      $region10: #{outer_product_mean.5} parent=5 // pred_check_branch
        %119 = sbr.rel (%p116) target = $region12
      $region11: #{outer_product_mean.5} parent=5 // pred_region
        %s120 = ssub.s32 %s12, 1
        // Predicated region
        $region13: #{outer_product_mean.5} parent=11 // pred_check
          %p121 = pneg %p59
        $region14: #{outer_product_mean.5} parent=11 // pred_check_branch
          %123 = sbr.rel (%p121) target = $region16
        $region15: #{outer_product_mean.5} parent=11 // pred_region
          _
        $region16: #{outer_product_mean.5} parent=11 // pred_fallthru
          _
        // Predicated region
        $region17: #{outer_product_mean.5} parent=11 // pred_check
          %p124 = pneg %p80
        $region18: #{outer_product_mean.5} parent=11 // pred_check_branch
          %126 = sbr.rel (%p124) target = $region20
        $region19: #{outer_product_mean.5} parent=11 // pred_region
          _
        $region20: #{outer_product_mean.5} parent=11 // pred_fallthru
          _
      $region12: #{outer_product_mean.5} parent=5 // pred_fallthru
        _
      %p127 = scmp.lt.s32.totalorder %s12, 2
      // Predicated region
      $region21: #{outer_product_mean.5} parent=5 // pred_check
        %p128 = pneg %p127
      $region22: #{outer_product_mean.5} parent=5 // pred_check_branch
        %130 = sbr.rel (%p128) target = $region24
      $region23: #{outer_product_mean.5} parent=5 // pred_region
        // Predicated region
        $region25: #{outer_product_mean.5} parent=23 // pred_check
          %p131 = pneg %p32
        $region26: #{outer_product_mean.5} parent=23 // pred_check_branch
          %133 = sbr.rel (%p131) target = $region28
        $region27: #{outer_product_mean.5} parent=23 // pred_region
          %s134 = smul.u32 32, %s12
          %p135 = scmp.lt.s32.totalorder %s134, 63
          %s136 = scalar_select %p135, %s134, 63
          %s137 = smul.addr %s136, 8
          %s138 = smul.addr %s137, 4
          %s139 = scalar_lea.vmem %s0, %s138
          %s140 = smul.u32 32, %s12
        $region28: #{outer_product_mean.5} parent=23 // pred_fallthru
          _
      $region24: #{outer_product_mean.5} parent=5 // pred_fallthru
        _
      %p141 = scmp.le.s32.totalorder 1, %s12
      %p142 = scmp.lt.s32.totalorder %s12, 3
      %p143 = pnand %p141, %p142
      %p144 = pneg %p143
      // Predicated region
      $region29: #{outer_product_mean.5} parent=5 // pred_check
        _
      $region30: #{outer_product_mean.5} parent=5 // pred_check_branch
        %146 = sbr.rel (%p143) target = $region32
      $region31: #{outer_product_mean.5} parent=5 // pred_region
        %s147 = ssub.s32 %s12, 1
        %s148 = smul.u32 32, %s17
        %p149 = scmp.lt.s32.totalorder %s148, 63
        %s150 = scalar_select %p149, %s148, 63
        %s151 = smul.addr %s150, 8
        %s152 = smul.addr %s151, 4
        %s153 = scalar_lea.vmem %s0, %s152
        %p154 = pneg %p38
        %p155 = pneg %p35
        %p156 = pneg %p59
        %p157 = pneg %p56
        %p158 = pneg %p80
        %p159 = pneg %p77
        %p160 = pneg %p106
        %p161 = pneg %p103
        %s162 = sand.u32 %s93, 1
        %s163 = scalar_lea.sflag [#allocation3], %s162
        %s164 = sand.u32 %s93, 1
        %s165 = smul.addr %s164, 256
        %s166 = scalar_lea.vmem [#allocation2], %s165
        %s167 = smul.u32 32, %s17
        %p168 = scmp.lt.s32.totalorder %s167, 63
        %s169 = scalar_select %p168, %s167, 63
        %s170 = smul.addr %s169, 8
        %s171 = smul.addr %s170, 4
        %s172 = scalar_lea.vmem %s0, %s171
        %s173 = smul.u32 32, %s17
        %s174 = smul.u32 32, %s17
        %v176 = vld [vmem:[%s172] sm:$0xff]
        %v177 = vld [vmem:[%s172 + $0x8] sm:$0xff]
        %v178 = vld [vmem:[%s172 + $0x10] sm:$0xff]
        %v179 = vld [vmem:[%s172 + $0x18] sm:$0xff]
        %v180 = vld [vmem:[%s172 + $0x20] sm:$0xff]
        %v181 = vld [vmem:[%s172 + $0x28] sm:$0xff]
        %v182 = vld [vmem:[%s172 + $0x30] sm:$0xff]
        %v183 = vld [vmem:[%s172 + $0x38] sm:$0xff]
        %v184 = vld [vmem:[%s172 + $0x40] sm:$0xff]
        %v185 = vld [vmem:[%s172 + $0x48] sm:$0xff]
        %v186 = vld [vmem:[%s172 + $0x50] sm:$0xff]
        %v187 = vld [vmem:[%s172 + $0x58] sm:$0xff]
        %v188 = vld [vmem:[%s172 + $0x60] sm:$0xff]
        %v189 = vld [vmem:[%s172 + $0x68] sm:$0xff]
        %v190 = vld [vmem:[%s172 + $0x70] sm:$0xff]
        %v191 = vld [vmem:[%s172 + $0x78] sm:$0xff]
        %v192 = vld [vmem:[%s172 + $0x80] sm:$0xff]
        %v193 = vld [vmem:[%s172 + $0x88] sm:$0xff]
        %v194 = vld [vmem:[%s172 + $0x90] sm:$0xff]
        %v195 = vld [vmem:[%s172 + $0x98] sm:$0xff]
        %v196 = vld [vmem:[%s172 + $0xa0] sm:$0xff]
        %v197 = vld [vmem:[%s172 + $0xa8] sm:$0xff]
        %v198 = vld [vmem:[%s172 + $0xb0] sm:$0xff]
        %v199 = vld [vmem:[%s172 + $0xb8] sm:$0xff]
        %v200 = vld [vmem:[%s172 + $0xc0] sm:$0xff]
        %v201 = vld [vmem:[%s172 + $0xc8] sm:$0xff]
        %v202 = vld [vmem:[%s172 + $0xd0] sm:$0xff]
        %v203 = vld [vmem:[%s172 + $0xd8] sm:$0xff]
        %v204 = vld [vmem:[%s172 + $0xe0] sm:$0xff]
        %v205 = vld [vmem:[%s172 + $0xe8] sm:$0xff]
        %v206 = vld [vmem:[%s172 + $0xf0] sm:$0xff]
        %v207 = vld [vmem:[%s172 + $0xf8] sm:$0xff]
        %v208 = vld [vmem:[%s172 + $0x100] sm:$0xff]
        %v209 = vld [vmem:[%s172 + $0x108] sm:$0xff]
        %v210 = vld [vmem:[%s172 + $0x110] sm:$0xff]
        %v211 = vld [vmem:[%s172 + $0x118] sm:$0xff]
        %v212 = vld [vmem:[%s172 + $0x120] sm:$0xff]
        %v213 = vld [vmem:[%s172 + $0x128] sm:$0xff]
        %v214 = vld [vmem:[%s172 + $0x130] sm:$0xff]
        %v215 = vld [vmem:[%s172 + $0x138] sm:$0xff]
        %v216 = vld [vmem:[%s172 + $0x140] sm:$0xff]
        %v217 = vld [vmem:[%s172 + $0x148] sm:$0xff]
        %v218 = vld [vmem:[%s172 + $0x150] sm:$0xff]
        %v219 = vld [vmem:[%s172 + $0x158] sm:$0xff]
        %v220 = vld [vmem:[%s172 + $0x160] sm:$0xff]
        %v221 = vld [vmem:[%s172 + $0x168] sm:$0xff]
        %v222 = vld [vmem:[%s172 + $0x170] sm:$0xff]
        %v223 = vld [vmem:[%s172 + $0x178] sm:$0xff]
        %v224 = vld [vmem:[%s172 + $0x180] sm:$0xff]
        %v225 = vld [vmem:[%s172 + $0x188] sm:$0xff]
        %v226 = vld [vmem:[%s172 + $0x190] sm:$0xff]
        %v227 = vld [vmem:[%s172 + $0x198] sm:$0xff]
        %v228 = vld [vmem:[%s172 + $0x1a0] sm:$0xff]
        %v229 = vld [vmem:[%s172 + $0x1a8] sm:$0xff]
        %v230 = vld [vmem:[%s172 + $0x1b0] sm:$0xff]
        %v231 = vld [vmem:[%s172 + $0x1b8] sm:$0xff]
        %v232 = vld [vmem:[%s172 + $0x1c0] sm:$0xff]
        %v233 = vld [vmem:[%s172 + $0x1c8] sm:$0xff]
        %v234 = vld [vmem:[%s172 + $0x1d0] sm:$0xff]
        %v235 = vld [vmem:[%s172 + $0x1d8] sm:$0xff]
        %v236 = vld [vmem:[%s172 + $0x1e0] sm:$0xff]
        %v237 = vld [vmem:[%s172 + $0x1e8] sm:$0xff]
        %v238 = vld [vmem:[%s172 + $0x1f0] sm:$0xff]
        %v239 = vld [vmem:[%s172 + $0x1f8] sm:$0xff]
        %v240 = vld [vmem:[%s172 + $0x200] sm:$0xff]
        %v241 = vld [vmem:[%s172 + $0x208] sm:$0xff]
        %v242 = vld [vmem:[%s172 + $0x210] sm:$0xff]
        %v243 = vld [vmem:[%s172 + $0x218] sm:$0xff]
        %v244 = vld [vmem:[%s172 + $0x220] sm:$0xff]
        %v245 = vld [vmem:[%s172 + $0x228] sm:$0xff]
        %v246 = vld [vmem:[%s172 + $0x230] sm:$0xff]
        %v247 = vld [vmem:[%s172 + $0x238] sm:$0xff]
        %v248 = vld [vmem:[%s172 + $0x240] sm:$0xff]
        %v249 = vld [vmem:[%s172 + $0x248] sm:$0xff]
        %v250 = vld [vmem:[%s172 + $0x250] sm:$0xff]
        %v251 = vld [vmem:[%s172 + $0x258] sm:$0xff]
        %v252 = vld [vmem:[%s172 + $0x260] sm:$0xff]
        %v253 = vld [vmem:[%s172 + $0x268] sm:$0xff]
        %v254 = vld [vmem:[%s172 + $0x270] sm:$0xff]
        %v255 = vld [vmem:[%s172 + $0x278] sm:$0xff]
        %v256 = vld [vmem:[%s172 + $0x280] sm:$0xff]
        %v257 = vld [vmem:[%s172 + $0x288] sm:$0xff]
        %v258 = vld [vmem:[%s172 + $0x290] sm:$0xff]
        %v259 = vld [vmem:[%s172 + $0x298] sm:$0xff]
        %v260 = vld [vmem:[%s172 + $0x2a0] sm:$0xff]
        %v261 = vld [vmem:[%s172 + $0x2a8] sm:$0xff]
        %v262 = vld [vmem:[%s172 + $0x2b0] sm:$0xff]
        %v263 = vld [vmem:[%s172 + $0x2b8] sm:$0xff]
        %v264 = vld [vmem:[%s172 + $0x2c0] sm:$0xff]
        %v265 = vld [vmem:[%s172 + $0x2c8] sm:$0xff]
        %v266 = vld [vmem:[%s172 + $0x2d0] sm:$0xff]
        %v267 = vld [vmem:[%s172 + $0x2d8] sm:$0xff]
        %v268 = vld [vmem:[%s172 + $0x2e0] sm:$0xff]
        %v269 = vld [vmem:[%s172 + $0x2e8] sm:$0xff]
        %v270 = vld [vmem:[%s172 + $0x2f0] sm:$0xff]
        %v271 = vld [vmem:[%s172 + $0x2f8] sm:$0xff]
        %v272 = vld [vmem:[%s172 + $0x300] sm:$0xff]
        %v273 = vld [vmem:[%s172 + $0x308] sm:$0xff]
        %v274 = vld [vmem:[%s172 + $0x310] sm:$0xff]
        %v275 = vld [vmem:[%s172 + $0x318] sm:$0xff]
        %v276 = vld [vmem:[%s172 + $0x320] sm:$0xff]
        %v277 = vld [vmem:[%s172 + $0x328] sm:$0xff]
        %v278 = vld [vmem:[%s172 + $0x330] sm:$0xff]
        %v279 = vld [vmem:[%s172 + $0x338] sm:$0xff]
        %v280 = vld [vmem:[%s172 + $0x340] sm:$0xff]
        %v281 = vld [vmem:[%s172 + $0x348] sm:$0xff]
        %v282 = vld [vmem:[%s172 + $0x350] sm:$0xff]
        %v283 = vld [vmem:[%s172 + $0x358] sm:$0xff]
        %v284 = vld [vmem:[%s172 + $0x360] sm:$0xff]
        %v285 = vld [vmem:[%s172 + $0x368] sm:$0xff]
        %v286 = vld [vmem:[%s172 + $0x370] sm:$0xff]
        %v287 = vld [vmem:[%s172 + $0x378] sm:$0xff]
        %v288 = vld [vmem:[%s172 + $0x380] sm:$0xff]
        %v289 = vld [vmem:[%s172 + $0x388] sm:$0xff]
        %v290 = vld [vmem:[%s172 + $0x390] sm:$0xff]
        %v291 = vld [vmem:[%s172 + $0x398] sm:$0xff]
        %v292 = vld [vmem:[%s172 + $0x3a0] sm:$0xff]
        %v293 = vld [vmem:[%s172 + $0x3a8] sm:$0xff]
        %v294 = vld [vmem:[%s172 + $0x3b0] sm:$0xff]
        %v295 = vld [vmem:[%s172 + $0x3b8] sm:$0xff]
        %v296 = vld [vmem:[%s172 + $0x3c0] sm:$0xff]
        %v297 = vld [vmem:[%s172 + $0x3c8] sm:$0xff]
        %v298 = vld [vmem:[%s172 + $0x3d0] sm:$0xff]
        %v299 = vld [vmem:[%s172 + $0x3d8] sm:$0xff]
        %v300 = vld [vmem:[%s172 + $0x3e0] sm:$0xff]
        %v301 = vld [vmem:[%s172 + $0x3e8] sm:$0xff]
        %v302 = vld [vmem:[%s172 + $0x3f0] sm:$0xff]
        %v303 = vld [vmem:[%s172 + $0x3f8] sm:$0xff]
        %v304 = vld [vmem:[%s1] sm:$0xf]
        %v305 = vld [vmem:[%s1 + $0x4] sm:$0xf]
        %v306 = vld [vmem:[%s1 + $0x8] sm:$0xf]
        %v307 = vld [vmem:[%s1 + $0xc] sm:$0xf]
        %v308 = vld [vmem:[%s1 + $0x10] sm:$0xf]
        %v309 = vld [vmem:[%s1 + $0x14] sm:$0xf]
        %v310 = vld [vmem:[%s1 + $0x18] sm:$0xf]
        %v311 = vld [vmem:[%s1 + $0x1c] sm:$0xf]
        %v312 = vld [vmem:[%s1 + $0x20] sm:$0xf]
        %v313 = vld [vmem:[%s1 + $0x24] sm:$0xf]
        %v314 = vld [vmem:[%s1 + $0x28] sm:$0xf]
        %v315 = vld [vmem:[%s1 + $0x2c] sm:$0xf]
        %v316 = vld [vmem:[%s1 + $0x30] sm:$0xf]
        %v317 = vld [vmem:[%s1 + $0x34] sm:$0xf]
        %v318 = vld [vmem:[%s1 + $0x38] sm:$0xf]
        %v319 = vld [vmem:[%s1 + $0x3c] sm:$0xf]
        %v320 = vld [vmem:[%s1 + $0x40] sm:$0xf]
        %v321 = vld [vmem:[%s1 + $0x44] sm:$0xf]
        %v322 = vld [vmem:[%s1 + $0x48] sm:$0xf]
        %v323 = vld [vmem:[%s1 + $0x4c] sm:$0xf]
        %v324 = vld [vmem:[%s1 + $0x50] sm:$0xf]
        %v325 = vld [vmem:[%s1 + $0x54] sm:$0xf]
        %v326 = vld [vmem:[%s1 + $0x58] sm:$0xf]
        %v327 = vld [vmem:[%s1 + $0x5c] sm:$0xf]
        %v328 = vld [vmem:[%s1 + $0x60] sm:$0xf]
        %v329 = vld [vmem:[%s1 + $0x64] sm:$0xf]
        %v330 = vld [vmem:[%s1 + $0x68] sm:$0xf]
        %v331 = vld [vmem:[%s1 + $0x6c] sm:$0xf]
        %v332 = vld [vmem:[%s1 + $0x70] sm:$0xf]
        %v333 = vld [vmem:[%s1 + $0x74] sm:$0xf]
        %v334 = vld [vmem:[%s1 + $0x78] sm:$0xf]
        %v335 = vld [vmem:[%s1 + $0x7c] sm:$0xf]
        %v336 = vld [vmem:[%s1 + $0x80] sm:$0xf]
        %v337 = vld [vmem:[%s1 + $0x84] sm:$0xf]
        %v338 = vld [vmem:[%s1 + $0x88] sm:$0xf]
        %v339 = vld [vmem:[%s1 + $0x8c] sm:$0xf]
        %v340 = vld [vmem:[%s1 + $0x90] sm:$0xf]
        %v341 = vld [vmem:[%s1 + $0x94] sm:$0xf]
        %v342 = vld [vmem:[%s1 + $0x98] sm:$0xf]
        %v343 = vld [vmem:[%s1 + $0x9c] sm:$0xf]
        %v344 = vld [vmem:[%s1 + $0xa0] sm:$0xf]
        %v345 = vld [vmem:[%s1 + $0xa4] sm:$0xf]
        %v346 = vld [vmem:[%s1 + $0xa8] sm:$0xf]
        %v347 = vld [vmem:[%s1 + $0xac] sm:$0xf]
        %v348 = vld [vmem:[%s1 + $0xb0] sm:$0xf]
        %v349 = vld [vmem:[%s1 + $0xb4] sm:$0xf]
        %v350 = vld [vmem:[%s1 + $0xb8] sm:$0xf]
        %v351 = vld [vmem:[%s1 + $0xbc] sm:$0xf]
        %v352 = vld [vmem:[%s1 + $0xc0] sm:$0xf]
        %v353 = vld [vmem:[%s1 + $0xc4] sm:$0xf]
        %v354 = vld [vmem:[%s1 + $0xc8] sm:$0xf]
        %v355 = vld [vmem:[%s1 + $0xcc] sm:$0xf]
        %v356 = vld [vmem:[%s1 + $0xd0] sm:$0xf]
        %v357 = vld [vmem:[%s1 + $0xd4] sm:$0xf]
        %v358 = vld [vmem:[%s1 + $0xd8] sm:$0xf]
        %v359 = vld [vmem:[%s1 + $0xdc] sm:$0xf]
        %v360 = vld [vmem:[%s1 + $0xe0] sm:$0xf]
        %v361 = vld [vmem:[%s1 + $0xe4] sm:$0xf]
        %v362 = vld [vmem:[%s1 + $0xe8] sm:$0xf]
        %v363 = vld [vmem:[%s1 + $0xec] sm:$0xf]
        %v364 = vld [vmem:[%s1 + $0xf0] sm:$0xf]
        %v365 = vld [vmem:[%s1 + $0xf4] sm:$0xf]
        %v366 = vld [vmem:[%s1 + $0xf8] sm:$0xf]
        %v367 = vld [vmem:[%s1 + $0xfc] sm:$0xf]
        %v368 = vld [vmem:[%s1 + $0x100] sm:$0xf]
        %v369 = vld [vmem:[%s1 + $0x104] sm:$0xf]
        %v370 = vld [vmem:[%s1 + $0x108] sm:$0xf]
        %v371 = vld [vmem:[%s1 + $0x10c] sm:$0xf]
        %v372 = vld [vmem:[%s1 + $0x110] sm:$0xf]
        %v373 = vld [vmem:[%s1 + $0x114] sm:$0xf]
        %v374 = vld [vmem:[%s1 + $0x118] sm:$0xf]
        %v375 = vld [vmem:[%s1 + $0x11c] sm:$0xf]
        %v376 = vld [vmem:[%s1 + $0x120] sm:$0xf]
        %v377 = vld [vmem:[%s1 + $0x124] sm:$0xf]
        %v378 = vld [vmem:[%s1 + $0x128] sm:$0xf]
        %v379 = vld [vmem:[%s1 + $0x12c] sm:$0xf]
        %v380 = vld [vmem:[%s1 + $0x130] sm:$0xf]
        %v381 = vld [vmem:[%s1 + $0x134] sm:$0xf]
        %v382 = vld [vmem:[%s1 + $0x138] sm:$0xf]
        %v383 = vld [vmem:[%s1 + $0x13c] sm:$0xf]
        %v384 = vld [vmem:[%s1 + $0x140] sm:$0xf]
        %v385 = vld [vmem:[%s1 + $0x144] sm:$0xf]
        %v386 = vld [vmem:[%s1 + $0x148] sm:$0xf]
        %v387 = vld [vmem:[%s1 + $0x14c] sm:$0xf]
        %v388 = vld [vmem:[%s1 + $0x150] sm:$0xf]
        %v389 = vld [vmem:[%s1 + $0x154] sm:$0xf]
        %v390 = vld [vmem:[%s1 + $0x158] sm:$0xf]
        %v391 = vld [vmem:[%s1 + $0x15c] sm:$0xf]
        %v392 = vld [vmem:[%s1 + $0x160] sm:$0xf]
        %v393 = vld [vmem:[%s1 + $0x164] sm:$0xf]
        %v394 = vld [vmem:[%s1 + $0x168] sm:$0xf]
        %v395 = vld [vmem:[%s1 + $0x16c] sm:$0xf]
        %v396 = vld [vmem:[%s1 + $0x170] sm:$0xf]
        %v397 = vld [vmem:[%s1 + $0x174] sm:$0xf]
        %v398 = vld [vmem:[%s1 + $0x178] sm:$0xf]
        %v399 = vld [vmem:[%s1 + $0x17c] sm:$0xf]
        %v400 = vld [vmem:[%s1 + $0x180] sm:$0xf]
        %v401 = vld [vmem:[%s1 + $0x184] sm:$0xf]
        %v402 = vld [vmem:[%s1 + $0x188] sm:$0xf]
        %v403 = vld [vmem:[%s1 + $0x18c] sm:$0xf]
        %v404 = vld [vmem:[%s1 + $0x190] sm:$0xf]
        %v405 = vld [vmem:[%s1 + $0x194] sm:$0xf]
        %v406 = vld [vmem:[%s1 + $0x198] sm:$0xf]
        %v407 = vld [vmem:[%s1 + $0x19c] sm:$0xf]
        %v408 = vld [vmem:[%s1 + $0x1a0] sm:$0xf]
        %v409 = vld [vmem:[%s1 + $0x1a4] sm:$0xf]
        %v410 = vld [vmem:[%s1 + $0x1a8] sm:$0xf]
        %v411 = vld [vmem:[%s1 + $0x1ac] sm:$0xf]
        %v412 = vld [vmem:[%s1 + $0x1b0] sm:$0xf]
        %v413 = vld [vmem:[%s1 + $0x1b4] sm:$0xf]
        %v414 = vld [vmem:[%s1 + $0x1b8] sm:$0xf]
        %v415 = vld [vmem:[%s1 + $0x1bc] sm:$0xf]
        %v416 = vld [vmem:[%s1 + $0x1c0] sm:$0xf]
        %v417 = vld [vmem:[%s1 + $0x1c4] sm:$0xf]
        %v418 = vld [vmem:[%s1 + $0x1c8] sm:$0xf]
        %v419 = vld [vmem:[%s1 + $0x1cc] sm:$0xf]
        %v420 = vld [vmem:[%s1 + $0x1d0] sm:$0xf]
        %v421 = vld [vmem:[%s1 + $0x1d4] sm:$0xf]
        %v422 = vld [vmem:[%s1 + $0x1d8] sm:$0xf]
        %v423 = vld [vmem:[%s1 + $0x1dc] sm:$0xf]
        %v424 = vld [vmem:[%s1 + $0x1e0] sm:$0xf]
        %v425 = vld [vmem:[%s1 + $0x1e4] sm:$0xf]
        %v426 = vld [vmem:[%s1 + $0x1e8] sm:$0xf]
        %v427 = vld [vmem:[%s1 + $0x1ec] sm:$0xf]
        %v428 = vld [vmem:[%s1 + $0x1f0] sm:$0xf]
        %v429 = vld [vmem:[%s1 + $0x1f4] sm:$0xf]
        %v430 = vld [vmem:[%s1 + $0x1f8] sm:$0xf]
        %v431 = vld [vmem:[%s1 + $0x1fc] sm:$0xf]
        %v432 = vld [vmem:[%s2] sm:$0x1]
        %v434 = vlaneseq
        %v435 = vshrl.u32 %v434, 7
        %v436 = vsub.s32 0, %v435
        %v437 = vrot.slane %v432, %v436
        %v567 = vunpack.c.l.b16 %v176
        %v568 = vunpack.c.h.b16 %v176
        %v569 = vunpack.c.l.b16 %v177
        %v570 = vunpack.c.h.b16 %v177
        %v571 = vunpack.c.l.b16 %v178
        %v572 = vunpack.c.h.b16 %v178
        %v573 = vunpack.c.l.b16 %v179
        %v574 = vunpack.c.h.b16 %v179
        %v575 = vunpack.c.l.b16 %v180
        %v576 = vunpack.c.h.b16 %v180
        %v577 = vunpack.c.l.b16 %v181
        %v578 = vunpack.c.h.b16 %v181
        %v579 = vunpack.c.l.b16 %v182
        %v580 = vunpack.c.h.b16 %v182
        %v581 = vunpack.c.l.b16 %v183
        %v582 = vunpack.c.h.b16 %v183
        %v583 = vunpack.c.l.b16 %v184
        %v584 = vunpack.c.h.b16 %v184
        %v585 = vunpack.c.l.b16 %v185
        %v586 = vunpack.c.h.b16 %v185
        %v587 = vunpack.c.l.b16 %v186
        %v588 = vunpack.c.h.b16 %v186
        %v589 = vunpack.c.l.b16 %v187
        %v590 = vunpack.c.h.b16 %v187
        %v591 = vunpack.c.l.b16 %v188
        %v592 = vunpack.c.h.b16 %v188
        %v593 = vunpack.c.l.b16 %v189
        %v594 = vunpack.c.h.b16 %v189
        %v595 = vunpack.c.l.b16 %v190
        %v596 = vunpack.c.h.b16 %v190
        %v597 = vunpack.c.l.b16 %v191
        %v598 = vunpack.c.h.b16 %v191
        %v599 = vunpack.c.l.b16 %v192
        %v600 = vunpack.c.h.b16 %v192
        %v601 = vunpack.c.l.b16 %v193
        %v602 = vunpack.c.h.b16 %v193
        %v603 = vunpack.c.l.b16 %v194
        %v604 = vunpack.c.h.b16 %v194
        %v605 = vunpack.c.l.b16 %v195
        %v606 = vunpack.c.h.b16 %v195
        %v607 = vunpack.c.l.b16 %v196
        %v608 = vunpack.c.h.b16 %v196
        %v609 = vunpack.c.l.b16 %v197
        %v610 = vunpack.c.h.b16 %v197
        %v611 = vunpack.c.l.b16 %v198
        %v612 = vunpack.c.h.b16 %v198
        %v613 = vunpack.c.l.b16 %v199
        %v614 = vunpack.c.h.b16 %v199
        %v615 = vunpack.c.l.b16 %v200
        %v616 = vunpack.c.h.b16 %v200
        %v617 = vunpack.c.l.b16 %v201
        %v618 = vunpack.c.h.b16 %v201
        %v619 = vunpack.c.l.b16 %v202
        %v620 = vunpack.c.h.b16 %v202
        %v621 = vunpack.c.l.b16 %v203
        %v622 = vunpack.c.h.b16 %v203
        %v623 = vunpack.c.l.b16 %v204
        %v624 = vunpack.c.h.b16 %v204
        %v625 = vunpack.c.l.b16 %v205
        %v626 = vunpack.c.h.b16 %v205
        %v627 = vunpack.c.l.b16 %v206
        %v628 = vunpack.c.h.b16 %v206
        %v629 = vunpack.c.l.b16 %v207
        %v630 = vunpack.c.h.b16 %v207
        %v631 = vunpack.c.l.b16 %v208
        %v632 = vunpack.c.h.b16 %v208
        %v633 = vunpack.c.l.b16 %v209
        %v634 = vunpack.c.h.b16 %v209
        %v635 = vunpack.c.l.b16 %v210
        %v636 = vunpack.c.h.b16 %v210
        %v637 = vunpack.c.l.b16 %v211
        %v638 = vunpack.c.h.b16 %v211
        %v639 = vunpack.c.l.b16 %v212
        %v640 = vunpack.c.h.b16 %v212
        %v641 = vunpack.c.l.b16 %v213
        %v642 = vunpack.c.h.b16 %v213
        %v643 = vunpack.c.l.b16 %v214
        %v644 = vunpack.c.h.b16 %v214
        %v645 = vunpack.c.l.b16 %v215
        %v646 = vunpack.c.h.b16 %v215
        %v647 = vunpack.c.l.b16 %v216
        %v648 = vunpack.c.h.b16 %v216
        %v649 = vunpack.c.l.b16 %v217
        %v650 = vunpack.c.h.b16 %v217
        %v651 = vunpack.c.l.b16 %v218
        %v652 = vunpack.c.h.b16 %v218
        %v653 = vunpack.c.l.b16 %v219
        %v654 = vunpack.c.h.b16 %v219
        %v655 = vunpack.c.l.b16 %v220
        %v656 = vunpack.c.h.b16 %v220
        %v657 = vunpack.c.l.b16 %v221
        %v658 = vunpack.c.h.b16 %v221
        %v659 = vunpack.c.l.b16 %v222
        %v660 = vunpack.c.h.b16 %v222
        %v661 = vunpack.c.l.b16 %v223
        %v662 = vunpack.c.h.b16 %v223
        %v663 = vunpack.c.l.b16 %v224
        %v664 = vunpack.c.h.b16 %v224
        %v665 = vunpack.c.l.b16 %v225
        %v666 = vunpack.c.h.b16 %v225
        %v667 = vunpack.c.l.b16 %v226
        %v668 = vunpack.c.h.b16 %v226
        %v669 = vunpack.c.l.b16 %v227
        %v670 = vunpack.c.h.b16 %v227
        %v671 = vunpack.c.l.b16 %v228
        %v672 = vunpack.c.h.b16 %v228
        %v673 = vunpack.c.l.b16 %v229
        %v674 = vunpack.c.h.b16 %v229
        %v675 = vunpack.c.l.b16 %v230
        %v676 = vunpack.c.h.b16 %v230
        %v677 = vunpack.c.l.b16 %v231
        %v678 = vunpack.c.h.b16 %v231
        %v679 = vunpack.c.l.b16 %v232
        %v680 = vunpack.c.h.b16 %v232
        %v681 = vunpack.c.l.b16 %v233
        %v682 = vunpack.c.h.b16 %v233
        %v683 = vunpack.c.l.b16 %v234
        %v684 = vunpack.c.h.b16 %v234
        %v685 = vunpack.c.l.b16 %v235
        %v686 = vunpack.c.h.b16 %v235
        %v687 = vunpack.c.l.b16 %v236
        %v688 = vunpack.c.h.b16 %v236
        %v689 = vunpack.c.l.b16 %v237
        %v690 = vunpack.c.h.b16 %v237
        %v691 = vunpack.c.l.b16 %v238
        %v692 = vunpack.c.h.b16 %v238
        %v693 = vunpack.c.l.b16 %v239
        %v694 = vunpack.c.h.b16 %v239
        %v695 = vunpack.c.l.b16 %v240
        %v696 = vunpack.c.h.b16 %v240
        %v697 = vunpack.c.l.b16 %v241
        %v698 = vunpack.c.h.b16 %v241
        %v699 = vunpack.c.l.b16 %v242
        %v700 = vunpack.c.h.b16 %v242
        %v701 = vunpack.c.l.b16 %v243
        %v702 = vunpack.c.h.b16 %v243
        %v703 = vunpack.c.l.b16 %v244
        %v704 = vunpack.c.h.b16 %v244
        %v705 = vunpack.c.l.b16 %v245
        %v706 = vunpack.c.h.b16 %v245
        %v707 = vunpack.c.l.b16 %v246
        %v708 = vunpack.c.h.b16 %v246
        %v709 = vunpack.c.l.b16 %v247
        %v710 = vunpack.c.h.b16 %v247
        %v711 = vunpack.c.l.b16 %v248
        %v712 = vunpack.c.h.b16 %v248
        %v713 = vunpack.c.l.b16 %v249
        %v714 = vunpack.c.h.b16 %v249
        %v715 = vunpack.c.l.b16 %v250
        %v716 = vunpack.c.h.b16 %v250
        %v717 = vunpack.c.l.b16 %v251
        %v718 = vunpack.c.h.b16 %v251
        %v719 = vunpack.c.l.b16 %v252
        %v720 = vunpack.c.h.b16 %v252
        %v721 = vunpack.c.l.b16 %v253
        %v722 = vunpack.c.h.b16 %v253
        %v723 = vunpack.c.l.b16 %v254
        %v724 = vunpack.c.h.b16 %v254
        %v725 = vunpack.c.l.b16 %v255
        %v726 = vunpack.c.h.b16 %v255
        %v727 = vunpack.c.l.b16 %v256
        %v728 = vunpack.c.h.b16 %v256
        %v729 = vunpack.c.l.b16 %v257
        %v730 = vunpack.c.h.b16 %v257
        %v731 = vunpack.c.l.b16 %v258
        %v732 = vunpack.c.h.b16 %v258
        %v733 = vunpack.c.l.b16 %v259
        %v734 = vunpack.c.h.b16 %v259
        %v735 = vunpack.c.l.b16 %v260
        %v736 = vunpack.c.h.b16 %v260
        %v737 = vunpack.c.l.b16 %v261
        %v738 = vunpack.c.h.b16 %v261
        %v739 = vunpack.c.l.b16 %v262
        %v740 = vunpack.c.h.b16 %v262
        %v741 = vunpack.c.l.b16 %v263
        %v742 = vunpack.c.h.b16 %v263
        %v743 = vunpack.c.l.b16 %v264
        %v744 = vunpack.c.h.b16 %v264
        %v745 = vunpack.c.l.b16 %v265
        %v746 = vunpack.c.h.b16 %v265
        %v747 = vunpack.c.l.b16 %v266
        %v748 = vunpack.c.h.b16 %v266
        %v749 = vunpack.c.l.b16 %v267
        %v750 = vunpack.c.h.b16 %v267
        %v751 = vunpack.c.l.b16 %v268
        %v752 = vunpack.c.h.b16 %v268
        %v753 = vunpack.c.l.b16 %v269
        %v754 = vunpack.c.h.b16 %v269
        %v755 = vunpack.c.l.b16 %v270
        %v756 = vunpack.c.h.b16 %v270
        %v757 = vunpack.c.l.b16 %v271
        %v758 = vunpack.c.h.b16 %v271
        %v759 = vunpack.c.l.b16 %v272
        %v760 = vunpack.c.h.b16 %v272
        %v761 = vunpack.c.l.b16 %v273
        %v762 = vunpack.c.h.b16 %v273
        %v763 = vunpack.c.l.b16 %v274
        %v764 = vunpack.c.h.b16 %v274
        %v765 = vunpack.c.l.b16 %v275
        %v766 = vunpack.c.h.b16 %v275
        %v767 = vunpack.c.l.b16 %v276
        %v768 = vunpack.c.h.b16 %v276
        %v769 = vunpack.c.l.b16 %v277
        %v770 = vunpack.c.h.b16 %v277
        %v771 = vunpack.c.l.b16 %v278
        %v772 = vunpack.c.h.b16 %v278
        %v773 = vunpack.c.l.b16 %v279
        %v774 = vunpack.c.h.b16 %v279
        %v775 = vunpack.c.l.b16 %v280
        %v776 = vunpack.c.h.b16 %v280
        %v777 = vunpack.c.l.b16 %v281
        %v778 = vunpack.c.h.b16 %v281
        %v779 = vunpack.c.l.b16 %v282
        %v780 = vunpack.c.h.b16 %v282
        %v781 = vunpack.c.l.b16 %v283
        %v782 = vunpack.c.h.b16 %v283
        %v783 = vunpack.c.l.b16 %v284
        %v784 = vunpack.c.h.b16 %v284
        %v785 = vunpack.c.l.b16 %v285
        %v786 = vunpack.c.h.b16 %v285
        %v787 = vunpack.c.l.b16 %v286
        %v788 = vunpack.c.h.b16 %v286
        %v789 = vunpack.c.l.b16 %v287
        %v790 = vunpack.c.h.b16 %v287
        %v791 = vunpack.c.l.b16 %v288
        %v792 = vunpack.c.h.b16 %v288
        %v793 = vunpack.c.l.b16 %v289
        %v794 = vunpack.c.h.b16 %v289
        %v795 = vunpack.c.l.b16 %v290
        %v796 = vunpack.c.h.b16 %v290
        %v797 = vunpack.c.l.b16 %v291
        %v798 = vunpack.c.h.b16 %v291
        %v799 = vunpack.c.l.b16 %v292
        %v800 = vunpack.c.h.b16 %v292
        %v801 = vunpack.c.l.b16 %v293
        %v802 = vunpack.c.h.b16 %v293
        %v803 = vunpack.c.l.b16 %v294
        %v804 = vunpack.c.h.b16 %v294
        %v805 = vunpack.c.l.b16 %v295
        %v806 = vunpack.c.h.b16 %v295
        %v807 = vunpack.c.l.b16 %v296
        %v808 = vunpack.c.h.b16 %v296
        %v809 = vunpack.c.l.b16 %v297
        %v810 = vunpack.c.h.b16 %v297
        %v811 = vunpack.c.l.b16 %v298
        %v812 = vunpack.c.h.b16 %v298
        %v813 = vunpack.c.l.b16 %v299
        %v814 = vunpack.c.h.b16 %v299
        %v815 = vunpack.c.l.b16 %v300
        %v816 = vunpack.c.h.b16 %v300
        %v817 = vunpack.c.l.b16 %v301
        %v818 = vunpack.c.h.b16 %v301
        %v819 = vunpack.c.l.b16 %v302
        %v820 = vunpack.c.h.b16 %v302
        %v821 = vunpack.c.l.b16 %v303
        %v822 = vunpack.c.h.b16 %v303
        %v823 = vpack.c.b16 %v575, %v567
        %v824 = vpack.c.b16 %v576, %v568
        %v825 = vpack.c.b16 %v577, %v569
        %v826 = vpack.c.b16 %v578, %v570
        %v827 = vpack.c.b16 %v579, %v571
        %v828 = vpack.c.b16 %v580, %v572
        %v829 = vpack.c.b16 %v581, %v573
        %v830 = vpack.c.b16 %v582, %v574
        %v831 = vpack.c.b16 %v591, %v583
        %v832 = vpack.c.b16 %v592, %v584
        %v833 = vpack.c.b16 %v593, %v585
        %v834 = vpack.c.b16 %v594, %v586
        %v835 = vpack.c.b16 %v595, %v587
        %v836 = vpack.c.b16 %v596, %v588
        %v837 = vpack.c.b16 %v597, %v589
        %v838 = vpack.c.b16 %v598, %v590
        %v839 = vpack.c.b16 %v607, %v599
        %v840 = vpack.c.b16 %v608, %v600
        %v841 = vpack.c.b16 %v609, %v601
        %v842 = vpack.c.b16 %v610, %v602
        %v843 = vpack.c.b16 %v611, %v603
        %v844 = vpack.c.b16 %v612, %v604
        %v845 = vpack.c.b16 %v613, %v605
        %v846 = vpack.c.b16 %v614, %v606
        %v847 = vpack.c.b16 %v623, %v615
        %v848 = vpack.c.b16 %v624, %v616
        %v849 = vpack.c.b16 %v625, %v617
        %v850 = vpack.c.b16 %v626, %v618
        %v851 = vpack.c.b16 %v627, %v619
        %v852 = vpack.c.b16 %v628, %v620
        %v853 = vpack.c.b16 %v629, %v621
        %v854 = vpack.c.b16 %v630, %v622
        %v855 = vpack.c.b16 %v639, %v631
        %v856 = vpack.c.b16 %v640, %v632
        %v857 = vpack.c.b16 %v641, %v633
        %v858 = vpack.c.b16 %v642, %v634
        %v859 = vpack.c.b16 %v643, %v635
        %v860 = vpack.c.b16 %v644, %v636
        %v861 = vpack.c.b16 %v645, %v637
        %v862 = vpack.c.b16 %v646, %v638
        %v863 = vpack.c.b16 %v655, %v647
        %v864 = vpack.c.b16 %v656, %v648
        %v865 = vpack.c.b16 %v657, %v649
        %v866 = vpack.c.b16 %v658, %v650
        %v867 = vpack.c.b16 %v659, %v651
        %v868 = vpack.c.b16 %v660, %v652
        %v869 = vpack.c.b16 %v661, %v653
        %v870 = vpack.c.b16 %v662, %v654
        %v871 = vpack.c.b16 %v671, %v663
        %v872 = vpack.c.b16 %v672, %v664
        %v873 = vpack.c.b16 %v673, %v665
        %v874 = vpack.c.b16 %v674, %v666
        %v875 = vpack.c.b16 %v675, %v667
        %v876 = vpack.c.b16 %v676, %v668
        %v877 = vpack.c.b16 %v677, %v669
        %v878 = vpack.c.b16 %v678, %v670
        %v879 = vpack.c.b16 %v687, %v679
        %v880 = vpack.c.b16 %v688, %v680
        %v881 = vpack.c.b16 %v689, %v681
        %v882 = vpack.c.b16 %v690, %v682
        %v883 = vpack.c.b16 %v691, %v683
        %v884 = vpack.c.b16 %v692, %v684
        %v885 = vpack.c.b16 %v693, %v685
        %v886 = vpack.c.b16 %v694, %v686
        %v887 = vpack.c.b16 %v703, %v695
        %v888 = vpack.c.b16 %v704, %v696
        %v889 = vpack.c.b16 %v705, %v697
        %v890 = vpack.c.b16 %v706, %v698
        %v891 = vpack.c.b16 %v707, %v699
        %v892 = vpack.c.b16 %v708, %v700
        %v893 = vpack.c.b16 %v709, %v701
        %v894 = vpack.c.b16 %v710, %v702
        %v895 = vpack.c.b16 %v719, %v711
        %v896 = vpack.c.b16 %v720, %v712
        %v897 = vpack.c.b16 %v721, %v713
        %v898 = vpack.c.b16 %v722, %v714
        %v899 = vpack.c.b16 %v723, %v715
        %v900 = vpack.c.b16 %v724, %v716
        %v901 = vpack.c.b16 %v725, %v717
        %v902 = vpack.c.b16 %v726, %v718
        %v903 = vpack.c.b16 %v735, %v727
        %v904 = vpack.c.b16 %v736, %v728
        %v905 = vpack.c.b16 %v737, %v729
        %v906 = vpack.c.b16 %v738, %v730
        %v907 = vpack.c.b16 %v739, %v731
        %v908 = vpack.c.b16 %v740, %v732
        %v909 = vpack.c.b16 %v741, %v733
        %v910 = vpack.c.b16 %v742, %v734
        %v911 = vpack.c.b16 %v751, %v743
        %v912 = vpack.c.b16 %v752, %v744
        %v913 = vpack.c.b16 %v753, %v745
        %v914 = vpack.c.b16 %v754, %v746
        %v915 = vpack.c.b16 %v755, %v747
        %v916 = vpack.c.b16 %v756, %v748
        %v917 = vpack.c.b16 %v757, %v749
        %v918 = vpack.c.b16 %v758, %v750
        %v919 = vpack.c.b16 %v767, %v759
        %v920 = vpack.c.b16 %v768, %v760
        %v921 = vpack.c.b16 %v769, %v761
        %v922 = vpack.c.b16 %v770, %v762
        %v923 = vpack.c.b16 %v771, %v763
        %v924 = vpack.c.b16 %v772, %v764
        %v925 = vpack.c.b16 %v773, %v765
        %v926 = vpack.c.b16 %v774, %v766
        %v927 = vpack.c.b16 %v783, %v775
        %v928 = vpack.c.b16 %v784, %v776
        %v929 = vpack.c.b16 %v785, %v777
        %v930 = vpack.c.b16 %v786, %v778
        %v931 = vpack.c.b16 %v787, %v779
        %v932 = vpack.c.b16 %v788, %v780
        %v933 = vpack.c.b16 %v789, %v781
        %v934 = vpack.c.b16 %v790, %v782
        %v935 = vpack.c.b16 %v799, %v791
        %v936 = vpack.c.b16 %v800, %v792
        %v937 = vpack.c.b16 %v801, %v793
        %v938 = vpack.c.b16 %v802, %v794
        %v939 = vpack.c.b16 %v803, %v795
        %v940 = vpack.c.b16 %v804, %v796
        %v941 = vpack.c.b16 %v805, %v797
        %v942 = vpack.c.b16 %v806, %v798
        %v943 = vpack.c.b16 %v815, %v807
        %v944 = vpack.c.b16 %v816, %v808
        %v945 = vpack.c.b16 %v817, %v809
        %v946 = vpack.c.b16 %v818, %v810
        %v947 = vpack.c.b16 %v819, %v811
        %v948 = vpack.c.b16 %v820, %v812
        %v949 = vpack.c.b16 %v821, %v813
        %v950 = vpack.c.b16 %v822, %v814
        %v1207 = vunpack.c.l.b16 %v304
        %v1208 = vunpack.c.l.b16 %v305
        %v1209 = vunpack.c.l.b16 %v306
        %v1210 = vunpack.c.l.b16 %v307
        %v1211 = vunpack.c.l.b16 %v308
        %v1212 = vunpack.c.l.b16 %v309
        %v1213 = vunpack.c.l.b16 %v310
        %v1214 = vunpack.c.l.b16 %v311
        %v1215 = vunpack.c.l.b16 %v312
        %v1216 = vunpack.c.l.b16 %v313
        %v1217 = vunpack.c.l.b16 %v314
        %v1218 = vunpack.c.l.b16 %v315
        %v1219 = vunpack.c.l.b16 %v316
        %v1220 = vunpack.c.l.b16 %v317
        %v1221 = vunpack.c.l.b16 %v318
        %v1222 = vunpack.c.l.b16 %v319
        %v1223 = vunpack.c.l.b16 %v320
        %v1224 = vunpack.c.l.b16 %v321
        %v1225 = vunpack.c.l.b16 %v322
        %v1226 = vunpack.c.l.b16 %v323
        %v1227 = vunpack.c.l.b16 %v324
        %v1228 = vunpack.c.l.b16 %v325
        %v1229 = vunpack.c.l.b16 %v326
        %v1230 = vunpack.c.l.b16 %v327
        %v1231 = vunpack.c.l.b16 %v328
        %v1232 = vunpack.c.l.b16 %v329
        %v1233 = vunpack.c.l.b16 %v330
        %v1234 = vunpack.c.l.b16 %v331
        %v1235 = vunpack.c.l.b16 %v332
        %v1236 = vunpack.c.l.b16 %v333
        %v1237 = vunpack.c.l.b16 %v334
        %v1238 = vunpack.c.l.b16 %v335
        %v1239 = vunpack.c.l.b16 %v336
        %v1240 = vunpack.c.l.b16 %v337
        %v1241 = vunpack.c.l.b16 %v338
        %v1242 = vunpack.c.l.b16 %v339
        %v1243 = vunpack.c.l.b16 %v340
        %v1244 = vunpack.c.l.b16 %v341
        %v1245 = vunpack.c.l.b16 %v342
        %v1246 = vunpack.c.l.b16 %v343
        %v1247 = vunpack.c.l.b16 %v344
        %v1248 = vunpack.c.l.b16 %v345
        %v1249 = vunpack.c.l.b16 %v346
        %v1250 = vunpack.c.l.b16 %v347
        %v1251 = vunpack.c.l.b16 %v348
        %v1252 = vunpack.c.l.b16 %v349
        %v1253 = vunpack.c.l.b16 %v350
        %v1254 = vunpack.c.l.b16 %v351
        %v1255 = vunpack.c.l.b16 %v352
        %v1256 = vunpack.c.l.b16 %v353
        %v1257 = vunpack.c.l.b16 %v354
        %v1258 = vunpack.c.l.b16 %v355
        %v1259 = vunpack.c.l.b16 %v356
        %v1260 = vunpack.c.l.b16 %v357
        %v1261 = vunpack.c.l.b16 %v358
        %v1262 = vunpack.c.l.b16 %v359
        %v1263 = vunpack.c.l.b16 %v360
        %v1264 = vunpack.c.l.b16 %v361
        %v1265 = vunpack.c.l.b16 %v362
        %v1266 = vunpack.c.l.b16 %v363
        %v1267 = vunpack.c.l.b16 %v364
        %v1268 = vunpack.c.l.b16 %v365
        %v1269 = vunpack.c.l.b16 %v366
        %v1270 = vunpack.c.l.b16 %v367
        %v1271 = vunpack.c.l.b16 %v368
        %v1272 = vunpack.c.l.b16 %v369
        %v1273 = vunpack.c.l.b16 %v370
        %v1274 = vunpack.c.l.b16 %v371
        %v1275 = vunpack.c.l.b16 %v372
        %v1276 = vunpack.c.l.b16 %v373
        %v1277 = vunpack.c.l.b16 %v374
        %v1278 = vunpack.c.l.b16 %v375
        %v1279 = vunpack.c.l.b16 %v376
        %v1280 = vunpack.c.l.b16 %v377
        %v1281 = vunpack.c.l.b16 %v378
        %v1282 = vunpack.c.l.b16 %v379
        %v1283 = vunpack.c.l.b16 %v380
        %v1284 = vunpack.c.l.b16 %v381
        %v1285 = vunpack.c.l.b16 %v382
        %v1286 = vunpack.c.l.b16 %v383
        %v1287 = vunpack.c.l.b16 %v384
        %v1288 = vunpack.c.l.b16 %v385
        %v1289 = vunpack.c.l.b16 %v386
        %v1290 = vunpack.c.l.b16 %v387
        %v1291 = vunpack.c.l.b16 %v388
        %v1292 = vunpack.c.l.b16 %v389
        %v1293 = vunpack.c.l.b16 %v390
        %v1294 = vunpack.c.l.b16 %v391
        %v1295 = vunpack.c.l.b16 %v392
        %v1296 = vunpack.c.l.b16 %v393
        %v1297 = vunpack.c.l.b16 %v394
        %v1298 = vunpack.c.l.b16 %v395
        %v1299 = vunpack.c.l.b16 %v396
        %v1300 = vunpack.c.l.b16 %v397
        %v1301 = vunpack.c.l.b16 %v398
        %v1302 = vunpack.c.l.b16 %v399
        %v1303 = vunpack.c.l.b16 %v400
        %v1304 = vunpack.c.l.b16 %v401
        %v1305 = vunpack.c.l.b16 %v402
        %v1306 = vunpack.c.l.b16 %v403
        %v1307 = vunpack.c.l.b16 %v404
        %v1308 = vunpack.c.l.b16 %v405
        %v1309 = vunpack.c.l.b16 %v406
        %v1310 = vunpack.c.l.b16 %v407
        %v1311 = vunpack.c.l.b16 %v408
        %v1312 = vunpack.c.l.b16 %v409
        %v1313 = vunpack.c.l.b16 %v410
        %v1314 = vunpack.c.l.b16 %v411
        %v1315 = vunpack.c.l.b16 %v412
        %v1316 = vunpack.c.l.b16 %v413
        %v1317 = vunpack.c.l.b16 %v414
        %v1318 = vunpack.c.l.b16 %v415
        %v1319 = vunpack.c.l.b16 %v416
        %v1320 = vunpack.c.l.b16 %v417
        %v1321 = vunpack.c.l.b16 %v418
        %v1322 = vunpack.c.l.b16 %v419
        %v1323 = vunpack.c.l.b16 %v420
        %v1324 = vunpack.c.l.b16 %v421
        %v1325 = vunpack.c.l.b16 %v422
        %v1326 = vunpack.c.l.b16 %v423
        %v1327 = vunpack.c.l.b16 %v424
        %v1328 = vunpack.c.l.b16 %v425
        %v1329 = vunpack.c.l.b16 %v426
        %v1330 = vunpack.c.l.b16 %v427
        %v1331 = vunpack.c.l.b16 %v428
        %v1332 = vunpack.c.l.b16 %v429
        %v1333 = vunpack.c.l.b16 %v430
        %v1334 = vunpack.c.l.b16 %v431
        %v1335 = vpack.c.b16 %v1208, %v1207
        %v1336 = vpack.c.b16 %v1210, %v1209
        %v1337 = vpack.c.b16 %v1212, %v1211
        %v1338 = vpack.c.b16 %v1214, %v1213
        %v1339 = vpack.c.b16 %v1216, %v1215
        %v1340 = vpack.c.b16 %v1218, %v1217
        %v1341 = vpack.c.b16 %v1220, %v1219
        %v1342 = vpack.c.b16 %v1222, %v1221
        %v1343 = vpack.c.b16 %v1224, %v1223
        %v1344 = vpack.c.b16 %v1226, %v1225
        %v1345 = vpack.c.b16 %v1228, %v1227
        %v1346 = vpack.c.b16 %v1230, %v1229
        %v1347 = vpack.c.b16 %v1232, %v1231
        %v1348 = vpack.c.b16 %v1234, %v1233
        %v1349 = vpack.c.b16 %v1236, %v1235
        %v1350 = vpack.c.b16 %v1238, %v1237
        %v1351 = vpack.c.b16 %v1240, %v1239
        %v1352 = vpack.c.b16 %v1242, %v1241
        %v1353 = vpack.c.b16 %v1244, %v1243
        %v1354 = vpack.c.b16 %v1246, %v1245
        %v1355 = vpack.c.b16 %v1248, %v1247
        %v1356 = vpack.c.b16 %v1250, %v1249
        %v1357 = vpack.c.b16 %v1252, %v1251
        %v1358 = vpack.c.b16 %v1254, %v1253
        %v1359 = vpack.c.b16 %v1256, %v1255
        %v1360 = vpack.c.b16 %v1258, %v1257
        %v1361 = vpack.c.b16 %v1260, %v1259
        %v1362 = vpack.c.b16 %v1262, %v1261
        %v1363 = vpack.c.b16 %v1264, %v1263
        %v1364 = vpack.c.b16 %v1266, %v1265
        %v1365 = vpack.c.b16 %v1268, %v1267
        %v1366 = vpack.c.b16 %v1270, %v1269
        %v1367 = vpack.c.b16 %v1272, %v1271
        %v1368 = vpack.c.b16 %v1274, %v1273
        %v1369 = vpack.c.b16 %v1276, %v1275
        %v1370 = vpack.c.b16 %v1278, %v1277
        %v1371 = vpack.c.b16 %v1280, %v1279
        %v1372 = vpack.c.b16 %v1282, %v1281
        %v1373 = vpack.c.b16 %v1284, %v1283
        %v1374 = vpack.c.b16 %v1286, %v1285
        %v1375 = vpack.c.b16 %v1288, %v1287
        %v1376 = vpack.c.b16 %v1290, %v1289
        %v1377 = vpack.c.b16 %v1292, %v1291
        %v1378 = vpack.c.b16 %v1294, %v1293
        %v1379 = vpack.c.b16 %v1296, %v1295
        %v1380 = vpack.c.b16 %v1298, %v1297
        %v1381 = vpack.c.b16 %v1300, %v1299
        %v1382 = vpack.c.b16 %v1302, %v1301
        %v1383 = vpack.c.b16 %v1304, %v1303
        %v1384 = vpack.c.b16 %v1306, %v1305
        %v1385 = vpack.c.b16 %v1308, %v1307
        %v1386 = vpack.c.b16 %v1310, %v1309
        %v1387 = vpack.c.b16 %v1312, %v1311
        %v1388 = vpack.c.b16 %v1314, %v1313
        %v1389 = vpack.c.b16 %v1316, %v1315
        %v1390 = vpack.c.b16 %v1318, %v1317
        %v1391 = vpack.c.b16 %v1320, %v1319
        %v1392 = vpack.c.b16 %v1322, %v1321
        %v1393 = vpack.c.b16 %v1324, %v1323
        %v1394 = vpack.c.b16 %v1326, %v1325
        %v1395 = vpack.c.b16 %v1328, %v1327
        %v1396 = vpack.c.b16 %v1330, %v1329
        %v1397 = vpack.c.b16 %v1332, %v1331
        %v1398 = vpack.c.b16 %v1334, %v1333
        %1463 = vmatprep.subr.bf16.mxu0 0
        %1464 = vmatpush1.bf16.msra.mxu0 %v1335
        %1465 = vmatprep.subr.bf16.mxu0 0
        %1466 = vmatpush1.bf16.msra.mxu0 %v1336
        %1467 = vmatprep.subr.bf16.mxu0 0
        %1468 = vmatpush1.bf16.msra.mxu0 %v1337
        %1469 = vmatprep.subr.bf16.mxu0 0
        %1470 = vmatpush1.bf16.msra.mxu0 %v1338
        %1471 = vmatprep.subr.bf16.mxu0 0
        %1472 = vmatpush1.bf16.msra.mxu0 %v1339
        %1473 = vmatprep.subr.bf16.mxu0 0
        %1474 = vmatpush1.bf16.msra.mxu0 %v1340
        %1475 = vmatprep.subr.bf16.mxu0 0
        %1476 = vmatpush1.bf16.msra.mxu0 %v1341
        %1477 = vmatprep.subr.bf16.mxu0 0
        %1478 = vmatpush1.bf16.msra.mxu0 %v1342
        %1479 = vmatprep.subr.bf16.mxu0 0
        %1480 = vmatpush1.bf16.msra.mxu0 %v1343
        %1481 = vmatprep.subr.bf16.mxu0 0
        %1482 = vmatpush1.bf16.msra.mxu0 %v1344
        %1483 = vmatprep.subr.bf16.mxu0 0
        %1484 = vmatpush1.bf16.msra.mxu0 %v1345
        %1485 = vmatprep.subr.bf16.mxu0 0
        %1486 = vmatpush1.bf16.msra.mxu0 %v1346
        %1487 = vmatprep.subr.bf16.mxu0 0
        %1488 = vmatpush1.bf16.msra.mxu0 %v1347
        %1489 = vmatprep.subr.bf16.mxu0 0
        %1490 = vmatpush1.bf16.msra.mxu0 %v1348
        %1491 = vmatprep.subr.bf16.mxu0 0
        %1492 = vmatpush1.bf16.msra.mxu0 %v1349
        %1493 = vmatprep.subr.bf16.mxu0 0
        %1494 = vmatpush1.bf16.msra.mxu0 %v1350
        %1495 = vmatprep.mubr.bf16.mxu0 %v824
        %1496 = vmatmul.mubr.bf16.gmra.mrb[0].mxu0 %v823
        %v1497 = vpop.f32.mrb[0].mxu0
        %v1498 = vadd.f32 %v437, %v1497
        %v1499 = vpop.f32.mrb[0].mxu0
        %v1500 = vpop.f32.mrb[0].mxu0
        %v1501 = vadd.f32 %v437, %v1500
        %v1502 = vpop.f32.mrb[0].mxu0
        %1503 = vmatprep.mubr.bf16.mxu0 %v832
        %1504 = vmatmul.mubr.bf16.gmra.mrb[0].mxu0 %v831
        %v1505 = vpop.f32.mrb[0].mxu0
        %v1506 = vadd.f32 %v437, %v1505
        %v1507 = vpop.f32.mrb[0].mxu0
        %v1508 = vpop.f32.mrb[0].mxu0
        %v1509 = vadd.f32 %v437, %v1508
        %v1510 = vpop.f32.mrb[0].mxu0
        %1511 = vmatprep.mubr.bf16.mxu0 %v840
        %1512 = vmatmul.mubr.bf16.gmra.mrb[0].mxu0 %v839
        %v1513 = vpop.f32.mrb[0].mxu0
        %v1514 = vadd.f32 %v437, %v1513
        %v1515 = vpop.f32.mrb[0].mxu0
        %v1516 = vpop.f32.mrb[0].mxu0
        %v1517 = vadd.f32 %v437, %v1516
        %v1518 = vpop.f32.mrb[0].mxu0
        %1519 = vmatprep.mubr.bf16.mxu0 %v848
        %1520 = vmatmul.mubr.bf16.gmra.mrb[0].mxu0 %v847
        %v1521 = vpop.f32.mrb[0].mxu0
        %v1522 = vadd.f32 %v437, %v1521
        %v1523 = vpop.f32.mrb[0].mxu0
        %v1524 = vpop.f32.mrb[0].mxu0
        %v1525 = vadd.f32 %v437, %v1524
        %v1526 = vpop.f32.mrb[0].mxu0
        %1527 = vmatprep.mubr.bf16.mxu0 %v856
        %1528 = vmatmul.mubr.bf16.gmra.mrb[0].mxu0 %v855
        %v1529 = vpop.f32.mrb[0].mxu0
        %v1530 = vadd.f32 %v437, %v1529
        %v1531 = vpop.f32.mrb[0].mxu0
        %v1532 = vpop.f32.mrb[0].mxu0
        %v1533 = vadd.f32 %v437, %v1532
        %v1534 = vpop.f32.mrb[0].mxu0
        %1535 = vmatprep.mubr.bf16.mxu0 %v864
        %1536 = vmatmul.mubr.bf16.gmra.mrb[0].mxu0 %v863
        %v1537 = vpop.f32.mrb[0].mxu0
        %v1538 = vadd.f32 %v437, %v1537
        %v1539 = vpop.f32.mrb[0].mxu0
        %v1540 = vpop.f32.mrb[0].mxu0
        %v1541 = vadd.f32 %v437, %v1540
        %v1542 = vpop.f32.mrb[0].mxu0
        %1543 = vmatprep.mubr.bf16.mxu0 %v872
        %1544 = vmatmul.mubr.bf16.gmra.mrb[0].mxu0 %v871
        %v1545 = vpop.f32.mrb[0].mxu0
        %v1546 = vadd.f32 %v437, %v1545
        %v1547 = vpop.f32.mrb[0].mxu0
        %v1548 = vpop.f32.mrb[0].mxu0
        %v1549 = vadd.f32 %v437, %v1548
        %v1550 = vpop.f32.mrb[0].mxu0
        %1551 = vmatprep.mubr.bf16.mxu0 %v880
        %1552 = vmatmul.mubr.bf16.gmra.mrb[0].mxu0 %v879
        %v1553 = vpop.f32.mrb[0].mxu0
        %v1554 = vadd.f32 %v437, %v1553
        %v1555 = vpop.f32.mrb[0].mxu0
        %v1556 = vpop.f32.mrb[0].mxu0
        %v1557 = vadd.f32 %v437, %v1556
        %v1558 = vpop.f32.mrb[0].mxu0
        %1559 = vmatprep.mubr.bf16.mxu0 %v888
        %1560 = vmatmul.mubr.bf16.gmra.mrb[0].mxu0 %v887
        %v1561 = vpop.f32.mrb[0].mxu0
        %v1562 = vadd.f32 %v437, %v1561
        %v1563 = vpop.f32.mrb[0].mxu0
        %v1564 = vpop.f32.mrb[0].mxu0
        %v1565 = vadd.f32 %v437, %v1564
        %v1566 = vpop.f32.mrb[0].mxu0
        %1567 = vmatprep.mubr.bf16.mxu0 %v896
        %1568 = vmatmul.mubr.bf16.gmra.mrb[0].mxu0 %v895
        %v1569 = vpop.f32.mrb[0].mxu0
        %v1570 = vadd.f32 %v437, %v1569
        %v1571 = vpop.f32.mrb[0].mxu0
        %v1572 = vpop.f32.mrb[0].mxu0
        %v1573 = vadd.f32 %v437, %v1572
        %v1574 = vpop.f32.mrb[0].mxu0
        %1575 = vmatprep.mubr.bf16.mxu0 %v904
        %1576 = vmatmul.mubr.bf16.gmra.mrb[0].mxu0 %v903
        %v1577 = vpop.f32.mrb[0].mxu0
        %v1578 = vadd.f32 %v437, %v1577
        %v1579 = vpop.f32.mrb[0].mxu0
        %v1580 = vpop.f32.mrb[0].mxu0
        %v1581 = vadd.f32 %v437, %v1580
        %v1582 = vpop.f32.mrb[0].mxu0
        %1583 = vmatprep.mubr.bf16.mxu0 %v912
        %1584 = vmatmul.mubr.bf16.gmra.mrb[0].mxu0 %v911
        %v1585 = vpop.f32.mrb[0].mxu0
        %v1586 = vadd.f32 %v437, %v1585
        %v1587 = vpop.f32.mrb[0].mxu0
        %v1588 = vpop.f32.mrb[0].mxu0
        %v1589 = vadd.f32 %v437, %v1588
        %v1590 = vpop.f32.mrb[0].mxu0
        %1591 = vmatprep.mubr.bf16.mxu0 %v920
        %1592 = vmatmul.mubr.bf16.gmra.mrb[0].mxu0 %v919
        %v1593 = vpop.f32.mrb[0].mxu0
        %v1594 = vadd.f32 %v437, %v1593
        %v1595 = vpop.f32.mrb[0].mxu0
        %v1596 = vpop.f32.mrb[0].mxu0
        %v1597 = vadd.f32 %v437, %v1596
        %v1598 = vpop.f32.mrb[0].mxu0
        %1599 = vmatprep.mubr.bf16.mxu0 %v928
        %1600 = vmatmul.mubr.bf16.gmra.mrb[0].mxu0 %v927
        %v1601 = vpop.f32.mrb[0].mxu0
        %v1602 = vadd.f32 %v437, %v1601
        %v1603 = vpop.f32.mrb[0].mxu0
        %v1604 = vpop.f32.mrb[0].mxu0
        %v1605 = vadd.f32 %v437, %v1604
        %v1606 = vpop.f32.mrb[0].mxu0
        %1607 = vmatprep.mubr.bf16.mxu0 %v936
        %1608 = vmatmul.mubr.bf16.gmra.mrb[0].mxu0 %v935
        %v1609 = vpop.f32.mrb[0].mxu0
        %v1610 = vadd.f32 %v437, %v1609
        %v1611 = vpop.f32.mrb[0].mxu0
        %v1612 = vpop.f32.mrb[0].mxu0
        %v1613 = vadd.f32 %v437, %v1612
        %v1614 = vpop.f32.mrb[0].mxu0
        %1615 = vmatprep.mubr.bf16.mxu0 %v944
        %1616 = vmatmul.mubr.bf16.gmra.mrb[0].mxu0 %v943
        %v1617 = vpop.f32.mrb[0].mxu0
        %v1618 = vadd.f32 %v437, %v1617
        %v1619 = vpop.f32.mrb[0].mxu0
        %v1620 = vpop.f32.mrb[0].mxu0
        %v1621 = vadd.f32 %v437, %v1620
        %v1622 = vpop.f32.mrb[0].mxu0
        %1623 = vdwg.mxu0
        %1624 = vmatprep.subr.bf16.mxu0 0
        %1625 = vmatpush1.bf16.msra.mxu0 %v1351
        %1626 = vmatprep.subr.bf16.mxu0 0
        %1627 = vmatpush1.bf16.msra.mxu0 %v1352
        %1628 = vmatprep.subr.bf16.mxu0 0
        %1629 = vmatpush1.bf16.msra.mxu0 %v1353
        %1630 = vmatprep.subr.bf16.mxu0 0
        %1631 = vmatpush1.bf16.msra.mxu0 %v1354
        %1632 = vmatprep.subr.bf16.mxu0 0
        %1633 = vmatpush1.bf16.msra.mxu0 %v1355
        %1634 = vmatprep.subr.bf16.mxu0 0
        %1635 = vmatpush1.bf16.msra.mxu0 %v1356
        %1636 = vmatprep.subr.bf16.mxu0 0
        %1637 = vmatpush1.bf16.msra.mxu0 %v1357
        %1638 = vmatprep.subr.bf16.mxu0 0
        %1639 = vmatpush1.bf16.msra.mxu0 %v1358
        %1640 = vmatprep.subr.bf16.mxu0 0
        %1641 = vmatpush1.bf16.msra.mxu0 %v1359
        %1642 = vmatprep.subr.bf16.mxu0 0
        %1643 = vmatpush1.bf16.msra.mxu0 %v1360
        %1644 = vmatprep.subr.bf16.mxu0 0
        %1645 = vmatpush1.bf16.msra.mxu0 %v1361
        %1646 = vmatprep.subr.bf16.mxu0 0
        %1647 = vmatpush1.bf16.msra.mxu0 %v1362
        %1648 = vmatprep.subr.bf16.mxu0 0
        %1649 = vmatpush1.bf16.msra.mxu0 %v1363
        %1650 = vmatprep.subr.bf16.mxu0 0
        %1651 = vmatpush1.bf16.msra.mxu0 %v1364
        %1652 = vmatprep.subr.bf16.mxu0 0
        %1653 = vmatpush1.bf16.msra.mxu0 %v1365
        %1654 = vmatprep.subr.bf16.mxu0 0
        %1655 = vmatpush1.bf16.msra.mxu0 %v1366
        %1656 = vmatprep.mubr.bf16.mxu0 %v826
        %1657 = vmatmul.mubr.bf16.gmra.mrb[0].mxu0 %v825
        %v1658 = vpop.f32.mrb[0].mxu0
        %v1659 = vadd.f32 %v1498, %v1658
        %v1660 = vpop.f32.mrb[0].mxu0
        %v1661 = vpop.f32.mrb[0].mxu0
        %v1662 = vadd.f32 %v1501, %v1661
        %v1663 = vpop.f32.mrb[0].mxu0
        %1664 = vmatprep.mubr.bf16.mxu0 %v834
        %1665 = vmatmul.mubr.bf16.gmra.mrb[0].mxu0 %v833
        %v1666 = vpop.f32.mrb[0].mxu0
        %v1667 = vadd.f32 %v1506, %v1666
        %v1668 = vpop.f32.mrb[0].mxu0
        %v1669 = vpop.f32.mrb[0].mxu0
        %v1670 = vadd.f32 %v1509, %v1669
        %v1671 = vpop.f32.mrb[0].mxu0
        %1672 = vmatprep.mubr.bf16.mxu0 %v842
        %1673 = vmatmul.mubr.bf16.gmra.mrb[0].mxu0 %v841
        %v1674 = vpop.f32.mrb[0].mxu0
        %v1675 = vadd.f32 %v1514, %v1674
        %v1676 = vpop.f32.mrb[0].mxu0
        %v1677 = vpop.f32.mrb[0].mxu0
        %v1678 = vadd.f32 %v1517, %v1677
        %v1679 = vpop.f32.mrb[0].mxu0
        %1680 = vmatprep.mubr.bf16.mxu0 %v850
        %1681 = vmatmul.mubr.bf16.gmra.mrb[0].mxu0 %v849
        %v1682 = vpop.f32.mrb[0].mxu0
        %v1683 = vadd.f32 %v1522, %v1682
        %v1684 = vpop.f32.mrb[0].mxu0
        %v1685 = vpop.f32.mrb[0].mxu0
        %v1686 = vadd.f32 %v1525, %v1685
        %v1687 = vpop.f32.mrb[0].mxu0
        %1688 = vmatprep.mubr.bf16.mxu0 %v858
        %1689 = vmatmul.mubr.bf16.gmra.mrb[0].mxu0 %v857
        %v1690 = vpop.f32.mrb[0].mxu0
        %v1691 = vadd.f32 %v1530, %v1690
        %v1692 = vpop.f32.mrb[0].mxu0
        %v1693 = vpop.f32.mrb[0].mxu0
        %v1694 = vadd.f32 %v1533, %v1693
        %v1695 = vpop.f32.mrb[0].mxu0
        %1696 = vmatprep.mubr.bf16.mxu0 %v866
        %1697 = vmatmul.mubr.bf16.gmra.mrb[0].mxu0 %v865
        %v1698 = vpop.f32.mrb[0].mxu0
        %v1699 = vadd.f32 %v1538, %v1698
        %v1700 = vpop.f32.mrb[0].mxu0
        %v1701 = vpop.f32.mrb[0].mxu0
        %v1702 = vadd.f32 %v1541, %v1701
        %v1703 = vpop.f32.mrb[0].mxu0
        %1704 = vmatprep.mubr.bf16.mxu0 %v874
        %1705 = vmatmul.mubr.bf16.gmra.mrb[0].mxu0 %v873
        %v1706 = vpop.f32.mrb[0].mxu0
        %v1707 = vadd.f32 %v1546, %v1706
        %v1708 = vpop.f32.mrb[0].mxu0
        %v1709 = vpop.f32.mrb[0].mxu0
        %v1710 = vadd.f32 %v1549, %v1709
        %v1711 = vpop.f32.mrb[0].mxu0
        %1712 = vmatprep.mubr.bf16.mxu0 %v882
        %1713 = vmatmul.mubr.bf16.gmra.mrb[0].mxu0 %v881
        %v1714 = vpop.f32.mrb[0].mxu0
        %v1715 = vadd.f32 %v1554, %v1714
        %v1716 = vpop.f32.mrb[0].mxu0
        %v1717 = vpop.f32.mrb[0].mxu0
        %v1718 = vadd.f32 %v1557, %v1717
        %v1719 = vpop.f32.mrb[0].mxu0
        %1720 = vmatprep.mubr.bf16.mxu0 %v890
        %1721 = vmatmul.mubr.bf16.gmra.mrb[0].mxu0 %v889
        %v1722 = vpop.f32.mrb[0].mxu0
        %v1723 = vadd.f32 %v1562, %v1722
        %v1724 = vpop.f32.mrb[0].mxu0
        %v1725 = vpop.f32.mrb[0].mxu0
        %v1726 = vadd.f32 %v1565, %v1725
        %v1727 = vpop.f32.mrb[0].mxu0
        %1728 = vmatprep.mubr.bf16.mxu0 %v898
        %1729 = vmatmul.mubr.bf16.gmra.mrb[0].mxu0 %v897
        %v1730 = vpop.f32.mrb[0].mxu0
        %v1731 = vadd.f32 %v1570, %v1730
        %v1732 = vpop.f32.mrb[0].mxu0
        %v1733 = vpop.f32.mrb[0].mxu0
        %v1734 = vadd.f32 %v1573, %v1733
        %v1735 = vpop.f32.mrb[0].mxu0
        %1736 = vmatprep.mubr.bf16.mxu0 %v906
        %1737 = vmatmul.mubr.bf16.gmra.mrb[0].mxu0 %v905
        %v1738 = vpop.f32.mrb[0].mxu0
        %v1739 = vadd.f32 %v1578, %v1738
        %v1740 = vpop.f32.mrb[0].mxu0
        %v1741 = vpop.f32.mrb[0].mxu0
        %v1742 = vadd.f32 %v1581, %v1741
        %v1743 = vpop.f32.mrb[0].mxu0
        %1744 = vmatprep.mubr.bf16.mxu0 %v914
        %1745 = vmatmul.mubr.bf16.gmra.mrb[0].mxu0 %v913
        %v1746 = vpop.f32.mrb[0].mxu0
        %v1747 = vadd.f32 %v1586, %v1746
        %v1748 = vpop.f32.mrb[0].mxu0
        %v1749 = vpop.f32.mrb[0].mxu0
        %v1750 = vadd.f32 %v1589, %v1749
        %v1751 = vpop.f32.mrb[0].mxu0
        %1752 = vmatprep.mubr.bf16.mxu0 %v922
        %1753 = vmatmul.mubr.bf16.gmra.mrb[0].mxu0 %v921
        %v1754 = vpop.f32.mrb[0].mxu0
        %v1755 = vadd.f32 %v1594, %v1754
        %v1756 = vpop.f32.mrb[0].mxu0
        %v1757 = vpop.f32.mrb[0].mxu0
        %v1758 = vadd.f32 %v1597, %v1757
        %v1759 = vpop.f32.mrb[0].mxu0
        %1760 = vmatprep.mubr.bf16.mxu0 %v930
        %1761 = vmatmul.mubr.bf16.gmra.mrb[0].mxu0 %v929
        %v1762 = vpop.f32.mrb[0].mxu0
        %v1763 = vadd.f32 %v1602, %v1762
        %v1764 = vpop.f32.mrb[0].mxu0
        %v1765 = vpop.f32.mrb[0].mxu0
        %v1766 = vadd.f32 %v1605, %v1765
        %v1767 = vpop.f32.mrb[0].mxu0
        %1768 = vmatprep.mubr.bf16.mxu0 %v938
        %1769 = vmatmul.mubr.bf16.gmra.mrb[0].mxu0 %v937
        %v1770 = vpop.f32.mrb[0].mxu0
        %v1771 = vadd.f32 %v1610, %v1770
        %v1772 = vpop.f32.mrb[0].mxu0
        %v1773 = vpop.f32.mrb[0].mxu0
        %v1774 = vadd.f32 %v1613, %v1773
        %v1775 = vpop.f32.mrb[0].mxu0
        %1776 = vmatprep.mubr.bf16.mxu0 %v946
        %1777 = vmatmul.mubr.bf16.gmra.mrb[0].mxu0 %v945
        %v1778 = vpop.f32.mrb[0].mxu0
        %v1779 = vadd.f32 %v1618, %v1778
        %v1780 = vpop.f32.mrb[0].mxu0
        %v1781 = vpop.f32.mrb[0].mxu0
        %v1782 = vadd.f32 %v1621, %v1781
        %v1783 = vpop.f32.mrb[0].mxu0
        %1784 = vdwg.mxu0
        %1785 = vmatprep.subr.bf16.mxu0 0
        %1786 = vmatpush1.bf16.msra.mxu0 %v1367
        %1787 = vmatprep.subr.bf16.mxu0 0
        %1788 = vmatpush1.bf16.msra.mxu0 %v1368
        %1789 = vmatprep.subr.bf16.mxu0 0
        %1790 = vmatpush1.bf16.msra.mxu0 %v1369
        %1791 = vmatprep.subr.bf16.mxu0 0
        %1792 = vmatpush1.bf16.msra.mxu0 %v1370
        %1793 = vmatprep.subr.bf16.mxu0 0
        %1794 = vmatpush1.bf16.msra.mxu0 %v1371
        %1795 = vmatprep.subr.bf16.mxu0 0
        %1796 = vmatpush1.bf16.msra.mxu0 %v1372
        %1797 = vmatprep.subr.bf16.mxu0 0
        %1798 = vmatpush1.bf16.msra.mxu0 %v1373
        %1799 = vmatprep.subr.bf16.mxu0 0
        %1800 = vmatpush1.bf16.msra.mxu0 %v1374
        %1801 = vmatprep.subr.bf16.mxu0 0
        %1802 = vmatpush1.bf16.msra.mxu0 %v1375
        %1803 = vmatprep.subr.bf16.mxu0 0
        %1804 = vmatpush1.bf16.msra.mxu0 %v1376
        %1805 = vmatprep.subr.bf16.mxu0 0
        %1806 = vmatpush1.bf16.msra.mxu0 %v1377
        %1807 = vmatprep.subr.bf16.mxu0 0
        %1808 = vmatpush1.bf16.msra.mxu0 %v1378
        %1809 = vmatprep.subr.bf16.mxu0 0
        %1810 = vmatpush1.bf16.msra.mxu0 %v1379
        %1811 = vmatprep.subr.bf16.mxu0 0
        %1812 = vmatpush1.bf16.msra.mxu0 %v1380
        %1813 = vmatprep.subr.bf16.mxu0 0
        %1814 = vmatpush1.bf16.msra.mxu0 %v1381
        %1815 = vmatprep.subr.bf16.mxu0 0
        %1816 = vmatpush1.bf16.msra.mxu0 %v1382
        %1817 = vmatprep.mubr.bf16.mxu0 %v828
        %1818 = vmatmul.mubr.bf16.gmra.mrb[0].mxu0 %v827
        %v1819 = vpop.f32.mrb[0].mxu0
        %v1820 = vadd.f32 %v1659, %v1819
        %v1821 = vpop.f32.mrb[0].mxu0
        %v1822 = vpop.f32.mrb[0].mxu0
        %v1823 = vadd.f32 %v1662, %v1822
        %v1824 = vpop.f32.mrb[0].mxu0
        %1825 = vmatprep.mubr.bf16.mxu0 %v836
        %1826 = vmatmul.mubr.bf16.gmra.mrb[0].mxu0 %v835
        %v1827 = vpop.f32.mrb[0].mxu0
        %v1828 = vadd.f32 %v1667, %v1827
        %v1829 = vpop.f32.mrb[0].mxu0
        %v1830 = vpop.f32.mrb[0].mxu0
        %v1831 = vadd.f32 %v1670, %v1830
        %v1832 = vpop.f32.mrb[0].mxu0
        %1833 = vmatprep.mubr.bf16.mxu0 %v844
        %1834 = vmatmul.mubr.bf16.gmra.mrb[0].mxu0 %v843
        %v1835 = vpop.f32.mrb[0].mxu0
        %v1836 = vadd.f32 %v1675, %v1835
        %v1837 = vpop.f32.mrb[0].mxu0
        %v1838 = vpop.f32.mrb[0].mxu0
        %v1839 = vadd.f32 %v1678, %v1838
        %v1840 = vpop.f32.mrb[0].mxu0
        %1841 = vmatprep.mubr.bf16.mxu0 %v852
        %1842 = vmatmul.mubr.bf16.gmra.mrb[0].mxu0 %v851
        %v1843 = vpop.f32.mrb[0].mxu0
        %v1844 = vadd.f32 %v1683, %v1843
        %v1845 = vpop.f32.mrb[0].mxu0
        %v1846 = vpop.f32.mrb[0].mxu0
        %v1847 = vadd.f32 %v1686, %v1846
        %v1848 = vpop.f32.mrb[0].mxu0
        %1849 = vmatprep.mubr.bf16.mxu0 %v860
        %1850 = vmatmul.mubr.bf16.gmra.mrb[0].mxu0 %v859
        %v1851 = vpop.f32.mrb[0].mxu0
        %v1852 = vadd.f32 %v1691, %v1851
        %v1853 = vpop.f32.mrb[0].mxu0
        %v1854 = vpop.f32.mrb[0].mxu0
        %v1855 = vadd.f32 %v1694, %v1854
        %v1856 = vpop.f32.mrb[0].mxu0
        %1857 = vmatprep.mubr.bf16.mxu0 %v868
        %1858 = vmatmul.mubr.bf16.gmra.mrb[0].mxu0 %v867
        %v1859 = vpop.f32.mrb[0].mxu0
        %v1860 = vadd.f32 %v1699, %v1859
        %v1861 = vpop.f32.mrb[0].mxu0
        %v1862 = vpop.f32.mrb[0].mxu0
        %v1863 = vadd.f32 %v1702, %v1862
        %v1864 = vpop.f32.mrb[0].mxu0
        %1865 = vmatprep.mubr.bf16.mxu0 %v876
        %1866 = vmatmul.mubr.bf16.gmra.mrb[0].mxu0 %v875
        %v1867 = vpop.f32.mrb[0].mxu0
        %v1868 = vadd.f32 %v1707, %v1867
        %v1869 = vpop.f32.mrb[0].mxu0
        %v1870 = vpop.f32.mrb[0].mxu0
        %v1871 = vadd.f32 %v1710, %v1870
        %v1872 = vpop.f32.mrb[0].mxu0
        %1873 = vmatprep.mubr.bf16.mxu0 %v884
        %1874 = vmatmul.mubr.bf16.gmra.mrb[0].mxu0 %v883
        %v1875 = vpop.f32.mrb[0].mxu0
        %v1876 = vadd.f32 %v1715, %v1875
        %v1877 = vpop.f32.mrb[0].mxu0
        %v1878 = vpop.f32.mrb[0].mxu0
        %v1879 = vadd.f32 %v1718, %v1878
        %v1880 = vpop.f32.mrb[0].mxu0
        %1881 = vmatprep.mubr.bf16.mxu0 %v892
        %1882 = vmatmul.mubr.bf16.gmra.mrb[0].mxu0 %v891
        %v1883 = vpop.f32.mrb[0].mxu0
        %v1884 = vadd.f32 %v1723, %v1883
        %v1885 = vpop.f32.mrb[0].mxu0
        %v1886 = vpop.f32.mrb[0].mxu0
        %v1887 = vadd.f32 %v1726, %v1886
        %v1888 = vpop.f32.mrb[0].mxu0
        %1889 = vmatprep.mubr.bf16.mxu0 %v900
        %1890 = vmatmul.mubr.bf16.gmra.mrb[0].mxu0 %v899
        %v1891 = vpop.f32.mrb[0].mxu0
        %v1892 = vadd.f32 %v1731, %v1891
        %v1893 = vpop.f32.mrb[0].mxu0
        %v1894 = vpop.f32.mrb[0].mxu0
        %v1895 = vadd.f32 %v1734, %v1894
        %v1896 = vpop.f32.mrb[0].mxu0
        %1897 = vmatprep.mubr.bf16.mxu0 %v908
        %1898 = vmatmul.mubr.bf16.gmra.mrb[0].mxu0 %v907
        %v1899 = vpop.f32.mrb[0].mxu0
        %v1900 = vadd.f32 %v1739, %v1899
        %v1901 = vpop.f32.mrb[0].mxu0
        %v1902 = vpop.f32.mrb[0].mxu0
        %v1903 = vadd.f32 %v1742, %v1902
        %v1904 = vpop.f32.mrb[0].mxu0
        %1905 = vmatprep.mubr.bf16.mxu0 %v916
        %1906 = vmatmul.mubr.bf16.gmra.mrb[0].mxu0 %v915
        %v1907 = vpop.f32.mrb[0].mxu0
        %v1908 = vadd.f32 %v1747, %v1907
        %v1909 = vpop.f32.mrb[0].mxu0
        %v1910 = vpop.f32.mrb[0].mxu0
        %v1911 = vadd.f32 %v1750, %v1910
        %v1912 = vpop.f32.mrb[0].mxu0
        %1913 = vmatprep.mubr.bf16.mxu0 %v924
        %1914 = vmatmul.mubr.bf16.gmra.mrb[0].mxu0 %v923
        %v1915 = vpop.f32.mrb[0].mxu0
        %v1916 = vadd.f32 %v1755, %v1915
        %v1917 = vpop.f32.mrb[0].mxu0
        %v1918 = vpop.f32.mrb[0].mxu0
        %v1919 = vadd.f32 %v1758, %v1918
        %v1920 = vpop.f32.mrb[0].mxu0
        %1921 = vmatprep.mubr.bf16.mxu0 %v932
        %1922 = vmatmul.mubr.bf16.gmra.mrb[0].mxu0 %v931
        %v1923 = vpop.f32.mrb[0].mxu0
        %v1924 = vadd.f32 %v1763, %v1923
        %v1925 = vpop.f32.mrb[0].mxu0
        %v1926 = vpop.f32.mrb[0].mxu0
        %v1927 = vadd.f32 %v1766, %v1926
        %v1928 = vpop.f32.mrb[0].mxu0
        %1929 = vmatprep.mubr.bf16.mxu0 %v940
        %1930 = vmatmul.mubr.bf16.gmra.mrb[0].mxu0 %v939
        %v1931 = vpop.f32.mrb[0].mxu0
        %v1932 = vadd.f32 %v1771, %v1931
        %v1933 = vpop.f32.mrb[0].mxu0
        %v1934 = vpop.f32.mrb[0].mxu0
        %v1935 = vadd.f32 %v1774, %v1934
        %v1936 = vpop.f32.mrb[0].mxu0
        %1937 = vmatprep.mubr.bf16.mxu0 %v948
        %1938 = vmatmul.mubr.bf16.gmra.mrb[0].mxu0 %v947
        %v1939 = vpop.f32.mrb[0].mxu0
        %v1940 = vadd.f32 %v1779, %v1939
        %v1941 = vpop.f32.mrb[0].mxu0
        %v1942 = vpop.f32.mrb[0].mxu0
        %v1943 = vadd.f32 %v1782, %v1942
        %v1944 = vpop.f32.mrb[0].mxu0
        %1945 = vdwg.mxu0
        %1946 = vmatprep.subr.bf16.mxu0 0
        %1947 = vmatpush1.bf16.msra.mxu0 %v1383
        %1948 = vmatprep.subr.bf16.mxu0 0
        %1949 = vmatpush1.bf16.msra.mxu0 %v1384
        %1950 = vmatprep.subr.bf16.mxu0 0
        %1951 = vmatpush1.bf16.msra.mxu0 %v1385
        %1952 = vmatprep.subr.bf16.mxu0 0
        %1953 = vmatpush1.bf16.msra.mxu0 %v1386
        %1954 = vmatprep.subr.bf16.mxu0 0
        %1955 = vmatpush1.bf16.msra.mxu0 %v1387
        %1956 = vmatprep.subr.bf16.mxu0 0
        %1957 = vmatpush1.bf16.msra.mxu0 %v1388
        %1958 = vmatprep.subr.bf16.mxu0 0
        %1959 = vmatpush1.bf16.msra.mxu0 %v1389
        %1960 = vmatprep.subr.bf16.mxu0 0
        %1961 = vmatpush1.bf16.msra.mxu0 %v1390
        %1962 = vmatprep.subr.bf16.mxu0 0
        %1963 = vmatpush1.bf16.msra.mxu0 %v1391
        %1964 = vmatprep.subr.bf16.mxu0 0
        %1965 = vmatpush1.bf16.msra.mxu0 %v1392
        %1966 = vmatprep.subr.bf16.mxu0 0
        %1967 = vmatpush1.bf16.msra.mxu0 %v1393
        %1968 = vmatprep.subr.bf16.mxu0 0
        %1969 = vmatpush1.bf16.msra.mxu0 %v1394
        %1970 = vmatprep.subr.bf16.mxu0 0
        %1971 = vmatpush1.bf16.msra.mxu0 %v1395
        %1972 = vmatprep.subr.bf16.mxu0 0
        %1973 = vmatpush1.bf16.msra.mxu0 %v1396
        %1974 = vmatprep.subr.bf16.mxu0 0
        %1975 = vmatpush1.bf16.msra.mxu0 %v1397
        %1976 = vmatprep.subr.bf16.mxu0 0
        %1977 = vmatpush1.bf16.msra.mxu0 %v1398
        %1978 = vmatprep.mubr.bf16.mxu0 %v830
        %1979 = vmatmul.mubr.bf16.gmra.mrb[0].mxu0 %v829
        %v1980 = vpop.f32.mrb[0].mxu0
        %v1981 = vadd.f32 %v1820, %v1980
        %v1982 = vpop.f32.mrb[0].mxu0
        %v1983 = vpop.f32.mrb[0].mxu0
        %v1984 = vadd.f32 %v1823, %v1983
        %v1985 = vpop.f32.mrb[0].mxu0
        %1986 = vmatprep.mubr.bf16.mxu0 %v838
        %1987 = vmatmul.mubr.bf16.gmra.mrb[0].mxu0 %v837
        %v1988 = vpop.f32.mrb[0].mxu0
        %v1989 = vadd.f32 %v1828, %v1988
        %v1990 = vpop.f32.mrb[0].mxu0
        %v1991 = vpop.f32.mrb[0].mxu0
        %v1992 = vadd.f32 %v1831, %v1991
        %v1993 = vpop.f32.mrb[0].mxu0
        %1994 = vmatprep.mubr.bf16.mxu0 %v846
        %1995 = vmatmul.mubr.bf16.gmra.mrb[0].mxu0 %v845
        %v1996 = vpop.f32.mrb[0].mxu0
        %v1997 = vadd.f32 %v1836, %v1996
        %v1998 = vpop.f32.mrb[0].mxu0
        %v1999 = vpop.f32.mrb[0].mxu0
        %v2000 = vadd.f32 %v1839, %v1999
        %v2001 = vpop.f32.mrb[0].mxu0
        %2002 = vmatprep.mubr.bf16.mxu0 %v854
        %2003 = vmatmul.mubr.bf16.gmra.mrb[0].mxu0 %v853
        %v2004 = vpop.f32.mrb[0].mxu0
        %v2005 = vadd.f32 %v1844, %v2004
        %v2006 = vpop.f32.mrb[0].mxu0
        %v2007 = vpop.f32.mrb[0].mxu0
        %v2008 = vadd.f32 %v1847, %v2007
        %v2009 = vpop.f32.mrb[0].mxu0
        %2010 = vmatprep.mubr.bf16.mxu0 %v862
        %2011 = vmatmul.mubr.bf16.gmra.mrb[0].mxu0 %v861
        %v2012 = vpop.f32.mrb[0].mxu0
        %v2013 = vadd.f32 %v1852, %v2012
        %v2014 = vpop.f32.mrb[0].mxu0
        %v2015 = vpop.f32.mrb[0].mxu0
        %v2016 = vadd.f32 %v1855, %v2015
        %v2017 = vpop.f32.mrb[0].mxu0
        %2018 = vmatprep.mubr.bf16.mxu0 %v870
        %2019 = vmatmul.mubr.bf16.gmra.mrb[0].mxu0 %v869
        %v2020 = vpop.f32.mrb[0].mxu0
        %v2021 = vadd.f32 %v1860, %v2020
        %v2022 = vpop.f32.mrb[0].mxu0
        %v2023 = vpop.f32.mrb[0].mxu0
        %v2024 = vadd.f32 %v1863, %v2023
        %v2025 = vpop.f32.mrb[0].mxu0
        %2026 = vmatprep.mubr.bf16.mxu0 %v878
        %2027 = vmatmul.mubr.bf16.gmra.mrb[0].mxu0 %v877
        %v2028 = vpop.f32.mrb[0].mxu0
        %v2029 = vadd.f32 %v1868, %v2028
        %v2030 = vpop.f32.mrb[0].mxu0
        %v2031 = vpop.f32.mrb[0].mxu0
        %v2032 = vadd.f32 %v1871, %v2031
        %v2033 = vpop.f32.mrb[0].mxu0
        %2034 = vmatprep.mubr.bf16.mxu0 %v886
        %2035 = vmatmul.mubr.bf16.gmra.mrb[0].mxu0 %v885
        %v2036 = vpop.f32.mrb[0].mxu0
        %v2037 = vadd.f32 %v1876, %v2036
        %v2038 = vpop.f32.mrb[0].mxu0
        %v2039 = vpop.f32.mrb[0].mxu0
        %v2040 = vadd.f32 %v1879, %v2039
        %v2041 = vpop.f32.mrb[0].mxu0
        %2042 = vmatprep.mubr.bf16.mxu0 %v894
        %2043 = vmatmul.mubr.bf16.gmra.mrb[0].mxu0 %v893
        %v2044 = vpop.f32.mrb[0].mxu0
        %v2045 = vadd.f32 %v1884, %v2044
        %v2046 = vpop.f32.mrb[0].mxu0
        %v2047 = vpop.f32.mrb[0].mxu0
        %v2048 = vadd.f32 %v1887, %v2047
        %v2049 = vpop.f32.mrb[0].mxu0
        %2050 = vmatprep.mubr.bf16.mxu0 %v902
        %2051 = vmatmul.mubr.bf16.gmra.mrb[0].mxu0 %v901
        %v2052 = vpop.f32.mrb[0].mxu0
        %v2053 = vadd.f32 %v1892, %v2052
        %v2054 = vpop.f32.mrb[0].mxu0
        %v2055 = vpop.f32.mrb[0].mxu0
        %v2056 = vadd.f32 %v1895, %v2055
        %v2057 = vpop.f32.mrb[0].mxu0
        %2058 = vmatprep.mubr.bf16.mxu0 %v910
        %2059 = vmatmul.mubr.bf16.gmra.mrb[0].mxu0 %v909
        %v2060 = vpop.f32.mrb[0].mxu0
        %v2061 = vadd.f32 %v1900, %v2060
        %v2062 = vpop.f32.mrb[0].mxu0
        %v2063 = vpop.f32.mrb[0].mxu0
        %v2064 = vadd.f32 %v1903, %v2063
        %v2065 = vpop.f32.mrb[0].mxu0
        %2066 = vmatprep.mubr.bf16.mxu0 %v918
        %2067 = vmatmul.mubr.bf16.gmra.mrb[0].mxu0 %v917
        %v2068 = vpop.f32.mrb[0].mxu0
        %v2069 = vadd.f32 %v1908, %v2068
        %v2070 = vpop.f32.mrb[0].mxu0
        %v2071 = vpop.f32.mrb[0].mxu0
        %v2072 = vadd.f32 %v1911, %v2071
        %v2073 = vpop.f32.mrb[0].mxu0
        %2074 = vmatprep.mubr.bf16.mxu0 %v926
        %2075 = vmatmul.mubr.bf16.gmra.mrb[0].mxu0 %v925
        %v2076 = vpop.f32.mrb[0].mxu0
        %v2077 = vadd.f32 %v1916, %v2076
        %v2078 = vpop.f32.mrb[0].mxu0
        %v2079 = vpop.f32.mrb[0].mxu0
        %v2080 = vadd.f32 %v1919, %v2079
        %v2081 = vpop.f32.mrb[0].mxu0
        %2082 = vmatprep.mubr.bf16.mxu0 %v934
        %2083 = vmatmul.mubr.bf16.gmra.mrb[0].mxu0 %v933
        %v2084 = vpop.f32.mrb[0].mxu0
        %v2085 = vadd.f32 %v1924, %v2084
        %v2086 = vpop.f32.mrb[0].mxu0
        %v2087 = vpop.f32.mrb[0].mxu0
        %v2088 = vadd.f32 %v1927, %v2087
        %v2089 = vpop.f32.mrb[0].mxu0
        %2090 = vmatprep.mubr.bf16.mxu0 %v942
        %2091 = vmatmul.mubr.bf16.gmra.mrb[0].mxu0 %v941
        %v2092 = vpop.f32.mrb[0].mxu0
        %v2093 = vadd.f32 %v1932, %v2092
        %v2094 = vpop.f32.mrb[0].mxu0
        %v2095 = vpop.f32.mrb[0].mxu0
        %v2096 = vadd.f32 %v1935, %v2095
        %v2097 = vpop.f32.mrb[0].mxu0
        %2098 = vmatprep.mubr.bf16.mxu0 %v950
        %2099 = vmatmul.mubr.bf16.gmra.mrb[0].mxu0 %v949
        %v2100 = vpop.f32.mrb[0].mxu0
        %v2101 = vadd.f32 %v1940, %v2100
        %v2102 = vpop.f32.mrb[0].mxu0
        %v2103 = vpop.f32.mrb[0].mxu0
        %v2104 = vadd.f32 %v1943, %v2103
        %v2105 = vpop.f32.mrb[0].mxu0
        %2106 = vdwg.mxu0
        %2107 = vst [vmem:[%s166] sm:$0xff] %v1981
        %2108 = vst [vmem:[%s166 + $0x8] sm:$0xff] %v1984
        %2109 = vst [vmem:[%s166 + $0x10] sm:$0xff] %v1989
        %2110 = vst [vmem:[%s166 + $0x18] sm:$0xff] %v1992
        %2111 = vst [vmem:[%s166 + $0x20] sm:$0xff] %v1997
        %2112 = vst [vmem:[%s166 + $0x28] sm:$0xff] %v2000
        %2113 = vst [vmem:[%s166 + $0x30] sm:$0xff] %v2005
        %2114 = vst [vmem:[%s166 + $0x38] sm:$0xff] %v2008
        %2115 = vst [vmem:[%s166 + $0x40] sm:$0xff] %v2013
        %2116 = vst [vmem:[%s166 + $0x48] sm:$0xff] %v2016
        %2117 = vst [vmem:[%s166 + $0x50] sm:$0xff] %v2021
        %2118 = vst [vmem:[%s166 + $0x58] sm:$0xff] %v2024
        %2119 = vst [vmem:[%s166 + $0x60] sm:$0xff] %v2029
        %2120 = vst [vmem:[%s166 + $0x68] sm:$0xff] %v2032
        %2121 = vst [vmem:[%s166 + $0x70] sm:$0xff] %v2037
        %2122 = vst [vmem:[%s166 + $0x78] sm:$0xff] %v2040
        %2123 = vst [vmem:[%s166 + $0x80] sm:$0xff] %v2045
        %2124 = vst [vmem:[%s166 + $0x88] sm:$0xff] %v2048
        %2125 = vst [vmem:[%s166 + $0x90] sm:$0xff] %v2053
        %2126 = vst [vmem:[%s166 + $0x98] sm:$0xff] %v2056
        %2127 = vst [vmem:[%s166 + $0xa0] sm:$0xff] %v2061
        %2128 = vst [vmem:[%s166 + $0xa8] sm:$0xff] %v2064
        %2129 = vst [vmem:[%s166 + $0xb0] sm:$0xff] %v2069
        %2130 = vst [vmem:[%s166 + $0xb8] sm:$0xff] %v2072
        %2131 = vst [vmem:[%s166 + $0xc0] sm:$0xff] %v2077
        %2132 = vst [vmem:[%s166 + $0xc8] sm:$0xff] %v2080
        %2133 = vst [vmem:[%s166 + $0xd0] sm:$0xff] %v2085
        %2134 = vst [vmem:[%s166 + $0xd8] sm:$0xff] %v2088
        %2135 = vst [vmem:[%s166 + $0xe0] sm:$0xff] %v2093
        %2136 = vst [vmem:[%s166 + $0xe8] sm:$0xff] %v2096
        %2137 = vst [vmem:[%s166 + $0xf0] sm:$0xff] %v2101
        %2138 = vst [vmem:[%s166 + $0xf8] sm:$0xff] %v2104
        %s2139 = sand.u32 %s93, 1
        %s2140 = scalar_lea.sflag [#allocation3], %s2139
        %s2141 = sand.u32 %s93, 1
        %s2142 = smul.addr %s2141, 256
        %s2143 = scalar_lea.vmem [#allocation2], %s2142
        // Predicated region
        $region33: #{outer_product_mean.5} parent=31 // pred_check
          %p2144 = pneg %p103
        $region34: #{outer_product_mean.5} parent=31 // pred_check_branch
          %2146 = sbr.rel (%p2144) target = $region36
        $region35: #{outer_product_mean.5} parent=31 // pred_region
          %s2147 = smul.u32 32, %s17
          %s2149 = ssub.s32 4096, 4096
          %2150 = vsyncadd %s2140, %s2149
          %s2151 = smul.addr %s2147, 128
          %s2152 = scalar_lea.hbm %s3, %s2151
          %s2153 = sshll.u32 %s2143, 4
          %s2154 = int_to_ptr.vmem [resolvable:$true] %s2153
          %2159 = dma.vmem_to_hbm [thread:$0]  %s2154, 4096, %s2152, %s2140, 128, 128, 8
        $region36: #{outer_product_mean.5} parent=31 // pred_fallthru
          _
      $region32: #{outer_product_mean.5} parent=5 // pred_fallthru
        _
      %p2160 = scmp.le.s32.totalorder 2, %s12
      // Predicated region
      $region37: #{outer_product_mean.5} parent=5 // pred_check
        %p2161 = pneg %p2160
      $region38: #{outer_product_mean.5} parent=5 // pred_check_branch
        %2163 = sbr.rel (%p2161) target = $region40
      $region39: #{outer_product_mean.5} parent=5 // pred_region
        %s2164 = ssub.s32 %s12, 2
        // Predicated region
        $region41: #{outer_product_mean.5} parent=39 // pred_check
          %p2165 = pneg %p109
        $region42: #{outer_product_mean.5} parent=39 // pred_check_branch
          %2167 = sbr.rel (%p2165) target = $region44
        $region43: #{outer_product_mean.5} parent=39 // pred_region
          %s2168 = sand.u32 %s94, 1
          %s2169 = scalar_lea.sflag [#allocation3], %s2168
          %s2170 = sand.u32 %s94, 1
          %s2171 = smul.addr %s2170, 256
          %s2172 = scalar_lea.vmem [#allocation2], %s2171
          %2173 = dma.done %s2169, 4096
        $region44: #{outer_product_mean.5} parent=39 // pred_fallthru
          _
      $region40: #{outer_product_mean.5} parent=5 // pred_fallthru
        _
    $region6: #{outer_product_mean.5} parent=1 // loop_footer
      %s16 = sadd.s32 1, %s12
    $region7: #{outer_product_mean.5} parent=1 // loop_footer_branch
      %11 = sbr.rel target = $region3
    $region8: #{outer_product_mean.5} parent=1 // loop_exit
      _
    %2174 = vsyncpa [#allocation3], 1
    %s2175 = scalar_lea.sflag [#allocation3], 1
    %2176 = vsyncpa %s2175, 1

</llo_original>
